<compile_context>
chip_gen: v6e
topology: v6e:2x2x1
jax: 0.10.0
libtpu: 0.0.40
codegen_flags: <defaults>
</compile_context>

<pallas_src>
import jax
import jax.numpy as jnp
from jax import lax
from jax.experimental import pallas as pl
from jax.experimental.pallas import tpu as pltpu


def _attn_scores_kernel(x88_ref, x77_ref, o_ref):
    # x88_ref: (HB, S, D), x77_ref: (HB, S, D), o_ref: (HB, S, S)
    # Batched contraction over D (last axis of both) with HB as the batch dim.
    # Lowers to a batched MXU matmul with a transposed RHS -- no data movement.
    o_ref[...] = lax.dot_general(
        x88_ref[...],
        x77_ref[...],
        dimension_numbers=(((2,), (2,)), ((0,), (0,))),
        preferred_element_type=jnp.float32,
    ).astype(o_ref.dtype)


def _pick_heads_per_block(bh, max_hb=4):
    """Largest divisor of bh that is <= max_hb, preferring >= 2 grid steps
    (so v7x can shard the grid across its two TensorCores)."""
    candidates = [d for d in range(1, min(bh, max_hb) + 1) if bh % d == 0]
    if bh >= 2:
        two_step = [d for d in candidates if bh // d >= 2]
        if two_step:
            return max(two_step)
    return max(candidates)


def transpose_matmul(x88, x77):
    """Computes matmul(x88, x77.transpose(-1, -2)) for [B, H, S, D] inputs."""
    B, H, S, D = x88.shape
    assert x77.shape == (B, H, S, D)

    BH = B * H
    x88_f = x88.reshape(BH, S, D)
    x77_f = x77.reshape(BH, S, D)

    hb = _pick_heads_per_block(BH)
    grid = (BH // hb,)

    out = pl.pallas_call(
        _attn_scores_kernel,
        out_shape=jax.ShapeDtypeStruct((BH, S, S), x88.dtype),
        grid_spec=pltpu.PrefetchScalarGridSpec(
            num_scalar_prefetch=0,
            grid=grid,
            in_specs=[
                pl.BlockSpec((hb, S, D), lambda i: (i, 0, 0)),
                pl.BlockSpec((hb, S, D), lambda i: (i, 0, 0)),
            ],
            out_specs=pl.BlockSpec((hb, S, S), lambda i: (i, 0, 0)),
        ),
        compiler_params=pltpu.CompilerParams(
            dimension_semantics=("parallel",),
            # Larger blocks are double-buffered (in + in + out); raise the
            # scoped VMEM limit so v5e's 16 MiB default doesn't force a
            # smaller tiling. 48 MiB is safe on v5e/v6e (128 MiB) and v7x
            # (64 MiB per TC).
            vmem_limit_bytes=48 << 20,
        ),
    )(x88_f, x77_f)

    return out.reshape(B, H, S, S)


if __name__ == "__main__":
    # Shapes match the PyTorch module: [1, 12, 384, 64] (already small).
    B, H, S, D = 1, 12, 384, 64
    key = jax.random.PRNGKey(0)
    k1, k2 = jax.random.split(key)
    x77 = jax.random.normal(k1, (B, H, S, D), dtype=jnp.float32)
    x88 = jax.random.normal(k2, (B, H, S, D), dtype=jnp.float32)

    out = transpose_matmul(x88, x77)
    jax.block_until_ready(out)

    # Reference check against plain JAX (matmul with transposed last two dims).
    ref = jnp.matmul(x88, jnp.swapaxes(x77, -1, -2))
    assert out.shape == (B, H, S, S)
    assert jnp.allclose(out, ref, atol=1e-4, rtol=1e-4)

    print("KERNEL_OK")
</pallas_src>

<mosaic_0001>
module attributes {stable_mosaic.version = 11 : i64} {
  func.func @_attn_scores_kernel(%arg0: i32, %arg1: memref<4x384x64xf32, #tpu.memory_space<vmem>>, %arg2: memref<4x384x64xf32, #tpu.memory_space<vmem>>, %arg3: memref<4x384x384xf32, #tpu.memory_space<vmem>>) attributes {dimension_semantics = [#tpu.dimension_semantics<parallel>], iteration_bounds = array<i64: 3>, scalar_prefetch = 0 : i64, scratch_operands = 0 : i64, tpu.core_type = #tpu.core_type<tc>, window_params = [{transform_indices = @transform_0, window_bounds = array<i64: 4, 384, 64>}, {transform_indices = @transform_1, window_bounds = array<i64: 4, 384, 64>}, {transform_indices = @transform_2, window_bounds = array<i64: 4, 384, 384>}]} {
    %c0 = arith.constant 0 : index
    %c0_0 = arith.constant 0 : index
    %c0_1 = arith.constant 0 : index
    %0 = vector.load %arg1[%c0, %c0_0, %c0_1] : memref<4x384x64xf32, #tpu.memory_space<vmem>>, vector<4x384x64xf32>
    %c0_2 = arith.constant 0 : index
    %c0_3 = arith.constant 0 : index
    %c0_4 = arith.constant 0 : index
    %1 = vector.load %arg2[%c0_2, %c0_3, %c0_4] : memref<4x384x64xf32, #tpu.memory_space<vmem>>, vector<4x384x64xf32>
    %cst = arith.constant dense<0.000000e+00> : vector<4x384x384xf32>
    %2 = tpu.matmul %0, %1, %cst {dimension_numbers = #tpu.dot_dimension_numbers<[2], [2], [1], [1], [0, 0, 0, 1, 1, 1], [0], [0]>} : vector<4x384x64xf32>, vector<4x384x64xf32>, vector<4x384x384xf32> -> vector<4x384x384xf32>
    %c0_5 = arith.constant 0 : index
    %c0_6 = arith.constant 0 : index
    %c0_7 = arith.constant 0 : index
    %3 = vector.load %arg3[%c0_5, %c0_6, %c0_7] : memref<4x384x384xf32, #tpu.memory_space<vmem>>, vector<4x384x384xf32>
    tpu.vector_store %arg3[%c0_5, %c0_6, %c0_7], %2 {strides = array<i32>} : memref<4x384x384xf32, #tpu.memory_space<vmem>>, vector<4x384x384xf32>,
    return
  }
  func.func @transform_0(%arg0: i32) -> (i32, i32, i32) {
    %c0_i32 = arith.constant 0 : i32
    %c0_i32_0 = arith.constant 0 : i32
    %c0_i32_1 = arith.constant 0 : i32
    return %arg0, %c0_i32, %c0_i32_0 : i32, i32, i32
  }
  func.func @transform_1(%arg0: i32) -> (i32, i32, i32) {
    %c0_i32 = arith.constant 0 : i32
    %c0_i32_0 = arith.constant 0 : i32
    %c0_i32_1 = arith.constant 0 : i32
    return %arg0, %c0_i32, %c0_i32_0 : i32, i32, i32
  }
  func.func @transform_2(%arg0: i32) -> (i32, i32, i32) {
    %c0_i32 = arith.constant 0 : i32
    %c0_i32_0 = arith.constant 0 : i32
    %c0_i32_1 = arith.constant 0 : i32
    return %arg0, %c0_i32, %c0_i32_0 : i32, i32, i32
  }
}

</mosaic_0001>

<llo_original>
// kernel: tpu_custom_call.1
$region0: #{tpu_custom_call.1}
  #allocation0 [shape = 'u32[]', space=smem, size = 0x4, offset = 0x4, fixed_abs, tag = 'smem constant byte address 0x4 - core index']
  #allocation1 [shape = 'u32[144,128]{1,0:T(1,128)}', space=vmem, size = 0x12000, scoped, tag = 'internal scratch']
  %s0 = inlined_call_operand.vmem [shape: f32[12,384,64], index: 0, kind: input, shape index: {}]
  %s1 = inlined_call_operand.vmem [shape: f32[12,384,64], index: 1, kind: input, shape index: {}]
  %s2 = inlined_call_operand.hbm [shape: f32[12,384,384], index: 2, kind: output, shape index: {}]
  %s3 = sld [smem:[#allocation0]]
  $region41: #{tpu_custom_call.1} parent=0
    _
  %s5 = ssub.s32 1, %s3
  %s6 = scalar_select 0, %s5, %s3
  $region1: #{tpu_custom_call.1} parent=0
    #allocation2 [shape = 'u8[4718592]{0}', space=vmem, size = 0x480000, scoped, tag = 'output window, operand 0']
    #allocation3 [shape = 's32[2]{0}', space=sflag, size = 0x8, scoped, tag = 'scoped memory for tpu_custom_call.1']
    %7 = vsyncpa [#allocation3], 0
    %s8 = scalar_lea.sflag [#allocation3], 1
    %9 = vsyncpa %s8, 0
    loop: start=0, step=1, limit=5
    $region2: #{tpu_custom_call.1} parent=1 // loop_pre_header
      _
    $region3: #{tpu_custom_call.1} parent=1 // loop_header
      %s11 = sphi 0, %s15
      %p12 = scmp.ge.s32.totalorder %s11, 5
      %s21 = sphi 0, %s23
      %s24 = sphi 0, %s21
      %s25 = sphi 0, %s24
      %s41 = sphi 0, %s25
      %s47 = sphi 0, %s49
      %s50 = sphi 0, %s47
      %s51 = sphi 0, %s50
      %s67 = sphi 0, %s51
      %s73 = sphi 0, %s75
      %s76 = sphi 0, %s73
      %s77 = sphi 0, %s76
      %s93 = sphi 0, %s77
    $region4: #{tpu_custom_call.1} parent=1 // loop_header_branch
      %14 = sbr.rel (%p12) target = $region8
    $region5: #{tpu_custom_call.1} parent=1 // loop_body
      %s16 = ssub.s32 %s11, 1
      %s17 = ssub.s32 %s11, 2
      %s18 = sadd.s32 %s11, 1
      %s19 = ssub.s32 %s11, %s18
      %p20 = scmp.eq.s32.totalorder %s19, 0
      %s22 = sadd.s32 %s21, 1
      %s23 = scalar_select %p20, %s21, %s22
      %p26 = pneg %p20
      %p27 = scmp.eq.s32.totalorder %s11, 2
      %p28 = por %p26, %p27
      %p29 = scmp.ne.s32.totalorder %s21, %s24
      %p30 = scmp.eq.s32.totalorder %s11, 0
      %p31 = por %p29, %p30
      %p32 = scmp.ne.s32.totalorder %s21, %s24
      %p33 = scmp.eq.s32.totalorder %s16, 2
      %p34 = por %p32, %p33
      %p35 = scmp.ne.s32.totalorder %s24, %s25
      %p36 = scmp.eq.s32.totalorder %s16, 0
      %p37 = por %p35, %p36
      %p38 = scmp.ne.s32.totalorder %s24, %s25
      %p39 = scmp.eq.s32.totalorder %s17, 2
      %p40 = por %p38, %p39
      %p42 = scmp.ne.s32.totalorder %s25, %s41
      %p43 = scmp.eq.s32.totalorder %s17, 0
      %p44 = por %p42, %p43
      %s45 = ssub.s32 %s11, %s18
      %p46 = scmp.eq.s32.totalorder %s45, 0
      %s48 = sadd.s32 %s47, 1
      %s49 = scalar_select %p46, %s47, %s48
      %p52 = pneg %p46
      %p53 = scmp.eq.s32.totalorder %s11, 2
      %p54 = por %p52, %p53
      %p55 = scmp.ne.s32.totalorder %s47, %s50
      %p56 = scmp.eq.s32.totalorder %s11, 0
      %p57 = por %p55, %p56
      %p58 = scmp.ne.s32.totalorder %s47, %s50
      %p59 = scmp.eq.s32.totalorder %s16, 2
      %p60 = por %p58, %p59
      %p61 = scmp.ne.s32.totalorder %s50, %s51
      %p62 = scmp.eq.s32.totalorder %s16, 0
      %p63 = por %p61, %p62
      %p64 = scmp.ne.s32.totalorder %s50, %s51
      %p65 = scmp.eq.s32.totalorder %s17, 2
      %p66 = por %p64, %p65
      %p68 = scmp.ne.s32.totalorder %s51, %s67
      %p69 = scmp.eq.s32.totalorder %s17, 0
      %p70 = por %p68, %p69
      %s71 = ssub.s32 %s11, %s18
      %p72 = scmp.eq.s32.totalorder %s71, 0
      %s74 = sadd.s32 %s73, 1
      %s75 = scalar_select %p72, %s73, %s74
      %p78 = pneg %p72
      %p79 = scmp.eq.s32.totalorder %s11, 2
      %p80 = por %p78, %p79
      %p81 = scmp.ne.s32.totalorder %s73, %s76
      %p82 = scmp.eq.s32.totalorder %s11, 0
      %p83 = por %p81, %p82
      %p84 = scmp.ne.s32.totalorder %s73, %s76
      %p85 = scmp.eq.s32.totalorder %s16, 2
      %p86 = por %p84, %p85
      %p87 = scmp.ne.s32.totalorder %s76, %s77
      %p88 = scmp.eq.s32.totalorder %s16, 0
      %p89 = por %p87, %p88
      %p90 = scmp.ne.s32.totalorder %s76, %s77
      %p91 = scmp.eq.s32.totalorder %s17, 2
      %p92 = por %p90, %p91
      %p94 = scmp.ne.s32.totalorder %s77, %s93
      %p95 = scmp.eq.s32.totalorder %s17, 0
      %p96 = por %p94, %p95
      %p97 = scmp.le.s32.totalorder 1, %s11
      %p98 = scmp.lt.s32.totalorder %s11, 4
      %p99 = pnand %p97, %p98
      %p100 = pneg %p99
      // Predicated region
      $region9: #{tpu_custom_call.1} parent=5 // pred_check
        _
      $region10: #{tpu_custom_call.1} parent=5 // pred_check_branch
        %102 = sbr.rel (%p99) target = $region12
      $region11: #{tpu_custom_call.1} parent=5 // pred_region
        %s103 = ssub.s32 %s11, 1
      $region12: #{tpu_custom_call.1} parent=5 // pred_fallthru
        _
      %p104 = scmp.lt.s32.totalorder %s11, 3
      // Predicated region
      $region13: #{tpu_custom_call.1} parent=5 // pred_check
        %p105 = pneg %p104
      $region14: #{tpu_custom_call.1} parent=5 // pred_check_branch
        %107 = sbr.rel (%p105) target = $region16
      $region15: #{tpu_custom_call.1} parent=5 // pred_region
        // Predicated region
        $region17: #{tpu_custom_call.1} parent=15 // pred_check
          %p108 = pneg %p31
        $region18: #{tpu_custom_call.1} parent=15 // pred_check_branch
          %110 = sbr.rel (%p108) target = $region20
        $region19: #{tpu_custom_call.1} parent=15 // pred_region
          %s111 = smul.u32 4, %s11
          %p112 = scmp.lt.s32.totalorder %s111, 11
          %s113 = scalar_select %p112, %s111, 11
          %s114 = smul.addr %s113, 48
          %s115 = smul.addr %s114, 8
          %s116 = scalar_lea.vmem %s0, %s115
          %s117 = smul.u32 4, %s11
        $region20: #{tpu_custom_call.1} parent=15 // pred_fallthru
          _
        // Predicated region
        $region21: #{tpu_custom_call.1} parent=15 // pred_check
          %p118 = pneg %p57
        $region22: #{tpu_custom_call.1} parent=15 // pred_check_branch
          %120 = sbr.rel (%p118) target = $region24
        $region23: #{tpu_custom_call.1} parent=15 // pred_region
          %s121 = smul.u32 4, %s11
          %p122 = scmp.lt.s32.totalorder %s121, 11
          %s123 = scalar_select %p122, %s121, 11
          %s124 = smul.addr %s123, 48
          %s125 = smul.addr %s124, 8
          %s126 = scalar_lea.vmem %s1, %s125
          %s127 = smul.u32 4, %s11
        $region24: #{tpu_custom_call.1} parent=15 // pred_fallthru
          _
      $region16: #{tpu_custom_call.1} parent=5 // pred_fallthru
        _
      %p128 = scmp.le.s32.totalorder 1, %s11
      %p129 = scmp.lt.s32.totalorder %s11, 4
      %p130 = pnand %p128, %p129
      %p131 = pneg %p130
      // Predicated region
      $region25: #{tpu_custom_call.1} parent=5 // pred_check
        _
      $region26: #{tpu_custom_call.1} parent=5 // pred_check_branch
        %133 = sbr.rel (%p130) target = $region28
      $region27: #{tpu_custom_call.1} parent=5 // pred_region
        %s134 = ssub.s32 %s11, 1
        %s135 = smul.u32 4, %s16
        %p136 = scmp.lt.s32.totalorder %s135, 11
        %s137 = scalar_select %p136, %s135, 11
        %s138 = smul.addr %s137, 48
        %s139 = smul.addr %s138, 8
        %s140 = scalar_lea.vmem %s0, %s139
        %p141 = pneg %p37
        %p142 = pneg %p34
        %s143 = smul.u32 4, %s16
        %p144 = scmp.lt.s32.totalorder %s143, 11
        %s145 = scalar_select %p144, %s143, 11
        %s146 = smul.addr %s145, 48
        %s147 = smul.addr %s146, 8
        %s148 = scalar_lea.vmem %s1, %s147
        %p149 = pneg %p63
        %p150 = pneg %p60
        %p151 = pneg %p89
        %p152 = pneg %p86
        %s153 = sand.u32 %s76, 1
        %s154 = scalar_lea.sflag [#allocation3], %s153
        %s155 = sand.u32 %s76, 1
        %s156 = smul.addr %s155, 4608
        %s157 = scalar_lea.vmem [#allocation2], %s156
        %s158 = smul.u32 4, %s16
        %p159 = scmp.lt.s32.totalorder %s158, 11
        %s160 = scalar_select %p159, %s158, 11
        %s161 = smul.addr %s160, 48
        %s162 = smul.addr %s161, 8
        %s163 = scalar_lea.vmem %s0, %s162
        %s164 = smul.u32 4, %s16
        %s165 = smul.u32 4, %s16
        %p166 = scmp.lt.s32.totalorder %s165, 11
        %s167 = scalar_select %p166, %s165, 11
        %s168 = smul.addr %s167, 48
        %s169 = smul.addr %s168, 8
        %s170 = scalar_lea.vmem %s1, %s169
        %s171 = smul.u32 4, %s16
        %s172 = smul.u32 4, %s16
        %v173 = vld [vmem:[%s163] sm:$0xff]
        %v174 = vld [vmem:[%s163 + $0x8] sm:$0xff]
        %v175 = vld [vmem:[%s163 + $0x10] sm:$0xff]
        %v176 = vld [vmem:[%s163 + $0x18] sm:$0xff]
        %v177 = vld [vmem:[%s163 + $0x20] sm:$0xff]
        %v178 = vld [vmem:[%s163 + $0x28] sm:$0xff]
        %v179 = vld [vmem:[%s163 + $0x30] sm:$0xff]
        %v180 = vld [vmem:[%s163 + $0x38] sm:$0xff]
        %v181 = vld [vmem:[%s163 + $0x40] sm:$0xff]
        %v182 = vld [vmem:[%s163 + $0x48] sm:$0xff]
        %v183 = vld [vmem:[%s163 + $0x50] sm:$0xff]
        %v184 = vld [vmem:[%s163 + $0x58] sm:$0xff]
        %v185 = vld [vmem:[%s163 + $0x60] sm:$0xff]
        %v186 = vld [vmem:[%s163 + $0x68] sm:$0xff]
        %v187 = vld [vmem:[%s163 + $0x70] sm:$0xff]
        %v188 = vld [vmem:[%s163 + $0x78] sm:$0xff]
        %v189 = vld [vmem:[%s163 + $0x80] sm:$0xff]
        %v190 = vld [vmem:[%s163 + $0x88] sm:$0xff]
        %v191 = vld [vmem:[%s163 + $0x90] sm:$0xff]
        %v192 = vld [vmem:[%s163 + $0x98] sm:$0xff]
        %v193 = vld [vmem:[%s163 + $0xa0] sm:$0xff]
        %v194 = vld [vmem:[%s163 + $0xa8] sm:$0xff]
        %v195 = vld [vmem:[%s163 + $0xb0] sm:$0xff]
        %v196 = vld [vmem:[%s163 + $0xb8] sm:$0xff]
        %v197 = vld [vmem:[%s163 + $0xc0] sm:$0xff]
        %v198 = vld [vmem:[%s163 + $0xc8] sm:$0xff]
        %v199 = vld [vmem:[%s163 + $0xd0] sm:$0xff]
        %v200 = vld [vmem:[%s163 + $0xd8] sm:$0xff]
        %v201 = vld [vmem:[%s163 + $0xe0] sm:$0xff]
        %v202 = vld [vmem:[%s163 + $0xe8] sm:$0xff]
        %v203 = vld [vmem:[%s163 + $0xf0] sm:$0xff]
        %v204 = vld [vmem:[%s163 + $0xf8] sm:$0xff]
        %v205 = vld [vmem:[%s163 + $0x100] sm:$0xff]
        %v206 = vld [vmem:[%s163 + $0x108] sm:$0xff]
        %v207 = vld [vmem:[%s163 + $0x110] sm:$0xff]
        %v208 = vld [vmem:[%s163 + $0x118] sm:$0xff]
        %v209 = vld [vmem:[%s163 + $0x120] sm:$0xff]
        %v210 = vld [vmem:[%s163 + $0x128] sm:$0xff]
        %v211 = vld [vmem:[%s163 + $0x130] sm:$0xff]
        %v212 = vld [vmem:[%s163 + $0x138] sm:$0xff]
        %v213 = vld [vmem:[%s163 + $0x140] sm:$0xff]
        %v214 = vld [vmem:[%s163 + $0x148] sm:$0xff]
        %v215 = vld [vmem:[%s163 + $0x150] sm:$0xff]
        %v216 = vld [vmem:[%s163 + $0x158] sm:$0xff]
        %v217 = vld [vmem:[%s163 + $0x160] sm:$0xff]
        %v218 = vld [vmem:[%s163 + $0x168] sm:$0xff]
        %v219 = vld [vmem:[%s163 + $0x170] sm:$0xff]
        %v220 = vld [vmem:[%s163 + $0x178] sm:$0xff]
        %v221 = vld [vmem:[%s163 + $0x180] sm:$0xff]
        %v222 = vld [vmem:[%s163 + $0x188] sm:$0xff]
        %v223 = vld [vmem:[%s163 + $0x190] sm:$0xff]
        %v224 = vld [vmem:[%s163 + $0x198] sm:$0xff]
        %v225 = vld [vmem:[%s163 + $0x1a0] sm:$0xff]
        %v226 = vld [vmem:[%s163 + $0x1a8] sm:$0xff]
        %v227 = vld [vmem:[%s163 + $0x1b0] sm:$0xff]
        %v228 = vld [vmem:[%s163 + $0x1b8] sm:$0xff]
        %v229 = vld [vmem:[%s163 + $0x1c0] sm:$0xff]
        %v230 = vld [vmem:[%s163 + $0x1c8] sm:$0xff]
        %v231 = vld [vmem:[%s163 + $0x1d0] sm:$0xff]
        %v232 = vld [vmem:[%s163 + $0x1d8] sm:$0xff]
        %v233 = vld [vmem:[%s163 + $0x1e0] sm:$0xff]
        %v234 = vld [vmem:[%s163 + $0x1e8] sm:$0xff]
        %v235 = vld [vmem:[%s163 + $0x1f0] sm:$0xff]
        %v236 = vld [vmem:[%s163 + $0x1f8] sm:$0xff]
        %v237 = vld [vmem:[%s163 + $0x200] sm:$0xff]
        %v238 = vld [vmem:[%s163 + $0x208] sm:$0xff]
        %v239 = vld [vmem:[%s163 + $0x210] sm:$0xff]
        %v240 = vld [vmem:[%s163 + $0x218] sm:$0xff]
        %v241 = vld [vmem:[%s163 + $0x220] sm:$0xff]
        %v242 = vld [vmem:[%s163 + $0x228] sm:$0xff]
        %v243 = vld [vmem:[%s163 + $0x230] sm:$0xff]
        %v244 = vld [vmem:[%s163 + $0x238] sm:$0xff]
        %v245 = vld [vmem:[%s163 + $0x240] sm:$0xff]
        %v246 = vld [vmem:[%s163 + $0x248] sm:$0xff]
        %v247 = vld [vmem:[%s163 + $0x250] sm:$0xff]
        %v248 = vld [vmem:[%s163 + $0x258] sm:$0xff]
        %v249 = vld [vmem:[%s163 + $0x260] sm:$0xff]
        %v250 = vld [vmem:[%s163 + $0x268] sm:$0xff]
        %v251 = vld [vmem:[%s163 + $0x270] sm:$0xff]
        %v252 = vld [vmem:[%s163 + $0x278] sm:$0xff]
        %v253 = vld [vmem:[%s163 + $0x280] sm:$0xff]
        %v254 = vld [vmem:[%s163 + $0x288] sm:$0xff]
        %v255 = vld [vmem:[%s163 + $0x290] sm:$0xff]
        %v256 = vld [vmem:[%s163 + $0x298] sm:$0xff]
        %v257 = vld [vmem:[%s163 + $0x2a0] sm:$0xff]
        %v258 = vld [vmem:[%s163 + $0x2a8] sm:$0xff]
        %v259 = vld [vmem:[%s163 + $0x2b0] sm:$0xff]
        %v260 = vld [vmem:[%s163 + $0x2b8] sm:$0xff]
        %v261 = vld [vmem:[%s163 + $0x2c0] sm:$0xff]
        %v262 = vld [vmem:[%s163 + $0x2c8] sm:$0xff]
        %v263 = vld [vmem:[%s163 + $0x2d0] sm:$0xff]
        %v264 = vld [vmem:[%s163 + $0x2d8] sm:$0xff]
        %v265 = vld [vmem:[%s163 + $0x2e0] sm:$0xff]
        %v266 = vld [vmem:[%s163 + $0x2e8] sm:$0xff]
        %v267 = vld [vmem:[%s163 + $0x2f0] sm:$0xff]
        %v268 = vld [vmem:[%s163 + $0x2f8] sm:$0xff]
        %v269 = vld [vmem:[%s163 + $0x300] sm:$0xff]
        %v270 = vld [vmem:[%s163 + $0x308] sm:$0xff]
        %v271 = vld [vmem:[%s163 + $0x310] sm:$0xff]
        %v272 = vld [vmem:[%s163 + $0x318] sm:$0xff]
        %v273 = vld [vmem:[%s163 + $0x320] sm:$0xff]
        %v274 = vld [vmem:[%s163 + $0x328] sm:$0xff]
        %v275 = vld [vmem:[%s163 + $0x330] sm:$0xff]
        %v276 = vld [vmem:[%s163 + $0x338] sm:$0xff]
        %v277 = vld [vmem:[%s163 + $0x340] sm:$0xff]
        %v278 = vld [vmem:[%s163 + $0x348] sm:$0xff]
        %v279 = vld [vmem:[%s163 + $0x350] sm:$0xff]
        %v280 = vld [vmem:[%s163 + $0x358] sm:$0xff]
        %v281 = vld [vmem:[%s163 + $0x360] sm:$0xff]
        %v282 = vld [vmem:[%s163 + $0x368] sm:$0xff]
        %v283 = vld [vmem:[%s163 + $0x370] sm:$0xff]
        %v284 = vld [vmem:[%s163 + $0x378] sm:$0xff]
        %v285 = vld [vmem:[%s163 + $0x380] sm:$0xff]
        %v286 = vld [vmem:[%s163 + $0x388] sm:$0xff]
        %v287 = vld [vmem:[%s163 + $0x390] sm:$0xff]
        %v288 = vld [vmem:[%s163 + $0x398] sm:$0xff]
        %v289 = vld [vmem:[%s163 + $0x3a0] sm:$0xff]
        %v290 = vld [vmem:[%s163 + $0x3a8] sm:$0xff]
        %v291 = vld [vmem:[%s163 + $0x3b0] sm:$0xff]
        %v292 = vld [vmem:[%s163 + $0x3b8] sm:$0xff]
        %v293 = vld [vmem:[%s163 + $0x3c0] sm:$0xff]
        %v294 = vld [vmem:[%s163 + $0x3c8] sm:$0xff]
        %v295 = vld [vmem:[%s163 + $0x3d0] sm:$0xff]
        %v296 = vld [vmem:[%s163 + $0x3d8] sm:$0xff]
        %v297 = vld [vmem:[%s163 + $0x3e0] sm:$0xff]
        %v298 = vld [vmem:[%s163 + $0x3e8] sm:$0xff]
        %v299 = vld [vmem:[%s163 + $0x3f0] sm:$0xff]
        %v300 = vld [vmem:[%s163 + $0x3f8] sm:$0xff]
        %v301 = vld [vmem:[%s163 + $0x400] sm:$0xff]
        %v302 = vld [vmem:[%s163 + $0x408] sm:$0xff]
        %v303 = vld [vmem:[%s163 + $0x410] sm:$0xff]
        %v304 = vld [vmem:[%s163 + $0x418] sm:$0xff]
        %v305 = vld [vmem:[%s163 + $0x420] sm:$0xff]
        %v306 = vld [vmem:[%s163 + $0x428] sm:$0xff]
        %v307 = vld [vmem:[%s163 + $0x430] sm:$0xff]
        %v308 = vld [vmem:[%s163 + $0x438] sm:$0xff]
        %v309 = vld [vmem:[%s163 + $0x440] sm:$0xff]
        %v310 = vld [vmem:[%s163 + $0x448] sm:$0xff]
        %v311 = vld [vmem:[%s163 + $0x450] sm:$0xff]
        %v312 = vld [vmem:[%s163 + $0x458] sm:$0xff]
        %v313 = vld [vmem:[%s163 + $0x460] sm:$0xff]
        %v314 = vld [vmem:[%s163 + $0x468] sm:$0xff]
        %v315 = vld [vmem:[%s163 + $0x470] sm:$0xff]
        %v316 = vld [vmem:[%s163 + $0x478] sm:$0xff]
        %v317 = vld [vmem:[%s163 + $0x480] sm:$0xff]
        %v318 = vld [vmem:[%s163 + $0x488] sm:$0xff]
        %v319 = vld [vmem:[%s163 + $0x490] sm:$0xff]
        %v320 = vld [vmem:[%s163 + $0x498] sm:$0xff]
        %v321 = vld [vmem:[%s163 + $0x4a0] sm:$0xff]
        %v322 = vld [vmem:[%s163 + $0x4a8] sm:$0xff]
        %v323 = vld [vmem:[%s163 + $0x4b0] sm:$0xff]
        %v324 = vld [vmem:[%s163 + $0x4b8] sm:$0xff]
        %v325 = vld [vmem:[%s163 + $0x4c0] sm:$0xff]
        %v326 = vld [vmem:[%s163 + $0x4c8] sm:$0xff]
        %v327 = vld [vmem:[%s163 + $0x4d0] sm:$0xff]
        %v328 = vld [vmem:[%s163 + $0x4d8] sm:$0xff]
        %v329 = vld [vmem:[%s163 + $0x4e0] sm:$0xff]
        %v330 = vld [vmem:[%s163 + $0x4e8] sm:$0xff]
        %v331 = vld [vmem:[%s163 + $0x4f0] sm:$0xff]
        %v332 = vld [vmem:[%s163 + $0x4f8] sm:$0xff]
        %v333 = vld [vmem:[%s163 + $0x500] sm:$0xff]
        %v334 = vld [vmem:[%s163 + $0x508] sm:$0xff]
        %v335 = vld [vmem:[%s163 + $0x510] sm:$0xff]
        %v336 = vld [vmem:[%s163 + $0x518] sm:$0xff]
        %v337 = vld [vmem:[%s163 + $0x520] sm:$0xff]
        %v338 = vld [vmem:[%s163 + $0x528] sm:$0xff]
        %v339 = vld [vmem:[%s163 + $0x530] sm:$0xff]
        %v340 = vld [vmem:[%s163 + $0x538] sm:$0xff]
        %v341 = vld [vmem:[%s163 + $0x540] sm:$0xff]
        %v342 = vld [vmem:[%s163 + $0x548] sm:$0xff]
        %v343 = vld [vmem:[%s163 + $0x550] sm:$0xff]
        %v344 = vld [vmem:[%s163 + $0x558] sm:$0xff]
        %v345 = vld [vmem:[%s163 + $0x560] sm:$0xff]
        %v346 = vld [vmem:[%s163 + $0x568] sm:$0xff]
        %v347 = vld [vmem:[%s163 + $0x570] sm:$0xff]
        %v348 = vld [vmem:[%s163 + $0x578] sm:$0xff]
        %v349 = vld [vmem:[%s163 + $0x580] sm:$0xff]
        %v350 = vld [vmem:[%s163 + $0x588] sm:$0xff]
        %v351 = vld [vmem:[%s163 + $0x590] sm:$0xff]
        %v352 = vld [vmem:[%s163 + $0x598] sm:$0xff]
        %v353 = vld [vmem:[%s163 + $0x5a0] sm:$0xff]
        %v354 = vld [vmem:[%s163 + $0x5a8] sm:$0xff]
        %v355 = vld [vmem:[%s163 + $0x5b0] sm:$0xff]
        %v356 = vld [vmem:[%s163 + $0x5b8] sm:$0xff]
        %v357 = vld [vmem:[%s163 + $0x5c0] sm:$0xff]
        %v358 = vld [vmem:[%s163 + $0x5c8] sm:$0xff]
        %v359 = vld [vmem:[%s163 + $0x5d0] sm:$0xff]
        %v360 = vld [vmem:[%s163 + $0x5d8] sm:$0xff]
        %v361 = vld [vmem:[%s163 + $0x5e0] sm:$0xff]
        %v362 = vld [vmem:[%s163 + $0x5e8] sm:$0xff]
        %v363 = vld [vmem:[%s163 + $0x5f0] sm:$0xff]
        %v364 = vld [vmem:[%s163 + $0x5f8] sm:$0xff]
        %v365 = vld [vmem:[%s170] sm:$0xff]
        %v366 = vld [vmem:[%s170 + $0x8] sm:$0xff]
        %v367 = vld [vmem:[%s170 + $0x10] sm:$0xff]
        %v368 = vld [vmem:[%s170 + $0x18] sm:$0xff]
        %v369 = vld [vmem:[%s170 + $0x20] sm:$0xff]
        %v370 = vld [vmem:[%s170 + $0x28] sm:$0xff]
        %v371 = vld [vmem:[%s170 + $0x30] sm:$0xff]
        %v372 = vld [vmem:[%s170 + $0x38] sm:$0xff]
        %v373 = vld [vmem:[%s170 + $0x40] sm:$0xff]
        %v374 = vld [vmem:[%s170 + $0x48] sm:$0xff]
        %v375 = vld [vmem:[%s170 + $0x50] sm:$0xff]
        %v376 = vld [vmem:[%s170 + $0x58] sm:$0xff]
        %v377 = vld [vmem:[%s170 + $0x60] sm:$0xff]
        %v378 = vld [vmem:[%s170 + $0x68] sm:$0xff]
        %v379 = vld [vmem:[%s170 + $0x70] sm:$0xff]
        %v380 = vld [vmem:[%s170 + $0x78] sm:$0xff]
        %v381 = vld [vmem:[%s170 + $0x80] sm:$0xff]
        %v382 = vld [vmem:[%s170 + $0x88] sm:$0xff]
        %v383 = vld [vmem:[%s170 + $0x90] sm:$0xff]
        %v384 = vld [vmem:[%s170 + $0x98] sm:$0xff]
        %v385 = vld [vmem:[%s170 + $0xa0] sm:$0xff]
        %v386 = vld [vmem:[%s170 + $0xa8] sm:$0xff]
        %v387 = vld [vmem:[%s170 + $0xb0] sm:$0xff]
        %v388 = vld [vmem:[%s170 + $0xb8] sm:$0xff]
        %v389 = vld [vmem:[%s170 + $0xc0] sm:$0xff]
        %v390 = vld [vmem:[%s170 + $0xc8] sm:$0xff]
        %v391 = vld [vmem:[%s170 + $0xd0] sm:$0xff]
        %v392 = vld [vmem:[%s170 + $0xd8] sm:$0xff]
        %v393 = vld [vmem:[%s170 + $0xe0] sm:$0xff]
        %v394 = vld [vmem:[%s170 + $0xe8] sm:$0xff]
        %v395 = vld [vmem:[%s170 + $0xf0] sm:$0xff]
        %v396 = vld [vmem:[%s170 + $0xf8] sm:$0xff]
        %v397 = vld [vmem:[%s170 + $0x100] sm:$0xff]
        %v398 = vld [vmem:[%s170 + $0x108] sm:$0xff]
        %v399 = vld [vmem:[%s170 + $0x110] sm:$0xff]
        %v400 = vld [vmem:[%s170 + $0x118] sm:$0xff]
        %v401 = vld [vmem:[%s170 + $0x120] sm:$0xff]
        %v402 = vld [vmem:[%s170 + $0x128] sm:$0xff]
        %v403 = vld [vmem:[%s170 + $0x130] sm:$0xff]
        %v404 = vld [vmem:[%s170 + $0x138] sm:$0xff]
        %v405 = vld [vmem:[%s170 + $0x140] sm:$0xff]
        %v406 = vld [vmem:[%s170 + $0x148] sm:$0xff]
        %v407 = vld [vmem:[%s170 + $0x150] sm:$0xff]
        %v408 = vld [vmem:[%s170 + $0x158] sm:$0xff]
        %v409 = vld [vmem:[%s170 + $0x160] sm:$0xff]
        %v410 = vld [vmem:[%s170 + $0x168] sm:$0xff]
        %v411 = vld [vmem:[%s170 + $0x170] sm:$0xff]
        %v412 = vld [vmem:[%s170 + $0x178] sm:$0xff]
        %v413 = vld [vmem:[%s170 + $0x180] sm:$0xff]
        %v414 = vld [vmem:[%s170 + $0x188] sm:$0xff]
        %v415 = vld [vmem:[%s170 + $0x190] sm:$0xff]
        %v416 = vld [vmem:[%s170 + $0x198] sm:$0xff]
        %v417 = vld [vmem:[%s170 + $0x1a0] sm:$0xff]
        %v418 = vld [vmem:[%s170 + $0x1a8] sm:$0xff]
        %v419 = vld [vmem:[%s170 + $0x1b0] sm:$0xff]
        %v420 = vld [vmem:[%s170 + $0x1b8] sm:$0xff]
        %v421 = vld [vmem:[%s170 + $0x1c0] sm:$0xff]
        %v422 = vld [vmem:[%s170 + $0x1c8] sm:$0xff]
        %v423 = vld [vmem:[%s170 + $0x1d0] sm:$0xff]
        %v424 = vld [vmem:[%s170 + $0x1d8] sm:$0xff]
        %v425 = vld [vmem:[%s170 + $0x1e0] sm:$0xff]
        %v426 = vld [vmem:[%s170 + $0x1e8] sm:$0xff]
        %v427 = vld [vmem:[%s170 + $0x1f0] sm:$0xff]
        %v428 = vld [vmem:[%s170 + $0x1f8] sm:$0xff]
        %v429 = vld [vmem:[%s170 + $0x200] sm:$0xff]
        %v430 = vld [vmem:[%s170 + $0x208] sm:$0xff]
        %v431 = vld [vmem:[%s170 + $0x210] sm:$0xff]
        %v432 = vld [vmem:[%s170 + $0x218] sm:$0xff]
        %v433 = vld [vmem:[%s170 + $0x220] sm:$0xff]
        %v434 = vld [vmem:[%s170 + $0x228] sm:$0xff]
        %v435 = vld [vmem:[%s170 + $0x230] sm:$0xff]
        %v436 = vld [vmem:[%s170 + $0x238] sm:$0xff]
        %v437 = vld [vmem:[%s170 + $0x240] sm:$0xff]
        %v438 = vld [vmem:[%s170 + $0x248] sm:$0xff]
        %v439 = vld [vmem:[%s170 + $0x250] sm:$0xff]
        %v440 = vld [vmem:[%s170 + $0x258] sm:$0xff]
        %v441 = vld [vmem:[%s170 + $0x260] sm:$0xff]
        %v442 = vld [vmem:[%s170 + $0x268] sm:$0xff]
        %v443 = vld [vmem:[%s170 + $0x270] sm:$0xff]
        %v444 = vld [vmem:[%s170 + $0x278] sm:$0xff]
        %v445 = vld [vmem:[%s170 + $0x280] sm:$0xff]
        %v446 = vld [vmem:[%s170 + $0x288] sm:$0xff]
        %v447 = vld [vmem:[%s170 + $0x290] sm:$0xff]
        %v448 = vld [vmem:[%s170 + $0x298] sm:$0xff]
        %v449 = vld [vmem:[%s170 + $0x2a0] sm:$0xff]
        %v450 = vld [vmem:[%s170 + $0x2a8] sm:$0xff]
        %v451 = vld [vmem:[%s170 + $0x2b0] sm:$0xff]
        %v452 = vld [vmem:[%s170 + $0x2b8] sm:$0xff]
        %v453 = vld [vmem:[%s170 + $0x2c0] sm:$0xff]
        %v454 = vld [vmem:[%s170 + $0x2c8] sm:$0xff]
        %v455 = vld [vmem:[%s170 + $0x2d0] sm:$0xff]
        %v456 = vld [vmem:[%s170 + $0x2d8] sm:$0xff]
        %v457 = vld [vmem:[%s170 + $0x2e0] sm:$0xff]
        %v458 = vld [vmem:[%s170 + $0x2e8] sm:$0xff]
        %v459 = vld [vmem:[%s170 + $0x2f0] sm:$0xff]
        %v460 = vld [vmem:[%s170 + $0x2f8] sm:$0xff]
        %v461 = vld [vmem:[%s170 + $0x300] sm:$0xff]
        %v462 = vld [vmem:[%s170 + $0x308] sm:$0xff]
        %v463 = vld [vmem:[%s170 + $0x310] sm:$0xff]
        %v464 = vld [vmem:[%s170 + $0x318] sm:$0xff]
        %v465 = vld [vmem:[%s170 + $0x320] sm:$0xff]
        %v466 = vld [vmem:[%s170 + $0x328] sm:$0xff]
        %v467 = vld [vmem:[%s170 + $0x330] sm:$0xff]
        %v468 = vld [vmem:[%s170 + $0x338] sm:$0xff]
        %v469 = vld [vmem:[%s170 + $0x340] sm:$0xff]
        %v470 = vld [vmem:[%s170 + $0x348] sm:$0xff]
        %v471 = vld [vmem:[%s170 + $0x350] sm:$0xff]
        %v472 = vld [vmem:[%s170 + $0x358] sm:$0xff]
        %v473 = vld [vmem:[%s170 + $0x360] sm:$0xff]
        %v474 = vld [vmem:[%s170 + $0x368] sm:$0xff]
        %v475 = vld [vmem:[%s170 + $0x370] sm:$0xff]
        %v476 = vld [vmem:[%s170 + $0x378] sm:$0xff]
        %v477 = vld [vmem:[%s170 + $0x380] sm:$0xff]
        %v478 = vld [vmem:[%s170 + $0x388] sm:$0xff]
        %v479 = vld [vmem:[%s170 + $0x390] sm:$0xff]
        %v480 = vld [vmem:[%s170 + $0x398] sm:$0xff]
        %v481 = vld [vmem:[%s170 + $0x3a0] sm:$0xff]
        %v482 = vld [vmem:[%s170 + $0x3a8] sm:$0xff]
        %v483 = vld [vmem:[%s170 + $0x3b0] sm:$0xff]
        %v484 = vld [vmem:[%s170 + $0x3b8] sm:$0xff]
        %v485 = vld [vmem:[%s170 + $0x3c0] sm:$0xff]
        %v486 = vld [vmem:[%s170 + $0x3c8] sm:$0xff]
        %v487 = vld [vmem:[%s170 + $0x3d0] sm:$0xff]
        %v488 = vld [vmem:[%s170 + $0x3d8] sm:$0xff]
        %v489 = vld [vmem:[%s170 + $0x3e0] sm:$0xff]
        %v490 = vld [vmem:[%s170 + $0x3e8] sm:$0xff]
        %v491 = vld [vmem:[%s170 + $0x3f0] sm:$0xff]
        %v492 = vld [vmem:[%s170 + $0x3f8] sm:$0xff]
        %v493 = vld [vmem:[%s170 + $0x400] sm:$0xff]
        %v494 = vld [vmem:[%s170 + $0x408] sm:$0xff]
        %v495 = vld [vmem:[%s170 + $0x410] sm:$0xff]
        %v496 = vld [vmem:[%s170 + $0x418] sm:$0xff]
        %v497 = vld [vmem:[%s170 + $0x420] sm:$0xff]
        %v498 = vld [vmem:[%s170 + $0x428] sm:$0xff]
        %v499 = vld [vmem:[%s170 + $0x430] sm:$0xff]
        %v500 = vld [vmem:[%s170 + $0x438] sm:$0xff]
        %v501 = vld [vmem:[%s170 + $0x440] sm:$0xff]
        %v502 = vld [vmem:[%s170 + $0x448] sm:$0xff]
        %v503 = vld [vmem:[%s170 + $0x450] sm:$0xff]
        %v504 = vld [vmem:[%s170 + $0x458] sm:$0xff]
        %v505 = vld [vmem:[%s170 + $0x460] sm:$0xff]
        %v506 = vld [vmem:[%s170 + $0x468] sm:$0xff]
        %v507 = vld [vmem:[%s170 + $0x470] sm:$0xff]
        %v508 = vld [vmem:[%s170 + $0x478] sm:$0xff]
        %v509 = vld [vmem:[%s170 + $0x480] sm:$0xff]
        %v510 = vld [vmem:[%s170 + $0x488] sm:$0xff]
        %v511 = vld [vmem:[%s170 + $0x490] sm:$0xff]
        %v512 = vld [vmem:[%s170 + $0x498] sm:$0xff]
        %v513 = vld [vmem:[%s170 + $0x4a0] sm:$0xff]
        %v514 = vld [vmem:[%s170 + $0x4a8] sm:$0xff]
        %v515 = vld [vmem:[%s170 + $0x4b0] sm:$0xff]
        %v516 = vld [vmem:[%s170 + $0x4b8] sm:$0xff]
        %v517 = vld [vmem:[%s170 + $0x4c0] sm:$0xff]
        %v518 = vld [vmem:[%s170 + $0x4c8] sm:$0xff]
        %v519 = vld [vmem:[%s170 + $0x4d0] sm:$0xff]
        %v520 = vld [vmem:[%s170 + $0x4d8] sm:$0xff]
        %v521 = vld [vmem:[%s170 + $0x4e0] sm:$0xff]
        %v522 = vld [vmem:[%s170 + $0x4e8] sm:$0xff]
        %v523 = vld [vmem:[%s170 + $0x4f0] sm:$0xff]
        %v524 = vld [vmem:[%s170 + $0x4f8] sm:$0xff]
        %v525 = vld [vmem:[%s170 + $0x500] sm:$0xff]
        %v526 = vld [vmem:[%s170 + $0x508] sm:$0xff]
        %v527 = vld [vmem:[%s170 + $0x510] sm:$0xff]
        %v528 = vld [vmem:[%s170 + $0x518] sm:$0xff]
        %v529 = vld [vmem:[%s170 + $0x520] sm:$0xff]
        %v530 = vld [vmem:[%s170 + $0x528] sm:$0xff]
        %v531 = vld [vmem:[%s170 + $0x530] sm:$0xff]
        %v532 = vld [vmem:[%s170 + $0x538] sm:$0xff]
        %v533 = vld [vmem:[%s170 + $0x540] sm:$0xff]
        %v534 = vld [vmem:[%s170 + $0x548] sm:$0xff]
        %v535 = vld [vmem:[%s170 + $0x550] sm:$0xff]
        %v536 = vld [vmem:[%s170 + $0x558] sm:$0xff]
        %v537 = vld [vmem:[%s170 + $0x560] sm:$0xff]
        %v538 = vld [vmem:[%s170 + $0x568] sm:$0xff]
        %v539 = vld [vmem:[%s170 + $0x570] sm:$0xff]
        %v540 = vld [vmem:[%s170 + $0x578] sm:$0xff]
        %v541 = vld [vmem:[%s170 + $0x580] sm:$0xff]
        %v542 = vld [vmem:[%s170 + $0x588] sm:$0xff]
        %v543 = vld [vmem:[%s170 + $0x590] sm:$0xff]
        %v544 = vld [vmem:[%s170 + $0x598] sm:$0xff]
        %v545 = vld [vmem:[%s170 + $0x5a0] sm:$0xff]
        %v546 = vld [vmem:[%s170 + $0x5a8] sm:$0xff]
        %v547 = vld [vmem:[%s170 + $0x5b0] sm:$0xff]
        %v548 = vld [vmem:[%s170 + $0x5b8] sm:$0xff]
        %v549 = vld [vmem:[%s170 + $0x5c0] sm:$0xff]
        %v550 = vld [vmem:[%s170 + $0x5c8] sm:$0xff]
        %v551 = vld [vmem:[%s170 + $0x5d0] sm:$0xff]
        %v552 = vld [vmem:[%s170 + $0x5d8] sm:$0xff]
        %v553 = vld [vmem:[%s170 + $0x5e0] sm:$0xff]
        %v554 = vld [vmem:[%s170 + $0x5e8] sm:$0xff]
        %v555 = vld [vmem:[%s170 + $0x5f0] sm:$0xff]
        %v556 = vld [vmem:[%s170 + $0x5f8] sm:$0xff]
        %vm557 = vcmask 523264
        %v559 = vsel %vm557, %v173, 0
        %v562 = vsel %vm557, %v174, 0
        %v565 = vsel %vm557, %v175, 0
        %v568 = vsel %vm557, %v176, 0
        %v571 = vsel %vm557, %v177, 0
        %v574 = vsel %vm557, %v178, 0
        %v577 = vsel %vm557, %v179, 0
        %v580 = vsel %vm557, %v180, 0
        %v583 = vsel %vm557, %v181, 0
        %v586 = vsel %vm557, %v182, 0
        %v589 = vsel %vm557, %v183, 0
        %v592 = vsel %vm557, %v184, 0
        %v595 = vsel %vm557, %v185, 0
        %v598 = vsel %vm557, %v186, 0
        %v601 = vsel %vm557, %v187, 0
        %v604 = vsel %vm557, %v188, 0
        %v607 = vsel %vm557, %v189, 0
        %v610 = vsel %vm557, %v190, 0
        %v613 = vsel %vm557, %v191, 0
        %v616 = vsel %vm557, %v192, 0
        %v619 = vsel %vm557, %v193, 0
        %v622 = vsel %vm557, %v194, 0
        %v625 = vsel %vm557, %v195, 0
        %v628 = vsel %vm557, %v196, 0
        %v631 = vsel %vm557, %v197, 0
        %v634 = vsel %vm557, %v198, 0
        %v637 = vsel %vm557, %v199, 0
        %v640 = vsel %vm557, %v200, 0
        %v643 = vsel %vm557, %v201, 0
        %v646 = vsel %vm557, %v202, 0
        %v649 = vsel %vm557, %v203, 0
        %v652 = vsel %vm557, %v204, 0
        %v655 = vsel %vm557, %v205, 0
        %v658 = vsel %vm557, %v206, 0
        %v661 = vsel %vm557, %v207, 0
        %v664 = vsel %vm557, %v208, 0
        %v667 = vsel %vm557, %v209, 0
        %v670 = vsel %vm557, %v210, 0
        %v673 = vsel %vm557, %v211, 0
        %v676 = vsel %vm557, %v212, 0
        %v679 = vsel %vm557, %v213, 0
        %v682 = vsel %vm557, %v214, 0
        %v685 = vsel %vm557, %v215, 0
        %v688 = vsel %vm557, %v216, 0
        %v691 = vsel %vm557, %v217, 0
        %v694 = vsel %vm557, %v218, 0
        %v697 = vsel %vm557, %v219, 0
        %v700 = vsel %vm557, %v220, 0
        %v703 = vsel %vm557, %v365, 0
        %v706 = vsel %vm557, %v366, 0
        %v709 = vsel %vm557, %v367, 0
        %v712 = vsel %vm557, %v368, 0
        %v715 = vsel %vm557, %v369, 0
        %v718 = vsel %vm557, %v370, 0
        %v721 = vsel %vm557, %v371, 0
        %v724 = vsel %vm557, %v372, 0
        %v727 = vsel %vm557, %v373, 0
        %v730 = vsel %vm557, %v374, 0
        %v733 = vsel %vm557, %v375, 0
        %v736 = vsel %vm557, %v376, 0
        %v739 = vsel %vm557, %v377, 0
        %v742 = vsel %vm557, %v378, 0
        %v745 = vsel %vm557, %v379, 0
        %v748 = vsel %vm557, %v380, 0
        %v751 = vsel %vm557, %v381, 0
        %v754 = vsel %vm557, %v382, 0
        %v757 = vsel %vm557, %v383, 0
        %v760 = vsel %vm557, %v384, 0
        %v763 = vsel %vm557, %v385, 0
        %v766 = vsel %vm557, %v386, 0
        %v769 = vsel %vm557, %v387, 0
        %v772 = vsel %vm557, %v388, 0
        %v775 = vsel %vm557, %v389, 0
        %v778 = vsel %vm557, %v390, 0
        %v781 = vsel %vm557, %v391, 0
        %v784 = vsel %vm557, %v392, 0
        %v787 = vsel %vm557, %v393, 0
        %v790 = vsel %vm557, %v394, 0
        %v793 = vsel %vm557, %v395, 0
        %v796 = vsel %vm557, %v396, 0
        %v799 = vsel %vm557, %v397, 0
        %v802 = vsel %vm557, %v398, 0
        %v805 = vsel %vm557, %v399, 0
        %v808 = vsel %vm557, %v400, 0
        %v811 = vsel %vm557, %v401, 0
        %v814 = vsel %vm557, %v402, 0
        %v817 = vsel %vm557, %v403, 0
        %v820 = vsel %vm557, %v404, 0
        %v823 = vsel %vm557, %v405, 0
        %v826 = vsel %vm557, %v406, 0
        %v829 = vsel %vm557, %v407, 0
        %v832 = vsel %vm557, %v408, 0
        %v835 = vsel %vm557, %v409, 0
        %v838 = vsel %vm557, %v410, 0
        %v841 = vsel %vm557, %v411, 0
        %v844 = vsel %vm557, %v412, 0
        %846 = vmatprep.subr.mxu0 0.0
        %847 = vmatpush1.xpose.msra.mxu0 %v748
        %848 = vmatprep.subr.mxu0 0.0
        %849 = vmatpush1.xpose.msra.mxu0 %v745
        %850 = vmatprep.subr.mxu0 0.0
        %851 = vmatpush1.xpose.msra.mxu0 %v742
        %852 = vmatprep.subr.mxu0 0.0
        %853 = vmatpush1.xpose.msra.mxu0 %v739
        %854 = vmatprep.subr.mxu0 0.0
        %855 = vmatpush1.xpose.msra.mxu0 %v736
        %856 = vmatprep.subr.mxu0 0.0
        %857 = vmatpush1.xpose.msra.mxu0 %v733
        %858 = vmatprep.subr.mxu0 0.0
        %859 = vmatpush1.xpose.msra.mxu0 %v730
        %860 = vmatprep.subr.mxu0 0.0
        %861 = vmatpush1.xpose.msra.mxu0 %v727
        %862 = vmatprep.subr.mxu0 0.0
        %863 = vmatpush1.xpose.msra.mxu0 %v724
        %864 = vmatprep.subr.mxu0 0.0
        %865 = vmatpush1.xpose.msra.mxu0 %v721
        %866 = vmatprep.subr.mxu0 0.0
        %867 = vmatpush1.xpose.msra.mxu0 %v718
        %868 = vmatprep.subr.mxu0 0.0
        %869 = vmatpush1.xpose.msra.mxu0 %v715
        %870 = vmatprep.subr.mxu0 0.0
        %871 = vmatpush1.xpose.msra.mxu0 %v712
        %872 = vmatprep.subr.mxu0 0.0
        %873 = vmatpush1.xpose.msra.mxu0 %v709
        %874 = vmatprep.subr.mxu0 0.0
        %875 = vmatpush1.xpose.msra.mxu0 %v706
        %876 = vmatprep.subr.mxu0 0.0
        %877 = vmatpush1.xpose.msra.mxu0 %v703
        %878 = vmatprep.subr.mxu0 0.0
        %879 = vmatpush2.xpose.msra.mxu0 %v796
        %880 = vmatprep.subr.mxu0 0.0
        %881 = vmatpush2.xpose.msra.mxu0 %v793
        %882 = vmatprep.subr.mxu0 0.0
        %883 = vmatpush2.xpose.msra.mxu0 %v790
        %884 = vmatprep.subr.mxu0 0.0
        %885 = vmatpush2.xpose.msra.mxu0 %v787
        %886 = vmatprep.subr.mxu0 0.0
        %887 = vmatpush2.xpose.msra.mxu0 %v784
        %888 = vmatprep.subr.mxu0 0.0
        %889 = vmatpush2.xpose.msra.mxu0 %v781
        %890 = vmatprep.subr.mxu0 0.0
        %891 = vmatpush2.xpose.msra.mxu0 %v778
        %892 = vmatprep.subr.mxu0 0.0
        %893 = vmatpush2.xpose.msra.mxu0 %v775
        %894 = vmatprep.subr.mxu0 0.0
        %895 = vmatpush2.xpose.msra.mxu0 %v772
        %896 = vmatprep.subr.mxu0 0.0
        %897 = vmatpush2.xpose.msra.mxu0 %v769
        %898 = vmatprep.subr.mxu0 0.0
        %899 = vmatpush2.xpose.msra.mxu0 %v766
        %900 = vmatprep.subr.mxu0 0.0
        %901 = vmatpush2.xpose.msra.mxu0 %v763
        %902 = vmatprep.subr.mxu0 0.0
        %903 = vmatpush2.xpose.msra.mxu0 %v760
        %904 = vmatprep.subr.mxu0 0.0
        %905 = vmatpush2.xpose.msra.mxu0 %v757
        %906 = vmatprep.subr.mxu0 0.0
        %907 = vmatpush2.xpose.msra.mxu0 %v754
        %908 = vmatprep.subr.mxu0 0.0
        %909 = vmatpush2.xpose.msra.mxu0 %v751
        %910 = vmatprep.mubr.f32.mxu0 0.0
        %911 = vmatmul.mubr.f32.gmra.mxu0 %v559
        %v912 = vpop.f32.mrf.mxu0
        %v913 = vadd.f32 0.0, %v912
        %v914 = vpop.f32.mrf.mxu0
        %v915 = vadd.f32 0.0, %v914
        %916 = vmatprep.mubr.f32.mxu0 0.0
        %917 = vmatmul.mubr.f32.gmra.mxu0 %v562
        %v918 = vpop.f32.mrf.mxu0
        %v919 = vadd.f32 0.0, %v918
        %v920 = vpop.f32.mrf.mxu0
        %v921 = vadd.f32 0.0, %v920
        %922 = vmatprep.mubr.f32.mxu0 0.0
        %923 = vmatmul.mubr.f32.gmra.mxu0 %v565
        %v924 = vpop.f32.mrf.mxu0
        %v925 = vadd.f32 0.0, %v924
        %v926 = vpop.f32.mrf.mxu0
        %v927 = vadd.f32 0.0, %v926
        %928 = vmatprep.mubr.f32.mxu0 0.0
        %929 = vmatmul.mubr.f32.gmra.mxu0 %v568
        %v930 = vpop.f32.mrf.mxu0
        %v931 = vadd.f32 0.0, %v930
        %v932 = vpop.f32.mrf.mxu0
        %v933 = vadd.f32 0.0, %v932
        %934 = vmatprep.mubr.f32.mxu0 0.0
        %935 = vmatmul.mubr.f32.gmra.mxu0 %v571
        %v936 = vpop.f32.mrf.mxu0
        %v937 = vadd.f32 0.0, %v936
        %v938 = vpop.f32.mrf.mxu0
        %v939 = vadd.f32 0.0, %v938
        %940 = vmatprep.mubr.f32.mxu0 0.0
        %941 = vmatmul.mubr.f32.gmra.mxu0 %v574
        %v942 = vpop.f32.mrf.mxu0
        %v943 = vadd.f32 0.0, %v942
        %v944 = vpop.f32.mrf.mxu0
        %v945 = vadd.f32 0.0, %v944
        %946 = vmatprep.mubr.f32.mxu0 0.0
        %947 = vmatmul.mubr.f32.gmra.mxu0 %v577
        %v948 = vpop.f32.mrf.mxu0
        %v949 = vadd.f32 0.0, %v948
        %v950 = vpop.f32.mrf.mxu0
        %v951 = vadd.f32 0.0, %v950
        %952 = vmatprep.mubr.f32.mxu0 0.0
        %953 = vmatmul.mubr.f32.gmra.mxu0 %v580
        %v954 = vpop.f32.mrf.mxu0
        %v955 = vadd.f32 0.0, %v954
        %v956 = vpop.f32.mrf.mxu0
        %v957 = vadd.f32 0.0, %v956
        %958 = vmatprep.mubr.f32.mxu0 0.0
        %959 = vmatmul.mubr.f32.gmra.mxu0 %v583
        %v960 = vpop.f32.mrf.mxu0
        %v961 = vadd.f32 0.0, %v960
        %v962 = vpop.f32.mrf.mxu0
        %v963 = vadd.f32 0.0, %v962
        %964 = vmatprep.mubr.f32.mxu0 0.0
        %965 = vmatmul.mubr.f32.gmra.mxu0 %v586
        %v966 = vpop.f32.mrf.mxu0
        %v967 = vadd.f32 0.0, %v966
        %v968 = vpop.f32.mrf.mxu0
        %v969 = vadd.f32 0.0, %v968
        %970 = vmatprep.mubr.f32.mxu0 0.0
        %971 = vmatmul.mubr.f32.gmra.mxu0 %v589
        %v972 = vpop.f32.mrf.mxu0
        %v973 = vadd.f32 0.0, %v972
        %v974 = vpop.f32.mrf.mxu0
        %v975 = vadd.f32 0.0, %v974
        %976 = vmatprep.mubr.f32.mxu0 0.0
        %977 = vmatmul.mubr.f32.gmra.mxu0 %v592
        %v978 = vpop.f32.mrf.mxu0
        %v979 = vadd.f32 0.0, %v978
        %v980 = vpop.f32.mrf.mxu0
        %v981 = vadd.f32 0.0, %v980
        %982 = vmatprep.mubr.f32.mxu0 0.0
        %983 = vmatmul.mubr.f32.gmra.mxu0 %v595
        %v984 = vpop.f32.mrf.mxu0
        %v985 = vadd.f32 0.0, %v984
        %v986 = vpop.f32.mrf.mxu0
        %v987 = vadd.f32 0.0, %v986
        %988 = vmatprep.mubr.f32.mxu0 0.0
        %989 = vmatmul.mubr.f32.gmra.mxu0 %v598
        %v990 = vpop.f32.mrf.mxu0
        %v991 = vadd.f32 0.0, %v990
        %v992 = vpop.f32.mrf.mxu0
        %v993 = vadd.f32 0.0, %v992
        %994 = vmatprep.mubr.f32.mxu0 0.0
        %995 = vmatmul.mubr.f32.gmra.mxu0 %v601
        %v996 = vpop.f32.mrf.mxu0
        %v997 = vadd.f32 0.0, %v996
        %v998 = vpop.f32.mrf.mxu0
        %v999 = vadd.f32 0.0, %v998
        %1000 = vmatprep.mubr.f32.mxu0 0.0
        %1001 = vmatmul.mubr.f32.gmra.mxu0 %v604
        %v1002 = vpop.f32.mrf.mxu0
        %v1003 = vadd.f32 0.0, %v1002
        %v1004 = vpop.f32.mrf.mxu0
        %v1005 = vadd.f32 0.0, %v1004
        %1006 = vmatprep.mubr.f32.mxu0 0.0
        %1007 = vmatmul.mubr.f32.gmra.mxu0 %v607
        %v1008 = vpop.f32.mrf.mxu0
        %v1009 = vadd.f32 0.0, %v1008
        %v1010 = vpop.f32.mrf.mxu0
        %v1011 = vadd.f32 0.0, %v1010
        %1012 = vmatprep.mubr.f32.mxu0 0.0
        %1013 = vmatmul.mubr.f32.gmra.mxu0 %v610
        %v1014 = vpop.f32.mrf.mxu0
        %v1015 = vadd.f32 0.0, %v1014
        %v1016 = vpop.f32.mrf.mxu0
        %v1017 = vadd.f32 0.0, %v1016
        %1018 = vmatprep.mubr.f32.mxu0 0.0
        %1019 = vmatmul.mubr.f32.gmra.mxu0 %v613
        %v1020 = vpop.f32.mrf.mxu0
        %v1021 = vadd.f32 0.0, %v1020
        %v1022 = vpop.f32.mrf.mxu0
        %v1023 = vadd.f32 0.0, %v1022
        %1024 = vmatprep.mubr.f32.mxu0 0.0
        %1025 = vmatmul.mubr.f32.gmra.mxu0 %v616
        %v1026 = vpop.f32.mrf.mxu0
        %v1027 = vadd.f32 0.0, %v1026
        %v1028 = vpop.f32.mrf.mxu0
        %v1029 = vadd.f32 0.0, %v1028
        %1030 = vmatprep.mubr.f32.mxu0 0.0
        %1031 = vmatmul.mubr.f32.gmra.mxu0 %v619
        %v1032 = vpop.f32.mrf.mxu0
        %v1033 = vadd.f32 0.0, %v1032
        %v1034 = vpop.f32.mrf.mxu0
        %v1035 = vadd.f32 0.0, %v1034
        %1036 = vmatprep.mubr.f32.mxu0 0.0
        %1037 = vmatmul.mubr.f32.gmra.mxu0 %v622
        %v1038 = vpop.f32.mrf.mxu0
        %v1039 = vadd.f32 0.0, %v1038
        %v1040 = vpop.f32.mrf.mxu0
        %v1041 = vadd.f32 0.0, %v1040
        %1042 = vmatprep.mubr.f32.mxu0 0.0
        %1043 = vmatmul.mubr.f32.gmra.mxu0 %v625
        %v1044 = vpop.f32.mrf.mxu0
        %v1045 = vadd.f32 0.0, %v1044
        %v1046 = vpop.f32.mrf.mxu0
        %v1047 = vadd.f32 0.0, %v1046
        %1048 = vmatprep.mubr.f32.mxu0 0.0
        %1049 = vmatmul.mubr.f32.gmra.mxu0 %v628
        %v1050 = vpop.f32.mrf.mxu0
        %v1051 = vadd.f32 0.0, %v1050
        %v1052 = vpop.f32.mrf.mxu0
        %v1053 = vadd.f32 0.0, %v1052
        %1054 = vmatprep.mubr.f32.mxu0 0.0
        %1055 = vmatmul.mubr.f32.gmra.mxu0 %v631
        %v1056 = vpop.f32.mrf.mxu0
        %v1057 = vadd.f32 0.0, %v1056
        %v1058 = vpop.f32.mrf.mxu0
        %v1059 = vadd.f32 0.0, %v1058
        %1060 = vmatprep.mubr.f32.mxu0 0.0
        %1061 = vmatmul.mubr.f32.gmra.mxu0 %v634
        %v1062 = vpop.f32.mrf.mxu0
        %v1063 = vadd.f32 0.0, %v1062
        %v1064 = vpop.f32.mrf.mxu0
        %v1065 = vadd.f32 0.0, %v1064
        %1066 = vmatprep.mubr.f32.mxu0 0.0
        %1067 = vmatmul.mubr.f32.gmra.mxu0 %v637
        %v1068 = vpop.f32.mrf.mxu0
        %v1069 = vadd.f32 0.0, %v1068
        %v1070 = vpop.f32.mrf.mxu0
        %v1071 = vadd.f32 0.0, %v1070
        %1072 = vmatprep.mubr.f32.mxu0 0.0
        %1073 = vmatmul.mubr.f32.gmra.mxu0 %v640
        %v1074 = vpop.f32.mrf.mxu0
        %v1075 = vadd.f32 0.0, %v1074
        %v1076 = vpop.f32.mrf.mxu0
        %v1077 = vadd.f32 0.0, %v1076
        %1078 = vmatprep.mubr.f32.mxu0 0.0
        %1079 = vmatmul.mubr.f32.gmra.mxu0 %v643
        %v1080 = vpop.f32.mrf.mxu0
        %v1081 = vadd.f32 0.0, %v1080
        %v1082 = vpop.f32.mrf.mxu0
        %v1083 = vadd.f32 0.0, %v1082
        %1084 = vmatprep.mubr.f32.mxu0 0.0
        %1085 = vmatmul.mubr.f32.gmra.mxu0 %v646
        %v1086 = vpop.f32.mrf.mxu0
        %v1087 = vadd.f32 0.0, %v1086
        %v1088 = vpop.f32.mrf.mxu0
        %v1089 = vadd.f32 0.0, %v1088
        %1090 = vmatprep.mubr.f32.mxu0 0.0
        %1091 = vmatmul.mubr.f32.gmra.mxu0 %v649
        %v1092 = vpop.f32.mrf.mxu0
        %v1093 = vadd.f32 0.0, %v1092
        %v1094 = vpop.f32.mrf.mxu0
        %v1095 = vadd.f32 0.0, %v1094
        %1096 = vmatprep.mubr.f32.mxu0 0.0
        %1097 = vmatmul.mubr.f32.gmra.mxu0 %v652
        %v1098 = vpop.f32.mrf.mxu0
        %v1099 = vadd.f32 0.0, %v1098
        %v1100 = vpop.f32.mrf.mxu0
        %v1101 = vadd.f32 0.0, %v1100
        %1102 = vmatprep.mubr.f32.mxu0 0.0
        %1103 = vmatmul.mubr.f32.gmra.mxu0 %v655
        %v1104 = vpop.f32.mrf.mxu0
        %v1105 = vadd.f32 0.0, %v1104
        %v1106 = vpop.f32.mrf.mxu0
        %v1107 = vadd.f32 0.0, %v1106
        %1108 = vmatprep.mubr.f32.mxu0 0.0
        %1109 = vmatmul.mubr.f32.gmra.mxu0 %v658
        %v1110 = vpop.f32.mrf.mxu0
        %v1111 = vadd.f32 0.0, %v1110
        %v1112 = vpop.f32.mrf.mxu0
        %v1113 = vadd.f32 0.0, %v1112
        %1114 = vmatprep.mubr.f32.mxu0 0.0
        %1115 = vmatmul.mubr.f32.gmra.mxu0 %v661
        %v1116 = vpop.f32.mrf.mxu0
        %v1117 = vadd.f32 0.0, %v1116
        %v1118 = vpop.f32.mrf.mxu0
        %v1119 = vadd.f32 0.0, %v1118
        %1120 = vmatprep.mubr.f32.mxu0 0.0
        %1121 = vmatmul.mubr.f32.gmra.mxu0 %v664
        %v1122 = vpop.f32.mrf.mxu0
        %v1123 = vadd.f32 0.0, %v1122
        %v1124 = vpop.f32.mrf.mxu0
        %v1125 = vadd.f32 0.0, %v1124
        %1126 = vmatprep.mubr.f32.mxu0 0.0
        %1127 = vmatmul.mubr.f32.gmra.mxu0 %v667
        %v1128 = vpop.f32.mrf.mxu0
        %v1129 = vadd.f32 0.0, %v1128
        %v1130 = vpop.f32.mrf.mxu0
        %v1131 = vadd.f32 0.0, %v1130
        %1132 = vmatprep.mubr.f32.mxu0 0.0
        %1133 = vmatmul.mubr.f32.gmra.mxu0 %v670
        %v1134 = vpop.f32.mrf.mxu0
        %v1135 = vadd.f32 0.0, %v1134
        %v1136 = vpop.f32.mrf.mxu0
        %v1137 = vadd.f32 0.0, %v1136
        %1138 = vmatprep.mubr.f32.mxu0 0.0
        %1139 = vmatmul.mubr.f32.gmra.mxu0 %v673
        %v1140 = vpop.f32.mrf.mxu0
        %v1141 = vadd.f32 0.0, %v1140
        %v1142 = vpop.f32.mrf.mxu0
        %v1143 = vadd.f32 0.0, %v1142
        %1144 = vmatprep.mubr.f32.mxu0 0.0
        %1145 = vmatmul.mubr.f32.gmra.mxu0 %v676
        %v1146 = vpop.f32.mrf.mxu0
        %v1147 = vadd.f32 0.0, %v1146
        %v1148 = vpop.f32.mrf.mxu0
        %v1149 = vadd.f32 0.0, %v1148
        %1150 = vmatprep.mubr.f32.mxu0 0.0
        %1151 = vmatmul.mubr.f32.gmra.mxu0 %v679
        %v1152 = vpop.f32.mrf.mxu0
        %v1153 = vadd.f32 0.0, %v1152
        %v1154 = vpop.f32.mrf.mxu0
        %v1155 = vadd.f32 0.0, %v1154
        %1156 = vmatprep.mubr.f32.mxu0 0.0
        %1157 = vmatmul.mubr.f32.gmra.mxu0 %v682
        %v1158 = vpop.f32.mrf.mxu0
        %v1159 = vadd.f32 0.0, %v1158
        %v1160 = vpop.f32.mrf.mxu0
        %v1161 = vadd.f32 0.0, %v1160
        %1162 = vmatprep.mubr.f32.mxu0 0.0
        %1163 = vmatmul.mubr.f32.gmra.mxu0 %v685
        %v1164 = vpop.f32.mrf.mxu0
        %v1165 = vadd.f32 0.0, %v1164
        %v1166 = vpop.f32.mrf.mxu0
        %v1167 = vadd.f32 0.0, %v1166
        %1168 = vmatprep.mubr.f32.mxu0 0.0
        %1169 = vmatmul.mubr.f32.gmra.mxu0 %v688
        %v1170 = vpop.f32.mrf.mxu0
        %v1171 = vadd.f32 0.0, %v1170
        %v1172 = vpop.f32.mrf.mxu0
        %v1173 = vadd.f32 0.0, %v1172
        %1174 = vmatprep.mubr.f32.mxu0 0.0
        %1175 = vmatmul.mubr.f32.gmra.mxu0 %v691
        %v1176 = vpop.f32.mrf.mxu0
        %v1177 = vadd.f32 0.0, %v1176
        %v1178 = vpop.f32.mrf.mxu0
        %v1179 = vadd.f32 0.0, %v1178
        %1180 = vmatprep.mubr.f32.mxu0 0.0
        %1181 = vmatmul.mubr.f32.gmra.mxu0 %v694
        %v1182 = vpop.f32.mrf.mxu0
        %v1183 = vadd.f32 0.0, %v1182
        %v1184 = vpop.f32.mrf.mxu0
        %v1185 = vadd.f32 0.0, %v1184
        %1186 = vmatprep.mubr.f32.mxu0 0.0
        %1187 = vmatmul.mubr.f32.gmra.mxu0 %v697
        %v1188 = vpop.f32.mrf.mxu0
        %v1189 = vadd.f32 0.0, %v1188
        %v1190 = vpop.f32.mrf.mxu0
        %v1191 = vadd.f32 0.0, %v1190
        %1192 = vmatprep.mubr.f32.mxu0 0.0
        %1193 = vmatmul.mubr.f32.gmra.mxu0 %v700
        %v1194 = vpop.f32.mrf.mxu0
        %v1195 = vadd.f32 0.0, %v1194
        %v1196 = vpop.f32.mrf.mxu0
        %v1197 = vadd.f32 0.0, %v1196
        %1198 = vdwg.mxu0
        %1199 = vmatprep.subr.mxu0 0.0
        %1200 = vmatpush1.xpose.msra.mxu0 %v844
        %1201 = vmatprep.subr.mxu0 0.0
        %1202 = vmatpush1.xpose.msra.mxu0 %v841
        %1203 = vmatprep.subr.mxu0 0.0
        %1204 = vmatpush1.xpose.msra.mxu0 %v838
        %1205 = vmatprep.subr.mxu0 0.0
        %1206 = vmatpush1.xpose.msra.mxu0 %v835
        %1207 = vmatprep.subr.mxu0 0.0
        %1208 = vmatpush1.xpose.msra.mxu0 %v832
        %1209 = vmatprep.subr.mxu0 0.0
        %1210 = vmatpush1.xpose.msra.mxu0 %v829
        %1211 = vmatprep.subr.mxu0 0.0
        %1212 = vmatpush1.xpose.msra.mxu0 %v826
        %1213 = vmatprep.subr.mxu0 0.0
        %1214 = vmatpush1.xpose.msra.mxu0 %v823
        %1215 = vmatprep.subr.mxu0 0.0
        %1216 = vmatpush1.xpose.msra.mxu0 %v820
        %1217 = vmatprep.subr.mxu0 0.0
        %1218 = vmatpush1.xpose.msra.mxu0 %v817
        %1219 = vmatprep.subr.mxu0 0.0
        %1220 = vmatpush1.xpose.msra.mxu0 %v814
        %1221 = vmatprep.subr.mxu0 0.0
        %1222 = vmatpush1.xpose.msra.mxu0 %v811
        %1223 = vmatprep.subr.mxu0 0.0
        %1224 = vmatpush1.xpose.msra.mxu0 %v808
        %1225 = vmatprep.subr.mxu0 0.0
        %1226 = vmatpush1.xpose.msra.mxu0 %v805
        %1227 = vmatprep.subr.mxu0 0.0
        %1228 = vmatpush1.xpose.msra.mxu0 %v802
        %1229 = vmatprep.subr.mxu0 0.0
        %1230 = vmatpush1.xpose.msra.mxu0 %v799
        %1231 = vmatprep.subr.mxu0 0.0
        %1232 = vmatpush2.xpose.msra.mxu0 0.0
        %1233 = vmatprep.subr.mxu0 0.0
        %1234 = vmatpush2.xpose.msra.mxu0 0.0
        %1235 = vmatprep.subr.mxu0 0.0
        %1236 = vmatpush2.xpose.msra.mxu0 0.0
        %1237 = vmatprep.subr.mxu0 0.0
        %1238 = vmatpush2.xpose.msra.mxu0 0.0
        %1239 = vmatprep.subr.mxu0 0.0
        %1240 = vmatpush2.xpose.msra.mxu0 0.0
        %1241 = vmatprep.subr.mxu0 0.0
        %1242 = vmatpush2.xpose.msra.mxu0 0.0
        %1243 = vmatprep.subr.mxu0 0.0
        %1244 = vmatpush2.xpose.msra.mxu0 0.0
        %1245 = vmatprep.subr.mxu0 0.0
        %1246 = vmatpush2.xpose.msra.mxu0 0.0
        %1247 = vmatprep.subr.mxu0 0.0
        %1248 = vmatpush2.xpose.msra.mxu0 0.0
        %1249 = vmatprep.subr.mxu0 0.0
        %1250 = vmatpush2.xpose.msra.mxu0 0.0
        %1251 = vmatprep.subr.mxu0 0.0
        %1252 = vmatpush2.xpose.msra.mxu0 0.0
        %1253 = vmatprep.subr.mxu0 0.0
        %1254 = vmatpush2.xpose.msra.mxu0 0.0
        %1255 = vmatprep.subr.mxu0 0.0
        %1256 = vmatpush2.xpose.msra.mxu0 0.0
        %1257 = vmatprep.subr.mxu0 0.0
        %1258 = vmatpush2.xpose.msra.mxu0 0.0
        %1259 = vmatprep.subr.mxu0 0.0
        %1260 = vmatpush2.xpose.msra.mxu0 0.0
        %1261 = vmatprep.subr.mxu0 0.0
        %1262 = vmatpush2.xpose.msra.mxu0 0.0
        %1263 = vmatprep.mubr.f32.mxu0 0.0
        %1264 = vmatmul.mubr.f32.gmra.mxu0 %v559
        %v1265 = vpop.f32.mrf.mxu0
        %v1266 = vadd.f32 0.0, %v1265
        %v1267 = vpop.f32.mrf.mxu0
        %1268 = vmatprep.mubr.f32.mxu0 0.0
        %1269 = vmatmul.mubr.f32.gmra.mxu0 %v562
        %v1270 = vpop.f32.mrf.mxu0
        %v1271 = vadd.f32 0.0, %v1270
        %v1272 = vpop.f32.mrf.mxu0
        %1273 = vmatprep.mubr.f32.mxu0 0.0
        %1274 = vmatmul.mubr.f32.gmra.mxu0 %v565
        %v1275 = vpop.f32.mrf.mxu0
        %v1276 = vadd.f32 0.0, %v1275
        %v1277 = vpop.f32.mrf.mxu0
        %1278 = vmatprep.mubr.f32.mxu0 0.0
        %1279 = vmatmul.mubr.f32.gmra.mxu0 %v568
        %v1280 = vpop.f32.mrf.mxu0
        %v1281 = vadd.f32 0.0, %v1280
        %v1282 = vpop.f32.mrf.mxu0
        %1283 = vmatprep.mubr.f32.mxu0 0.0
        %1284 = vmatmul.mubr.f32.gmra.mxu0 %v571
        %v1285 = vpop.f32.mrf.mxu0
        %v1286 = vadd.f32 0.0, %v1285
        %v1287 = vpop.f32.mrf.mxu0
        %1288 = vmatprep.mubr.f32.mxu0 0.0
        %1289 = vmatmul.mubr.f32.gmra.mxu0 %v574
        %v1290 = vpop.f32.mrf.mxu0
        %v1291 = vadd.f32 0.0, %v1290
        %v1292 = vpop.f32.mrf.mxu0
        %1293 = vmatprep.mubr.f32.mxu0 0.0
        %1294 = vmatmul.mubr.f32.gmra.mxu0 %v577
        %v1295 = vpop.f32.mrf.mxu0
        %v1296 = vadd.f32 0.0, %v1295
        %v1297 = vpop.f32.mrf.mxu0
        %1298 = vmatprep.mubr.f32.mxu0 0.0
        %1299 = vmatmul.mubr.f32.gmra.mxu0 %v580
        %v1300 = vpop.f32.mrf.mxu0
        %v1301 = vadd.f32 0.0, %v1300
        %v1302 = vpop.f32.mrf.mxu0
        %1303 = vmatprep.mubr.f32.mxu0 0.0
        %1304 = vmatmul.mubr.f32.gmra.mxu0 %v583
        %v1305 = vpop.f32.mrf.mxu0
        %v1306 = vadd.f32 0.0, %v1305
        %v1307 = vpop.f32.mrf.mxu0
        %1308 = vmatprep.mubr.f32.mxu0 0.0
        %1309 = vmatmul.mubr.f32.gmra.mxu0 %v586
        %v1310 = vpop.f32.mrf.mxu0
        %v1311 = vadd.f32 0.0, %v1310
        %v1312 = vpop.f32.mrf.mxu0
        %1313 = vmatprep.mubr.f32.mxu0 0.0
        %1314 = vmatmul.mubr.f32.gmra.mxu0 %v589
        %v1315 = vpop.f32.mrf.mxu0
        %v1316 = vadd.f32 0.0, %v1315
        %v1317 = vpop.f32.mrf.mxu0
        %1318 = vmatprep.mubr.f32.mxu0 0.0
        %1319 = vmatmul.mubr.f32.gmra.mxu0 %v592
        %v1320 = vpop.f32.mrf.mxu0
        %v1321 = vadd.f32 0.0, %v1320
        %v1322 = vpop.f32.mrf.mxu0
        %1323 = vmatprep.mubr.f32.mxu0 0.0
        %1324 = vmatmul.mubr.f32.gmra.mxu0 %v595
        %v1325 = vpop.f32.mrf.mxu0
        %v1326 = vadd.f32 0.0, %v1325
        %v1327 = vpop.f32.mrf.mxu0
        %1328 = vmatprep.mubr.f32.mxu0 0.0
        %1329 = vmatmul.mubr.f32.gmra.mxu0 %v598
        %v1330 = vpop.f32.mrf.mxu0
        %v1331 = vadd.f32 0.0, %v1330
        %v1332 = vpop.f32.mrf.mxu0
        %1333 = vmatprep.mubr.f32.mxu0 0.0
        %1334 = vmatmul.mubr.f32.gmra.mxu0 %v601
        %v1335 = vpop.f32.mrf.mxu0
        %v1336 = vadd.f32 0.0, %v1335
        %v1337 = vpop.f32.mrf.mxu0
        %1338 = vmatprep.mubr.f32.mxu0 0.0
        %1339 = vmatmul.mubr.f32.gmra.mxu0 %v604
        %v1340 = vpop.f32.mrf.mxu0
        %v1341 = vadd.f32 0.0, %v1340
        %v1342 = vpop.f32.mrf.mxu0
        %1343 = vmatprep.mubr.f32.mxu0 0.0
        %1344 = vmatmul.mubr.f32.gmra.mxu0 %v607
        %v1345 = vpop.f32.mrf.mxu0
        %v1346 = vadd.f32 0.0, %v1345
        %v1347 = vpop.f32.mrf.mxu0
        %1348 = vmatprep.mubr.f32.mxu0 0.0
        %1349 = vmatmul.mubr.f32.gmra.mxu0 %v610
        %v1350 = vpop.f32.mrf.mxu0
        %v1351 = vadd.f32 0.0, %v1350
        %v1352 = vpop.f32.mrf.mxu0
        %1353 = vmatprep.mubr.f32.mxu0 0.0
        %1354 = vmatmul.mubr.f32.gmra.mxu0 %v613
        %v1355 = vpop.f32.mrf.mxu0
        %v1356 = vadd.f32 0.0, %v1355
        %v1357 = vpop.f32.mrf.mxu0
        %1358 = vmatprep.mubr.f32.mxu0 0.0
        %1359 = vmatmul.mubr.f32.gmra.mxu0 %v616
        %v1360 = vpop.f32.mrf.mxu0
        %v1361 = vadd.f32 0.0, %v1360
        %v1362 = vpop.f32.mrf.mxu0
        %1363 = vmatprep.mubr.f32.mxu0 0.0
        %1364 = vmatmul.mubr.f32.gmra.mxu0 %v619
        %v1365 = vpop.f32.mrf.mxu0
        %v1366 = vadd.f32 0.0, %v1365
        %v1367 = vpop.f32.mrf.mxu0
        %1368 = vmatprep.mubr.f32.mxu0 0.0
        %1369 = vmatmul.mubr.f32.gmra.mxu0 %v622
        %v1370 = vpop.f32.mrf.mxu0
        %v1371 = vadd.f32 0.0, %v1370
        %v1372 = vpop.f32.mrf.mxu0
        %1373 = vmatprep.mubr.f32.mxu0 0.0
        %1374 = vmatmul.mubr.f32.gmra.mxu0 %v625
        %v1375 = vpop.f32.mrf.mxu0
        %v1376 = vadd.f32 0.0, %v1375
        %v1377 = vpop.f32.mrf.mxu0
        %1378 = vmatprep.mubr.f32.mxu0 0.0
        %1379 = vmatmul.mubr.f32.gmra.mxu0 %v628
        %v1380 = vpop.f32.mrf.mxu0
        %v1381 = vadd.f32 0.0, %v1380
        %v1382 = vpop.f32.mrf.mxu0
        %1383 = vmatprep.mubr.f32.mxu0 0.0
        %1384 = vmatmul.mubr.f32.gmra.mxu0 %v631
        %v1385 = vpop.f32.mrf.mxu0
        %v1386 = vadd.f32 0.0, %v1385
        %v1387 = vpop.f32.mrf.mxu0
        %1388 = vmatprep.mubr.f32.mxu0 0.0
        %1389 = vmatmul.mubr.f32.gmra.mxu0 %v634
        %v1390 = vpop.f32.mrf.mxu0
        %v1391 = vadd.f32 0.0, %v1390
        %v1392 = vpop.f32.mrf.mxu0
        %1393 = vmatprep.mubr.f32.mxu0 0.0
        %1394 = vmatmul.mubr.f32.gmra.mxu0 %v637
        %v1395 = vpop.f32.mrf.mxu0
        %v1396 = vadd.f32 0.0, %v1395
        %v1397 = vpop.f32.mrf.mxu0
        %1398 = vmatprep.mubr.f32.mxu0 0.0
        %1399 = vmatmul.mubr.f32.gmra.mxu0 %v640
        %v1400 = vpop.f32.mrf.mxu0
        %v1401 = vadd.f32 0.0, %v1400
        %v1402 = vpop.f32.mrf.mxu0
        %1403 = vmatprep.mubr.f32.mxu0 0.0
        %1404 = vmatmul.mubr.f32.gmra.mxu0 %v643
        %v1405 = vpop.f32.mrf.mxu0
        %v1406 = vadd.f32 0.0, %v1405
        %v1407 = vpop.f32.mrf.mxu0
        %1408 = vmatprep.mubr.f32.mxu0 0.0
        %1409 = vmatmul.mubr.f32.gmra.mxu0 %v646
        %v1410 = vpop.f32.mrf.mxu0
        %v1411 = vadd.f32 0.0, %v1410
        %v1412 = vpop.f32.mrf.mxu0
        %1413 = vmatprep.mubr.f32.mxu0 0.0
        %1414 = vmatmul.mubr.f32.gmra.mxu0 %v649
        %v1415 = vpop.f32.mrf.mxu0
        %v1416 = vadd.f32 0.0, %v1415
        %v1417 = vpop.f32.mrf.mxu0
        %1418 = vmatprep.mubr.f32.mxu0 0.0
        %1419 = vmatmul.mubr.f32.gmra.mxu0 %v652
        %v1420 = vpop.f32.mrf.mxu0
        %v1421 = vadd.f32 0.0, %v1420
        %v1422 = vpop.f32.mrf.mxu0
        %1423 = vmatprep.mubr.f32.mxu0 0.0
        %1424 = vmatmul.mubr.f32.gmra.mxu0 %v655
        %v1425 = vpop.f32.mrf.mxu0
        %v1426 = vadd.f32 0.0, %v1425
        %v1427 = vpop.f32.mrf.mxu0
        %1428 = vmatprep.mubr.f32.mxu0 0.0
        %1429 = vmatmul.mubr.f32.gmra.mxu0 %v658
        %v1430 = vpop.f32.mrf.mxu0
        %v1431 = vadd.f32 0.0, %v1430
        %v1432 = vpop.f32.mrf.mxu0
        %1433 = vmatprep.mubr.f32.mxu0 0.0
        %1434 = vmatmul.mubr.f32.gmra.mxu0 %v661
        %v1435 = vpop.f32.mrf.mxu0
        %v1436 = vadd.f32 0.0, %v1435
        %v1437 = vpop.f32.mrf.mxu0
        %1438 = vmatprep.mubr.f32.mxu0 0.0
        %1439 = vmatmul.mubr.f32.gmra.mxu0 %v664
        %v1440 = vpop.f32.mrf.mxu0
        %v1441 = vadd.f32 0.0, %v1440
        %v1442 = vpop.f32.mrf.mxu0
        %1443 = vmatprep.mubr.f32.mxu0 0.0
        %1444 = vmatmul.mubr.f32.gmra.mxu0 %v667
        %v1445 = vpop.f32.mrf.mxu0
        %v1446 = vadd.f32 0.0, %v1445
        %v1447 = vpop.f32.mrf.mxu0
        %1448 = vmatprep.mubr.f32.mxu0 0.0
        %1449 = vmatmul.mubr.f32.gmra.mxu0 %v670
        %v1450 = vpop.f32.mrf.mxu0
        %v1451 = vadd.f32 0.0, %v1450
        %v1452 = vpop.f32.mrf.mxu0
        %1453 = vmatprep.mubr.f32.mxu0 0.0
        %1454 = vmatmul.mubr.f32.gmra.mxu0 %v673
        %v1455 = vpop.f32.mrf.mxu0
        %v1456 = vadd.f32 0.0, %v1455
        %v1457 = vpop.f32.mrf.mxu0
        %1458 = vmatprep.mubr.f32.mxu0 0.0
        %1459 = vmatmul.mubr.f32.gmra.mxu0 %v676
        %v1460 = vpop.f32.mrf.mxu0
        %v1461 = vadd.f32 0.0, %v1460
        %v1462 = vpop.f32.mrf.mxu0
        %1463 = vmatprep.mubr.f32.mxu0 0.0
        %1464 = vmatmul.mubr.f32.gmra.mxu0 %v679
        %v1465 = vpop.f32.mrf.mxu0
        %v1466 = vadd.f32 0.0, %v1465
        %v1467 = vpop.f32.mrf.mxu0
        %1468 = vmatprep.mubr.f32.mxu0 0.0
        %1469 = vmatmul.mubr.f32.gmra.mxu0 %v682
        %v1470 = vpop.f32.mrf.mxu0
        %v1471 = vadd.f32 0.0, %v1470
        %v1472 = vpop.f32.mrf.mxu0
        %1473 = vmatprep.mubr.f32.mxu0 0.0
        %1474 = vmatmul.mubr.f32.gmra.mxu0 %v685
        %v1475 = vpop.f32.mrf.mxu0
        %v1476 = vadd.f32 0.0, %v1475
        %v1477 = vpop.f32.mrf.mxu0
        %1478 = vmatprep.mubr.f32.mxu0 0.0
        %1479 = vmatmul.mubr.f32.gmra.mxu0 %v688
        %v1480 = vpop.f32.mrf.mxu0
        %v1481 = vadd.f32 0.0, %v1480
        %v1482 = vpop.f32.mrf.mxu0
        %1483 = vmatprep.mubr.f32.mxu0 0.0
        %1484 = vmatmul.mubr.f32.gmra.mxu0 %v691
        %v1485 = vpop.f32.mrf.mxu0
        %v1486 = vadd.f32 0.0, %v1485
        %v1487 = vpop.f32.mrf.mxu0
        %1488 = vmatprep.mubr.f32.mxu0 0.0
        %1489 = vmatmul.mubr.f32.gmra.mxu0 %v694
        %v1490 = vpop.f32.mrf.mxu0
        %v1491 = vadd.f32 0.0, %v1490
        %v1492 = vpop.f32.mrf.mxu0
        %1493 = vmatprep.mubr.f32.mxu0 0.0
        %1494 = vmatmul.mubr.f32.gmra.mxu0 %v697
        %v1495 = vpop.f32.mrf.mxu0
        %v1496 = vadd.f32 0.0, %v1495
        %v1497 = vpop.f32.mrf.mxu0
        %1498 = vmatprep.mubr.f32.mxu0 0.0
        %1499 = vmatmul.mubr.f32.gmra.mxu0 %v700
        %v1500 = vpop.f32.mrf.mxu0
        %v1501 = vadd.f32 0.0, %v1500
        %v1502 = vpop.f32.mrf.mxu0
        %1503 = vdwg.mxu0
        %v1505 = vsel %vm557, %v221, 0
        %v1508 = vsel %vm557, %v222, 0
        %v1511 = vsel %vm557, %v223, 0
        %v1514 = vsel %vm557, %v224, 0
        %v1517 = vsel %vm557, %v225, 0
        %v1520 = vsel %vm557, %v226, 0
        %v1523 = vsel %vm557, %v227, 0
        %v1526 = vsel %vm557, %v228, 0
        %v1529 = vsel %vm557, %v229, 0
        %v1532 = vsel %vm557, %v230, 0
        %v1535 = vsel %vm557, %v231, 0
        %v1538 = vsel %vm557, %v232, 0
        %v1541 = vsel %vm557, %v233, 0
        %v1544 = vsel %vm557, %v234, 0
        %v1547 = vsel %vm557, %v235, 0
        %v1550 = vsel %vm557, %v236, 0
        %v1553 = vsel %vm557, %v237, 0
        %v1556 = vsel %vm557, %v238, 0
        %v1559 = vsel %vm557, %v239, 0
        %v1562 = vsel %vm557, %v240, 0
        %v1565 = vsel %vm557, %v241, 0
        %v1568 = vsel %vm557, %v242, 0
        %v1571 = vsel %vm557, %v243, 0
        %v1574 = vsel %vm557, %v244, 0
        %v1577 = vsel %vm557, %v245, 0
        %v1580 = vsel %vm557, %v246, 0
        %v1583 = vsel %vm557, %v247, 0
        %v1586 = vsel %vm557, %v248, 0
        %v1589 = vsel %vm557, %v249, 0
        %v1592 = vsel %vm557, %v250, 0
        %v1595 = vsel %vm557, %v251, 0
        %v1598 = vsel %vm557, %v252, 0
        %v1601 = vsel %vm557, %v253, 0
        %v1604 = vsel %vm557, %v254, 0
        %v1607 = vsel %vm557, %v255, 0
        %v1610 = vsel %vm557, %v256, 0
        %v1613 = vsel %vm557, %v257, 0
        %v1616 = vsel %vm557, %v258, 0
        %v1619 = vsel %vm557, %v259, 0
        %v1622 = vsel %vm557, %v260, 0
        %v1625 = vsel %vm557, %v261, 0
        %v1628 = vsel %vm557, %v262, 0
        %v1631 = vsel %vm557, %v263, 0
        %v1634 = vsel %vm557, %v264, 0
        %v1637 = vsel %vm557, %v265, 0
        %v1640 = vsel %vm557, %v266, 0
        %v1643 = vsel %vm557, %v267, 0
        %v1646 = vsel %vm557, %v268, 0
        %v1649 = vsel %vm557, %v413, 0
        %v1652 = vsel %vm557, %v414, 0
        %v1655 = vsel %vm557, %v415, 0
        %v1658 = vsel %vm557, %v416, 0
        %v1661 = vsel %vm557, %v417, 0
        %v1664 = vsel %vm557, %v418, 0
        %v1667 = vsel %vm557, %v419, 0
        %v1670 = vsel %vm557, %v420, 0
        %v1673 = vsel %vm557, %v421, 0
        %v1676 = vsel %vm557, %v422, 0
        %v1679 = vsel %vm557, %v423, 0
        %v1682 = vsel %vm557, %v424, 0
        %v1685 = vsel %vm557, %v425, 0
        %v1688 = vsel %vm557, %v426, 0
        %v1691 = vsel %vm557, %v427, 0
        %v1694 = vsel %vm557, %v428, 0
        %v1697 = vsel %vm557, %v429, 0
        %v1700 = vsel %vm557, %v430, 0
        %v1703 = vsel %vm557, %v431, 0
        %v1706 = vsel %vm557, %v432, 0
        %v1709 = vsel %vm557, %v433, 0
        %v1712 = vsel %vm557, %v434, 0
        %v1715 = vsel %vm557, %v435, 0
        %v1718 = vsel %vm557, %v436, 0
        %v1721 = vsel %vm557, %v437, 0
        %v1724 = vsel %vm557, %v438, 0
        %v1727 = vsel %vm557, %v439, 0
        %v1730 = vsel %vm557, %v440, 0
        %v1733 = vsel %vm557, %v441, 0
        %v1736 = vsel %vm557, %v442, 0
        %v1739 = vsel %vm557, %v443, 0
        %v1742 = vsel %vm557, %v444, 0
        %v1745 = vsel %vm557, %v445, 0
        %v1748 = vsel %vm557, %v446, 0
        %v1751 = vsel %vm557, %v447, 0
        %v1754 = vsel %vm557, %v448, 0
        %v1757 = vsel %vm557, %v449, 0
        %v1760 = vsel %vm557, %v450, 0
        %v1763 = vsel %vm557, %v451, 0
        %v1766 = vsel %vm557, %v452, 0
        %v1769 = vsel %vm557, %v453, 0
        %v1772 = vsel %vm557, %v454, 0
        %v1775 = vsel %vm557, %v455, 0
        %v1778 = vsel %vm557, %v456, 0
        %v1781 = vsel %vm557, %v457, 0
        %v1784 = vsel %vm557, %v458, 0
        %v1787 = vsel %vm557, %v459, 0
        %v1790 = vsel %vm557, %v460, 0
        %1792 = vmatprep.subr.mxu0 0.0
        %1793 = vmatpush1.xpose.msra.mxu0 %v1694
        %1794 = vmatprep.subr.mxu0 0.0
        %1795 = vmatpush1.xpose.msra.mxu0 %v1691
        %1796 = vmatprep.subr.mxu0 0.0
        %1797 = vmatpush1.xpose.msra.mxu0 %v1688
        %1798 = vmatprep.subr.mxu0 0.0
        %1799 = vmatpush1.xpose.msra.mxu0 %v1685
        %1800 = vmatprep.subr.mxu0 0.0
        %1801 = vmatpush1.xpose.msra.mxu0 %v1682
        %1802 = vmatprep.subr.mxu0 0.0
        %1803 = vmatpush1.xpose.msra.mxu0 %v1679
        %1804 = vmatprep.subr.mxu0 0.0
        %1805 = vmatpush1.xpose.msra.mxu0 %v1676
        %1806 = vmatprep.subr.mxu0 0.0
        %1807 = vmatpush1.xpose.msra.mxu0 %v1673
        %1808 = vmatprep.subr.mxu0 0.0
        %1809 = vmatpush1.xpose.msra.mxu0 %v1670
        %1810 = vmatprep.subr.mxu0 0.0
        %1811 = vmatpush1.xpose.msra.mxu0 %v1667
        %1812 = vmatprep.subr.mxu0 0.0
        %1813 = vmatpush1.xpose.msra.mxu0 %v1664
        %1814 = vmatprep.subr.mxu0 0.0
        %1815 = vmatpush1.xpose.msra.mxu0 %v1661
        %1816 = vmatprep.subr.mxu0 0.0
        %1817 = vmatpush1.xpose.msra.mxu0 %v1658
        %1818 = vmatprep.subr.mxu0 0.0
        %1819 = vmatpush1.xpose.msra.mxu0 %v1655
        %1820 = vmatprep.subr.mxu0 0.0
        %1821 = vmatpush1.xpose.msra.mxu0 %v1652
        %1822 = vmatprep.subr.mxu0 0.0
        %1823 = vmatpush1.xpose.msra.mxu0 %v1649
        %1824 = vmatprep.subr.mxu0 0.0
        %1825 = vmatpush2.xpose.msra.mxu0 %v1742
        %1826 = vmatprep.subr.mxu0 0.0
        %1827 = vmatpush2.xpose.msra.mxu0 %v1739
        %1828 = vmatprep.subr.mxu0 0.0
        %1829 = vmatpush2.xpose.msra.mxu0 %v1736
        %1830 = vmatprep.subr.mxu0 0.0
        %1831 = vmatpush2.xpose.msra.mxu0 %v1733
        %1832 = vmatprep.subr.mxu0 0.0
        %1833 = vmatpush2.xpose.msra.mxu0 %v1730
        %1834 = vmatprep.subr.mxu0 0.0
        %1835 = vmatpush2.xpose.msra.mxu0 %v1727
        %1836 = vmatprep.subr.mxu0 0.0
        %1837 = vmatpush2.xpose.msra.mxu0 %v1724
        %1838 = vmatprep.subr.mxu0 0.0
        %1839 = vmatpush2.xpose.msra.mxu0 %v1721
        %1840 = vmatprep.subr.mxu0 0.0
        %1841 = vmatpush2.xpose.msra.mxu0 %v1718
        %1842 = vmatprep.subr.mxu0 0.0
        %1843 = vmatpush2.xpose.msra.mxu0 %v1715
        %1844 = vmatprep.subr.mxu0 0.0
        %1845 = vmatpush2.xpose.msra.mxu0 %v1712
        %1846 = vmatprep.subr.mxu0 0.0
        %1847 = vmatpush2.xpose.msra.mxu0 %v1709
        %1848 = vmatprep.subr.mxu0 0.0
        %1849 = vmatpush2.xpose.msra.mxu0 %v1706
        %1850 = vmatprep.subr.mxu0 0.0
        %1851 = vmatpush2.xpose.msra.mxu0 %v1703
        %1852 = vmatprep.subr.mxu0 0.0
        %1853 = vmatpush2.xpose.msra.mxu0 %v1700
        %1854 = vmatprep.subr.mxu0 0.0
        %1855 = vmatpush2.xpose.msra.mxu0 %v1697
        %1856 = vmatprep.mubr.f32.mxu0 0.0
        %1857 = vmatmul.mubr.f32.gmra.mxu0 %v1505
        %v1858 = vpop.f32.mrf.mxu0
        %v1859 = vadd.f32 0.0, %v1858
        %v1860 = vpop.f32.mrf.mxu0
        %v1861 = vadd.f32 0.0, %v1860
        %1862 = vmatprep.mubr.f32.mxu0 0.0
        %1863 = vmatmul.mubr.f32.gmra.mxu0 %v1508
        %v1864 = vpop.f32.mrf.mxu0
        %v1865 = vadd.f32 0.0, %v1864
        %v1866 = vpop.f32.mrf.mxu0
        %v1867 = vadd.f32 0.0, %v1866
        %1868 = vmatprep.mubr.f32.mxu0 0.0
        %1869 = vmatmul.mubr.f32.gmra.mxu0 %v1511
        %v1870 = vpop.f32.mrf.mxu0
        %v1871 = vadd.f32 0.0, %v1870
        %v1872 = vpop.f32.mrf.mxu0
        %v1873 = vadd.f32 0.0, %v1872
        %1874 = vmatprep.mubr.f32.mxu0 0.0
        %1875 = vmatmul.mubr.f32.gmra.mxu0 %v1514
        %v1876 = vpop.f32.mrf.mxu0
        %v1877 = vadd.f32 0.0, %v1876
        %v1878 = vpop.f32.mrf.mxu0
        %v1879 = vadd.f32 0.0, %v1878
        %1880 = vmatprep.mubr.f32.mxu0 0.0
        %1881 = vmatmul.mubr.f32.gmra.mxu0 %v1517
        %v1882 = vpop.f32.mrf.mxu0
        %v1883 = vadd.f32 0.0, %v1882
        %v1884 = vpop.f32.mrf.mxu0
        %v1885 = vadd.f32 0.0, %v1884
        %1886 = vmatprep.mubr.f32.mxu0 0.0
        %1887 = vmatmul.mubr.f32.gmra.mxu0 %v1520
        %v1888 = vpop.f32.mrf.mxu0
        %v1889 = vadd.f32 0.0, %v1888
        %v1890 = vpop.f32.mrf.mxu0
        %v1891 = vadd.f32 0.0, %v1890
        %1892 = vmatprep.mubr.f32.mxu0 0.0
        %1893 = vmatmul.mubr.f32.gmra.mxu0 %v1523
        %v1894 = vpop.f32.mrf.mxu0
        %v1895 = vadd.f32 0.0, %v1894
        %v1896 = vpop.f32.mrf.mxu0
        %v1897 = vadd.f32 0.0, %v1896
        %1898 = vmatprep.mubr.f32.mxu0 0.0
        %1899 = vmatmul.mubr.f32.gmra.mxu0 %v1526
        %v1900 = vpop.f32.mrf.mxu0
        %v1901 = vadd.f32 0.0, %v1900
        %v1902 = vpop.f32.mrf.mxu0
        %v1903 = vadd.f32 0.0, %v1902
        %1904 = vmatprep.mubr.f32.mxu0 0.0
        %1905 = vmatmul.mubr.f32.gmra.mxu0 %v1529
        %v1906 = vpop.f32.mrf.mxu0
        %v1907 = vadd.f32 0.0, %v1906
        %v1908 = vpop.f32.mrf.mxu0
        %v1909 = vadd.f32 0.0, %v1908
        %1910 = vmatprep.mubr.f32.mxu0 0.0
        %1911 = vmatmul.mubr.f32.gmra.mxu0 %v1532
        %v1912 = vpop.f32.mrf.mxu0
        %v1913 = vadd.f32 0.0, %v1912
        %v1914 = vpop.f32.mrf.mxu0
        %v1915 = vadd.f32 0.0, %v1914
        %1916 = vmatprep.mubr.f32.mxu0 0.0
        %1917 = vmatmul.mubr.f32.gmra.mxu0 %v1535
        %v1918 = vpop.f32.mrf.mxu0
        %v1919 = vadd.f32 0.0, %v1918
        %v1920 = vpop.f32.mrf.mxu0
        %v1921 = vadd.f32 0.0, %v1920
        %1922 = vmatprep.mubr.f32.mxu0 0.0
        %1923 = vmatmul.mubr.f32.gmra.mxu0 %v1538
        %v1924 = vpop.f32.mrf.mxu0
        %v1925 = vadd.f32 0.0, %v1924
        %v1926 = vpop.f32.mrf.mxu0
        %v1927 = vadd.f32 0.0, %v1926
        %1928 = vmatprep.mubr.f32.mxu0 0.0
        %1929 = vmatmul.mubr.f32.gmra.mxu0 %v1541
        %v1930 = vpop.f32.mrf.mxu0
        %v1931 = vadd.f32 0.0, %v1930
        %v1932 = vpop.f32.mrf.mxu0
        %v1933 = vadd.f32 0.0, %v1932
        %1934 = vmatprep.mubr.f32.mxu0 0.0
        %1935 = vmatmul.mubr.f32.gmra.mxu0 %v1544
        %v1936 = vpop.f32.mrf.mxu0
        %v1937 = vadd.f32 0.0, %v1936
        %v1938 = vpop.f32.mrf.mxu0
        %v1939 = vadd.f32 0.0, %v1938
        %1940 = vmatprep.mubr.f32.mxu0 0.0
        %1941 = vmatmul.mubr.f32.gmra.mxu0 %v1547
        %v1942 = vpop.f32.mrf.mxu0
        %v1943 = vadd.f32 0.0, %v1942
        %v1944 = vpop.f32.mrf.mxu0
        %v1945 = vadd.f32 0.0, %v1944
        %1946 = vmatprep.mubr.f32.mxu0 0.0
        %1947 = vmatmul.mubr.f32.gmra.mxu0 %v1550
        %v1948 = vpop.f32.mrf.mxu0
        %v1949 = vadd.f32 0.0, %v1948
        %v1950 = vpop.f32.mrf.mxu0
        %v1951 = vadd.f32 0.0, %v1950
        %1952 = vmatprep.mubr.f32.mxu0 0.0
        %1953 = vmatmul.mubr.f32.gmra.mxu0 %v1553
        %v1954 = vpop.f32.mrf.mxu0
        %v1955 = vadd.f32 0.0, %v1954
        %v1956 = vpop.f32.mrf.mxu0
        %v1957 = vadd.f32 0.0, %v1956
        %1958 = vmatprep.mubr.f32.mxu0 0.0
        %1959 = vmatmul.mubr.f32.gmra.mxu0 %v1556
        %v1960 = vpop.f32.mrf.mxu0
        %v1961 = vadd.f32 0.0, %v1960
        %v1962 = vpop.f32.mrf.mxu0
        %v1963 = vadd.f32 0.0, %v1962
        %1964 = vmatprep.mubr.f32.mxu0 0.0
        %1965 = vmatmul.mubr.f32.gmra.mxu0 %v1559
        %v1966 = vpop.f32.mrf.mxu0
        %v1967 = vadd.f32 0.0, %v1966
        %v1968 = vpop.f32.mrf.mxu0
        %v1969 = vadd.f32 0.0, %v1968
        %1970 = vmatprep.mubr.f32.mxu0 0.0
        %1971 = vmatmul.mubr.f32.gmra.mxu0 %v1562
        %v1972 = vpop.f32.mrf.mxu0
        %v1973 = vadd.f32 0.0, %v1972
        %v1974 = vpop.f32.mrf.mxu0
        %v1975 = vadd.f32 0.0, %v1974
        %1976 = vmatprep.mubr.f32.mxu0 0.0
        %1977 = vmatmul.mubr.f32.gmra.mxu0 %v1565
        %v1978 = vpop.f32.mrf.mxu0
        %v1979 = vadd.f32 0.0, %v1978
        %v1980 = vpop.f32.mrf.mxu0
        %v1981 = vadd.f32 0.0, %v1980
        %1982 = vmatprep.mubr.f32.mxu0 0.0
        %1983 = vmatmul.mubr.f32.gmra.mxu0 %v1568
        %v1984 = vpop.f32.mrf.mxu0
        %v1985 = vadd.f32 0.0, %v1984
        %v1986 = vpop.f32.mrf.mxu0
        %v1987 = vadd.f32 0.0, %v1986
        %1988 = vmatprep.mubr.f32.mxu0 0.0
        %1989 = vmatmul.mubr.f32.gmra.mxu0 %v1571
        %v1990 = vpop.f32.mrf.mxu0
        %v1991 = vadd.f32 0.0, %v1990
        %v1992 = vpop.f32.mrf.mxu0
        %v1993 = vadd.f32 0.0, %v1992
        %1994 = vmatprep.mubr.f32.mxu0 0.0
        %1995 = vmatmul.mubr.f32.gmra.mxu0 %v1574
        %v1996 = vpop.f32.mrf.mxu0
        %v1997 = vadd.f32 0.0, %v1996
        %v1998 = vpop.f32.mrf.mxu0
        %v1999 = vadd.f32 0.0, %v1998
        %2000 = vmatprep.mubr.f32.mxu0 0.0
        %2001 = vmatmul.mubr.f32.gmra.mxu0 %v1577
        %v2002 = vpop.f32.mrf.mxu0
        %v2003 = vadd.f32 0.0, %v2002
        %v2004 = vpop.f32.mrf.mxu0
        %v2005 = vadd.f32 0.0, %v2004
        %2006 = vmatprep.mubr.f32.mxu0 0.0
        %2007 = vmatmul.mubr.f32.gmra.mxu0 %v1580
        %v2008 = vpop.f32.mrf.mxu0
        %v2009 = vadd.f32 0.0, %v2008
        %v2010 = vpop.f32.mrf.mxu0
        %v2011 = vadd.f32 0.0, %v2010
        %2012 = vmatprep.mubr.f32.mxu0 0.0
        %2013 = vmatmul.mubr.f32.gmra.mxu0 %v1583
        %v2014 = vpop.f32.mrf.mxu0
        %v2015 = vadd.f32 0.0, %v2014
        %v2016 = vpop.f32.mrf.mxu0
        %v2017 = vadd.f32 0.0, %v2016
        %2018 = vmatprep.mubr.f32.mxu0 0.0
        %2019 = vmatmul.mubr.f32.gmra.mxu0 %v1586
        %v2020 = vpop.f32.mrf.mxu0
        %v2021 = vadd.f32 0.0, %v2020
        %v2022 = vpop.f32.mrf.mxu0
        %v2023 = vadd.f32 0.0, %v2022
        %2024 = vmatprep.mubr.f32.mxu0 0.0
        %2025 = vmatmul.mubr.f32.gmra.mxu0 %v1589
        %v2026 = vpop.f32.mrf.mxu0
        %v2027 = vadd.f32 0.0, %v2026
        %v2028 = vpop.f32.mrf.mxu0
        %v2029 = vadd.f32 0.0, %v2028
        %2030 = vmatprep.mubr.f32.mxu0 0.0
        %2031 = vmatmul.mubr.f32.gmra.mxu0 %v1592
        %v2032 = vpop.f32.mrf.mxu0
        %v2033 = vadd.f32 0.0, %v2032
        %v2034 = vpop.f32.mrf.mxu0
        %v2035 = vadd.f32 0.0, %v2034
        %2036 = vmatprep.mubr.f32.mxu0 0.0
        %2037 = vmatmul.mubr.f32.gmra.mxu0 %v1595
        %v2038 = vpop.f32.mrf.mxu0
        %v2039 = vadd.f32 0.0, %v2038
        %v2040 = vpop.f32.mrf.mxu0
        %v2041 = vadd.f32 0.0, %v2040
        %2042 = vmatprep.mubr.f32.mxu0 0.0
        %2043 = vmatmul.mubr.f32.gmra.mxu0 %v1598
        %v2044 = vpop.f32.mrf.mxu0
        %v2045 = vadd.f32 0.0, %v2044
        %v2046 = vpop.f32.mrf.mxu0
        %v2047 = vadd.f32 0.0, %v2046
        %2048 = vmatprep.mubr.f32.mxu0 0.0
        %2049 = vmatmul.mubr.f32.gmra.mxu0 %v1601
        %v2050 = vpop.f32.mrf.mxu0
        %v2051 = vadd.f32 0.0, %v2050
        %v2052 = vpop.f32.mrf.mxu0
        %v2053 = vadd.f32 0.0, %v2052
        %2054 = vmatprep.mubr.f32.mxu0 0.0
        %2055 = vmatmul.mubr.f32.gmra.mxu0 %v1604
        %v2056 = vpop.f32.mrf.mxu0
        %v2057 = vadd.f32 0.0, %v2056
        %v2058 = vpop.f32.mrf.mxu0
        %v2059 = vadd.f32 0.0, %v2058
        %2060 = vmatprep.mubr.f32.mxu0 0.0
        %2061 = vmatmul.mubr.f32.gmra.mxu0 %v1607
        %v2062 = vpop.f32.mrf.mxu0
        %v2063 = vadd.f32 0.0, %v2062
        %v2064 = vpop.f32.mrf.mxu0
        %v2065 = vadd.f32 0.0, %v2064
        %2066 = vmatprep.mubr.f32.mxu0 0.0
        %2067 = vmatmul.mubr.f32.gmra.mxu0 %v1610
        %v2068 = vpop.f32.mrf.mxu0
        %v2069 = vadd.f32 0.0, %v2068
        %v2070 = vpop.f32.mrf.mxu0
        %v2071 = vadd.f32 0.0, %v2070
        %2072 = vmatprep.mubr.f32.mxu0 0.0
        %2073 = vmatmul.mubr.f32.gmra.mxu0 %v1613
        %v2074 = vpop.f32.mrf.mxu0
        %v2075 = vadd.f32 0.0, %v2074
        %v2076 = vpop.f32.mrf.mxu0
        %v2077 = vadd.f32 0.0, %v2076
        %2078 = vmatprep.mubr.f32.mxu0 0.0
        %2079 = vmatmul.mubr.f32.gmra.mxu0 %v1616
        %v2080 = vpop.f32.mrf.mxu0
        %v2081 = vadd.f32 0.0, %v2080
        %v2082 = vpop.f32.mrf.mxu0
        %v2083 = vadd.f32 0.0, %v2082
        %2084 = vmatprep.mubr.f32.mxu0 0.0
        %2085 = vmatmul.mubr.f32.gmra.mxu0 %v1619
        %v2086 = vpop.f32.mrf.mxu0
        %v2087 = vadd.f32 0.0, %v2086
        %v2088 = vpop.f32.mrf.mxu0
        %v2089 = vadd.f32 0.0, %v2088
        %2090 = vmatprep.mubr.f32.mxu0 0.0
        %2091 = vmatmul.mubr.f32.gmra.mxu0 %v1622
        %v2092 = vpop.f32.mrf.mxu0
        %v2093 = vadd.f32 0.0, %v2092
        %v2094 = vpop.f32.mrf.mxu0
        %v2095 = vadd.f32 0.0, %v2094
        %2096 = vmatprep.mubr.f32.mxu0 0.0
        %2097 = vmatmul.mubr.f32.gmra.mxu0 %v1625
        %v2098 = vpop.f32.mrf.mxu0
        %v2099 = vadd.f32 0.0, %v2098
        %v2100 = vpop.f32.mrf.mxu0
        %v2101 = vadd.f32 0.0, %v2100
        %2102 = vmatprep.mubr.f32.mxu0 0.0
        %2103 = vmatmul.mubr.f32.gmra.mxu0 %v1628
        %v2104 = vpop.f32.mrf.mxu0
        %v2105 = vadd.f32 0.0, %v2104
        %v2106 = vpop.f32.mrf.mxu0
        %v2107 = vadd.f32 0.0, %v2106
        %2108 = vmatprep.mubr.f32.mxu0 0.0
        %2109 = vmatmul.mubr.f32.gmra.mxu0 %v1631
        %v2110 = vpop.f32.mrf.mxu0
        %v2111 = vadd.f32 0.0, %v2110
        %v2112 = vpop.f32.mrf.mxu0
        %v2113 = vadd.f32 0.0, %v2112
        %2114 = vmatprep.mubr.f32.mxu0 0.0
        %2115 = vmatmul.mubr.f32.gmra.mxu0 %v1634
        %v2116 = vpop.f32.mrf.mxu0
        %v2117 = vadd.f32 0.0, %v2116
        %v2118 = vpop.f32.mrf.mxu0
        %v2119 = vadd.f32 0.0, %v2118
        %2120 = vmatprep.mubr.f32.mxu0 0.0
        %2121 = vmatmul.mubr.f32.gmra.mxu0 %v1637
        %v2122 = vpop.f32.mrf.mxu0
        %v2123 = vadd.f32 0.0, %v2122
        %v2124 = vpop.f32.mrf.mxu0
        %v2125 = vadd.f32 0.0, %v2124
        %2126 = vmatprep.mubr.f32.mxu0 0.0
        %2127 = vmatmul.mubr.f32.gmra.mxu0 %v1640
        %v2128 = vpop.f32.mrf.mxu0
        %v2129 = vadd.f32 0.0, %v2128
        %v2130 = vpop.f32.mrf.mxu0
        %v2131 = vadd.f32 0.0, %v2130
        %2132 = vmatprep.mubr.f32.mxu0 0.0
        %2133 = vmatmul.mubr.f32.gmra.mxu0 %v1643
        %v2134 = vpop.f32.mrf.mxu0
        %v2135 = vadd.f32 0.0, %v2134
        %v2136 = vpop.f32.mrf.mxu0
        %v2137 = vadd.f32 0.0, %v2136
        %2138 = vmatprep.mubr.f32.mxu0 0.0
        %2139 = vmatmul.mubr.f32.gmra.mxu0 %v1646
        %v2140 = vpop.f32.mrf.mxu0
        %v2141 = vadd.f32 0.0, %v2140
        %v2142 = vpop.f32.mrf.mxu0
        %v2143 = vadd.f32 0.0, %v2142
        %2144 = vdwg.mxu0
        %2145 = vmatprep.subr.mxu0 0.0
        %2146 = vmatpush1.xpose.msra.mxu0 %v1790
        %2147 = vmatprep.subr.mxu0 0.0
        %2148 = vmatpush1.xpose.msra.mxu0 %v1787
        %2149 = vmatprep.subr.mxu0 0.0
        %2150 = vmatpush1.xpose.msra.mxu0 %v1784
        %2151 = vmatprep.subr.mxu0 0.0
        %2152 = vmatpush1.xpose.msra.mxu0 %v1781
        %2153 = vmatprep.subr.mxu0 0.0
        %2154 = vmatpush1.xpose.msra.mxu0 %v1778
        %2155 = vmatprep.subr.mxu0 0.0
        %2156 = vmatpush1.xpose.msra.mxu0 %v1775
        %2157 = vmatprep.subr.mxu0 0.0
        %2158 = vmatpush1.xpose.msra.mxu0 %v1772
        %2159 = vmatprep.subr.mxu0 0.0
        %2160 = vmatpush1.xpose.msra.mxu0 %v1769
        %2161 = vmatprep.subr.mxu0 0.0
        %2162 = vmatpush1.xpose.msra.mxu0 %v1766
        %2163 = vmatprep.subr.mxu0 0.0
        %2164 = vmatpush1.xpose.msra.mxu0 %v1763
        %2165 = vmatprep.subr.mxu0 0.0
        %2166 = vmatpush1.xpose.msra.mxu0 %v1760
        %2167 = vmatprep.subr.mxu0 0.0
        %2168 = vmatpush1.xpose.msra.mxu0 %v1757
        %2169 = vmatprep.subr.mxu0 0.0
        %2170 = vmatpush1.xpose.msra.mxu0 %v1754
        %2171 = vmatprep.subr.mxu0 0.0
        %2172 = vmatpush1.xpose.msra.mxu0 %v1751
        %2173 = vmatprep.subr.mxu0 0.0
        %2174 = vmatpush1.xpose.msra.mxu0 %v1748
        %2175 = vmatprep.subr.mxu0 0.0
        %2176 = vmatpush1.xpose.msra.mxu0 %v1745
        %2177 = vmatprep.subr.mxu0 0.0
        %2178 = vmatpush2.xpose.msra.mxu0 0.0
        %2179 = vmatprep.subr.mxu0 0.0
        %2180 = vmatpush2.xpose.msra.mxu0 0.0
        %2181 = vmatprep.subr.mxu0 0.0
        %2182 = vmatpush2.xpose.msra.mxu0 0.0
        %2183 = vmatprep.subr.mxu0 0.0
        %2184 = vmatpush2.xpose.msra.mxu0 0.0
        %2185 = vmatprep.subr.mxu0 0.0
        %2186 = vmatpush2.xpose.msra.mxu0 0.0
        %2187 = vmatprep.subr.mxu0 0.0
        %2188 = vmatpush2.xpose.msra.mxu0 0.0
        %2189 = vmatprep.subr.mxu0 0.0
        %2190 = vmatpush2.xpose.msra.mxu0 0.0
        %2191 = vmatprep.subr.mxu0 0.0
        %2192 = vmatpush2.xpose.msra.mxu0 0.0
        %2193 = vmatprep.subr.mxu0 0.0
        %2194 = vmatpush2.xpose.msra.mxu0 0.0
        %2195 = vmatprep.subr.mxu0 0.0
        %2196 = vmatpush2.xpose.msra.mxu0 0.0
        %2197 = vmatprep.subr.mxu0 0.0
        %2198 = vmatpush2.xpose.msra.mxu0 0.0
        %2199 = vmatprep.subr.mxu0 0.0
        %2200 = vmatpush2.xpose.msra.mxu0 0.0
        %2201 = vmatprep.subr.mxu0 0.0
        %2202 = vmatpush2.xpose.msra.mxu0 0.0
        %2203 = vmatprep.subr.mxu0 0.0
        %2204 = vmatpush2.xpose.msra.mxu0 0.0
        %2205 = vmatprep.subr.mxu0 0.0
        %2206 = vmatpush2.xpose.msra.mxu0 0.0
        %2207 = vmatprep.subr.mxu0 0.0
        %2208 = vmatpush2.xpose.msra.mxu0 0.0
        %2209 = vmatprep.mubr.f32.mxu0 0.0
        %2210 = vmatmul.mubr.f32.gmra.mxu0 %v1505
        %v2211 = vpop.f32.mrf.mxu0
        %v2212 = vadd.f32 0.0, %v2211
        %v2213 = vpop.f32.mrf.mxu0
        %2214 = vmatprep.mubr.f32.mxu0 0.0
        %2215 = vmatmul.mubr.f32.gmra.mxu0 %v1508
        %v2216 = vpop.f32.mrf.mxu0
        %v2217 = vadd.f32 0.0, %v2216
        %v2218 = vpop.f32.mrf.mxu0
        %2219 = vmatprep.mubr.f32.mxu0 0.0
        %2220 = vmatmul.mubr.f32.gmra.mxu0 %v1511
        %v2221 = vpop.f32.mrf.mxu0
        %v2222 = vadd.f32 0.0, %v2221
        %v2223 = vpop.f32.mrf.mxu0
        %2224 = vmatprep.mubr.f32.mxu0 0.0
        %2225 = vmatmul.mubr.f32.gmra.mxu0 %v1514
        %v2226 = vpop.f32.mrf.mxu0
        %v2227 = vadd.f32 0.0, %v2226
        %v2228 = vpop.f32.mrf.mxu0
        %2229 = vmatprep.mubr.f32.mxu0 0.0
        %2230 = vmatmul.mubr.f32.gmra.mxu0 %v1517
        %v2231 = vpop.f32.mrf.mxu0
        %v2232 = vadd.f32 0.0, %v2231
        %v2233 = vpop.f32.mrf.mxu0
        %2234 = vmatprep.mubr.f32.mxu0 0.0
        %2235 = vmatmul.mubr.f32.gmra.mxu0 %v1520
        %v2236 = vpop.f32.mrf.mxu0
        %v2237 = vadd.f32 0.0, %v2236
        %v2238 = vpop.f32.mrf.mxu0
        %2239 = vmatprep.mubr.f32.mxu0 0.0
        %2240 = vmatmul.mubr.f32.gmra.mxu0 %v1523
        %v2241 = vpop.f32.mrf.mxu0
        %v2242 = vadd.f32 0.0, %v2241
        %v2243 = vpop.f32.mrf.mxu0
        %2244 = vmatprep.mubr.f32.mxu0 0.0
        %2245 = vmatmul.mubr.f32.gmra.mxu0 %v1526
        %v2246 = vpop.f32.mrf.mxu0
        %v2247 = vadd.f32 0.0, %v2246
        %v2248 = vpop.f32.mrf.mxu0
        %2249 = vmatprep.mubr.f32.mxu0 0.0
        %2250 = vmatmul.mubr.f32.gmra.mxu0 %v1529
        %v2251 = vpop.f32.mrf.mxu0
        %v2252 = vadd.f32 0.0, %v2251
        %v2253 = vpop.f32.mrf.mxu0
        %2254 = vmatprep.mubr.f32.mxu0 0.0
        %2255 = vmatmul.mubr.f32.gmra.mxu0 %v1532
        %v2256 = vpop.f32.mrf.mxu0
        %v2257 = vadd.f32 0.0, %v2256
        %v2258 = vpop.f32.mrf.mxu0
        %2259 = vmatprep.mubr.f32.mxu0 0.0
        %2260 = vmatmul.mubr.f32.gmra.mxu0 %v1535
        %v2261 = vpop.f32.mrf.mxu0
        %v2262 = vadd.f32 0.0, %v2261
        %v2263 = vpop.f32.mrf.mxu0
        %2264 = vmatprep.mubr.f32.mxu0 0.0
        %2265 = vmatmul.mubr.f32.gmra.mxu0 %v1538
        %v2266 = vpop.f32.mrf.mxu0
        %v2267 = vadd.f32 0.0, %v2266
        %v2268 = vpop.f32.mrf.mxu0
        %2269 = vmatprep.mubr.f32.mxu0 0.0
        %2270 = vmatmul.mubr.f32.gmra.mxu0 %v1541
        %v2271 = vpop.f32.mrf.mxu0
        %v2272 = vadd.f32 0.0, %v2271
        %v2273 = vpop.f32.mrf.mxu0
        %2274 = vmatprep.mubr.f32.mxu0 0.0
        %2275 = vmatmul.mubr.f32.gmra.mxu0 %v1544
        %v2276 = vpop.f32.mrf.mxu0
        %v2277 = vadd.f32 0.0, %v2276
        %v2278 = vpop.f32.mrf.mxu0
        %2279 = vmatprep.mubr.f32.mxu0 0.0
        %2280 = vmatmul.mubr.f32.gmra.mxu0 %v1547
        %v2281 = vpop.f32.mrf.mxu0
        %v2282 = vadd.f32 0.0, %v2281
        %v2283 = vpop.f32.mrf.mxu0
        %2284 = vmatprep.mubr.f32.mxu0 0.0
        %2285 = vmatmul.mubr.f32.gmra.mxu0 %v1550
        %v2286 = vpop.f32.mrf.mxu0
        %v2287 = vadd.f32 0.0, %v2286
        %v2288 = vpop.f32.mrf.mxu0
        %2289 = vmatprep.mubr.f32.mxu0 0.0
        %2290 = vmatmul.mubr.f32.gmra.mxu0 %v1553
        %v2291 = vpop.f32.mrf.mxu0
        %v2292 = vadd.f32 0.0, %v2291
        %v2293 = vpop.f32.mrf.mxu0
        %2294 = vmatprep.mubr.f32.mxu0 0.0
        %2295 = vmatmul.mubr.f32.gmra.mxu0 %v1556
        %v2296 = vpop.f32.mrf.mxu0
        %v2297 = vadd.f32 0.0, %v2296
        %v2298 = vpop.f32.mrf.mxu0
        %2299 = vmatprep.mubr.f32.mxu0 0.0
        %2300 = vmatmul.mubr.f32.gmra.mxu0 %v1559
        %v2301 = vpop.f32.mrf.mxu0
        %v2302 = vadd.f32 0.0, %v2301
        %v2303 = vpop.f32.mrf.mxu0
        %2304 = vmatprep.mubr.f32.mxu0 0.0
        %2305 = vmatmul.mubr.f32.gmra.mxu0 %v1562
        %v2306 = vpop.f32.mrf.mxu0
        %v2307 = vadd.f32 0.0, %v2306
        %v2308 = vpop.f32.mrf.mxu0
        %2309 = vmatprep.mubr.f32.mxu0 0.0
        %2310 = vmatmul.mubr.f32.gmra.mxu0 %v1565
        %v2311 = vpop.f32.mrf.mxu0
        %v2312 = vadd.f32 0.0, %v2311
        %v2313 = vpop.f32.mrf.mxu0
        %2314 = vmatprep.mubr.f32.mxu0 0.0
        %2315 = vmatmul.mubr.f32.gmra.mxu0 %v1568
        %v2316 = vpop.f32.mrf.mxu0
        %v2317 = vadd.f32 0.0, %v2316
        %v2318 = vpop.f32.mrf.mxu0
        %2319 = vmatprep.mubr.f32.mxu0 0.0
        %2320 = vmatmul.mubr.f32.gmra.mxu0 %v1571
        %v2321 = vpop.f32.mrf.mxu0
        %v2322 = vadd.f32 0.0, %v2321
        %v2323 = vpop.f32.mrf.mxu0
        %2324 = vmatprep.mubr.f32.mxu0 0.0
        %2325 = vmatmul.mubr.f32.gmra.mxu0 %v1574
        %v2326 = vpop.f32.mrf.mxu0
        %v2327 = vadd.f32 0.0, %v2326
        %v2328 = vpop.f32.mrf.mxu0
        %2329 = vmatprep.mubr.f32.mxu0 0.0
        %2330 = vmatmul.mubr.f32.gmra.mxu0 %v1577
        %v2331 = vpop.f32.mrf.mxu0
        %v2332 = vadd.f32 0.0, %v2331
        %v2333 = vpop.f32.mrf.mxu0
        %2334 = vmatprep.mubr.f32.mxu0 0.0
        %2335 = vmatmul.mubr.f32.gmra.mxu0 %v1580
        %v2336 = vpop.f32.mrf.mxu0
        %v2337 = vadd.f32 0.0, %v2336
        %v2338 = vpop.f32.mrf.mxu0
        %2339 = vmatprep.mubr.f32.mxu0 0.0
        %2340 = vmatmul.mubr.f32.gmra.mxu0 %v1583
        %v2341 = vpop.f32.mrf.mxu0
        %v2342 = vadd.f32 0.0, %v2341
        %v2343 = vpop.f32.mrf.mxu0
        %2344 = vmatprep.mubr.f32.mxu0 0.0
        %2345 = vmatmul.mubr.f32.gmra.mxu0 %v1586
        %v2346 = vpop.f32.mrf.mxu0
        %v2347 = vadd.f32 0.0, %v2346
        %v2348 = vpop.f32.mrf.mxu0
        %2349 = vmatprep.mubr.f32.mxu0 0.0
        %2350 = vmatmul.mubr.f32.gmra.mxu0 %v1589
        %v2351 = vpop.f32.mrf.mxu0
        %v2352 = vadd.f32 0.0, %v2351
        %v2353 = vpop.f32.mrf.mxu0
        %2354 = vmatprep.mubr.f32.mxu0 0.0
        %2355 = vmatmul.mubr.f32.gmra.mxu0 %v1592
        %v2356 = vpop.f32.mrf.mxu0
        %v2357 = vadd.f32 0.0, %v2356
        %v2358 = vpop.f32.mrf.mxu0
        %2359 = vmatprep.mubr.f32.mxu0 0.0
        %2360 = vmatmul.mubr.f32.gmra.mxu0 %v1595
        %v2361 = vpop.f32.mrf.mxu0
        %v2362 = vadd.f32 0.0, %v2361
        %v2363 = vpop.f32.mrf.mxu0
        %2364 = vmatprep.mubr.f32.mxu0 0.0
        %2365 = vmatmul.mubr.f32.gmra.mxu0 %v1598
        %v2366 = vpop.f32.mrf.mxu0
        %v2367 = vadd.f32 0.0, %v2366
        %v2368 = vpop.f32.mrf.mxu0
        %2369 = vmatprep.mubr.f32.mxu0 0.0
        %2370 = vmatmul.mubr.f32.gmra.mxu0 %v1601
        %v2371 = vpop.f32.mrf.mxu0
        %v2372 = vadd.f32 0.0, %v2371
        %v2373 = vpop.f32.mrf.mxu0
        %2374 = vmatprep.mubr.f32.mxu0 0.0
        %2375 = vmatmul.mubr.f32.gmra.mxu0 %v1604
        %v2376 = vpop.f32.mrf.mxu0
        %v2377 = vadd.f32 0.0, %v2376
        %v2378 = vpop.f32.mrf.mxu0
        %2379 = vmatprep.mubr.f32.mxu0 0.0
        %2380 = vmatmul.mubr.f32.gmra.mxu0 %v1607
        %v2381 = vpop.f32.mrf.mxu0
        %v2382 = vadd.f32 0.0, %v2381
        %v2383 = vpop.f32.mrf.mxu0
        %2384 = vmatprep.mubr.f32.mxu0 0.0
        %2385 = vmatmul.mubr.f32.gmra.mxu0 %v1610
        %v2386 = vpop.f32.mrf.mxu0
        %v2387 = vadd.f32 0.0, %v2386
        %v2388 = vpop.f32.mrf.mxu0
        %2389 = vmatprep.mubr.f32.mxu0 0.0
        %2390 = vmatmul.mubr.f32.gmra.mxu0 %v1613
        %v2391 = vpop.f32.mrf.mxu0
        %v2392 = vadd.f32 0.0, %v2391
        %v2393 = vpop.f32.mrf.mxu0
        %2394 = vmatprep.mubr.f32.mxu0 0.0
        %2395 = vmatmul.mubr.f32.gmra.mxu0 %v1616
        %v2396 = vpop.f32.mrf.mxu0
        %v2397 = vadd.f32 0.0, %v2396
        %v2398 = vpop.f32.mrf.mxu0
        %2399 = vmatprep.mubr.f32.mxu0 0.0
        %2400 = vmatmul.mubr.f32.gmra.mxu0 %v1619
        %v2401 = vpop.f32.mrf.mxu0
        %v2402 = vadd.f32 0.0, %v2401
        %v2403 = vpop.f32.mrf.mxu0
        %2404 = vmatprep.mubr.f32.mxu0 0.0
        %2405 = vmatmul.mubr.f32.gmra.mxu0 %v1622
        %v2406 = vpop.f32.mrf.mxu0
        %v2407 = vadd.f32 0.0, %v2406
        %v2408 = vpop.f32.mrf.mxu0
        %2409 = vmatprep.mubr.f32.mxu0 0.0
        %2410 = vmatmul.mubr.f32.gmra.mxu0 %v1625
        %v2411 = vpop.f32.mrf.mxu0
        %v2412 = vadd.f32 0.0, %v2411
        %v2413 = vpop.f32.mrf.mxu0
        %2414 = vmatprep.mubr.f32.mxu0 0.0
        %2415 = vmatmul.mubr.f32.gmra.mxu0 %v1628
        %v2416 = vpop.f32.mrf.mxu0
        %v2417 = vadd.f32 0.0, %v2416
        %v2418 = vpop.f32.mrf.mxu0
        %2419 = vmatprep.mubr.f32.mxu0 0.0
        %2420 = vmatmul.mubr.f32.gmra.mxu0 %v1631
        %v2421 = vpop.f32.mrf.mxu0
        %v2422 = vadd.f32 0.0, %v2421
        %v2423 = vpop.f32.mrf.mxu0
        %2424 = vmatprep.mubr.f32.mxu0 0.0
        %2425 = vmatmul.mubr.f32.gmra.mxu0 %v1634
        %v2426 = vpop.f32.mrf.mxu0
        %v2427 = vadd.f32 0.0, %v2426
        %v2428 = vpop.f32.mrf.mxu0
        %2429 = vmatprep.mubr.f32.mxu0 0.0
        %2430 = vmatmul.mubr.f32.gmra.mxu0 %v1637
        %v2431 = vpop.f32.mrf.mxu0
        %v2432 = vadd.f32 0.0, %v2431
        %v2433 = vpop.f32.mrf.mxu0
        %2434 = vmatprep.mubr.f32.mxu0 0.0
        %2435 = vmatmul.mubr.f32.gmra.mxu0 %v1640
        %v2436 = vpop.f32.mrf.mxu0
        %v2437 = vadd.f32 0.0, %v2436
        %v2438 = vpop.f32.mrf.mxu0
        %2439 = vmatprep.mubr.f32.mxu0 0.0
        %2440 = vmatmul.mubr.f32.gmra.mxu0 %v1643
        %v2441 = vpop.f32.mrf.mxu0
        %v2442 = vadd.f32 0.0, %v2441
        %v2443 = vpop.f32.mrf.mxu0
        %2444 = vmatprep.mubr.f32.mxu0 0.0
        %2445 = vmatmul.mubr.f32.gmra.mxu0 %v1646
        %v2446 = vpop.f32.mrf.mxu0
        %v2447 = vadd.f32 0.0, %v2446
        %v2448 = vpop.f32.mrf.mxu0
        %2449 = vdwg.mxu0
        %v2451 = vsel %vm557, %v269, 0
        %v2454 = vsel %vm557, %v270, 0
        %v2457 = vsel %vm557, %v271, 0
        %v2460 = vsel %vm557, %v272, 0
        %v2463 = vsel %vm557, %v273, 0
        %v2466 = vsel %vm557, %v274, 0
        %v2469 = vsel %vm557, %v275, 0
        %v2472 = vsel %vm557, %v276, 0
        %v2475 = vsel %vm557, %v277, 0
        %v2478 = vsel %vm557, %v278, 0
        %v2481 = vsel %vm557, %v279, 0
        %v2484 = vsel %vm557, %v280, 0
        %v2487 = vsel %vm557, %v281, 0
        %v2490 = vsel %vm557, %v282, 0
        %v2493 = vsel %vm557, %v283, 0
        %v2496 = vsel %vm557, %v284, 0
        %v2499 = vsel %vm557, %v285, 0
        %v2502 = vsel %vm557, %v286, 0
        %v2505 = vsel %vm557, %v287, 0
        %v2508 = vsel %vm557, %v288, 0
        %v2511 = vsel %vm557, %v289, 0
        %v2514 = vsel %vm557, %v290, 0
        %v2517 = vsel %vm557, %v291, 0
        %v2520 = vsel %vm557, %v292, 0
        %v2523 = vsel %vm557, %v293, 0
        %v2526 = vsel %vm557, %v294, 0
        %v2529 = vsel %vm557, %v295, 0
        %v2532 = vsel %vm557, %v296, 0
        %v2535 = vsel %vm557, %v297, 0
        %v2538 = vsel %vm557, %v298, 0
        %v2541 = vsel %vm557, %v299, 0
        %v2544 = vsel %vm557, %v300, 0
        %v2547 = vsel %vm557, %v301, 0
        %v2550 = vsel %vm557, %v302, 0
        %v2553 = vsel %vm557, %v303, 0
        %v2556 = vsel %vm557, %v304, 0
        %v2559 = vsel %vm557, %v305, 0
        %v2562 = vsel %vm557, %v306, 0
        %v2565 = vsel %vm557, %v307, 0
        %v2568 = vsel %vm557, %v308, 0
        %v2571 = vsel %vm557, %v309, 0
        %v2574 = vsel %vm557, %v310, 0
        %v2577 = vsel %vm557, %v311, 0
        %v2580 = vsel %vm557, %v312, 0
        %v2583 = vsel %vm557, %v313, 0
        %v2586 = vsel %vm557, %v314, 0
        %v2589 = vsel %vm557, %v315, 0
        %v2592 = vsel %vm557, %v316, 0
        %v2595 = vsel %vm557, %v461, 0
        %v2598 = vsel %vm557, %v462, 0
        %v2601 = vsel %vm557, %v463, 0
        %v2604 = vsel %vm557, %v464, 0
        %v2607 = vsel %vm557, %v465, 0
        %v2610 = vsel %vm557, %v466, 0
        %v2613 = vsel %vm557, %v467, 0
        %v2616 = vsel %vm557, %v468, 0
        %v2619 = vsel %vm557, %v469, 0
        %v2622 = vsel %vm557, %v470, 0
        %v2625 = vsel %vm557, %v471, 0
        %v2628 = vsel %vm557, %v472, 0
        %v2631 = vsel %vm557, %v473, 0
        %v2634 = vsel %vm557, %v474, 0
        %v2637 = vsel %vm557, %v475, 0
        %v2640 = vsel %vm557, %v476, 0
        %v2643 = vsel %vm557, %v477, 0
        %v2646 = vsel %vm557, %v478, 0
        %v2649 = vsel %vm557, %v479, 0
        %v2652 = vsel %vm557, %v480, 0
        %v2655 = vsel %vm557, %v481, 0
        %v2658 = vsel %vm557, %v482, 0
        %v2661 = vsel %vm557, %v483, 0
        %v2664 = vsel %vm557, %v484, 0
        %v2667 = vsel %vm557, %v485, 0
        %v2670 = vsel %vm557, %v486, 0
        %v2673 = vsel %vm557, %v487, 0
        %v2676 = vsel %vm557, %v488, 0
        %v2679 = vsel %vm557, %v489, 0
        %v2682 = vsel %vm557, %v490, 0
        %v2685 = vsel %vm557, %v491, 0
        %v2688 = vsel %vm557, %v492, 0
        %v2691 = vsel %vm557, %v493, 0
        %v2694 = vsel %vm557, %v494, 0
        %v2697 = vsel %vm557, %v495, 0
        %v2700 = vsel %vm557, %v496, 0
        %v2703 = vsel %vm557, %v497, 0
        %v2706 = vsel %vm557, %v498, 0
        %v2709 = vsel %vm557, %v499, 0
        %v2712 = vsel %vm557, %v500, 0
        %v2715 = vsel %vm557, %v501, 0
        %v2718 = vsel %vm557, %v502, 0
        %v2721 = vsel %vm557, %v503, 0
        %v2724 = vsel %vm557, %v504, 0
        %v2727 = vsel %vm557, %v505, 0
        %v2730 = vsel %vm557, %v506, 0
        %v2733 = vsel %vm557, %v507, 0
        %v2736 = vsel %vm557, %v508, 0
        %2738 = vmatprep.subr.mxu0 0.0
        %2739 = vmatpush1.xpose.msra.mxu0 %v2640
        %2740 = vmatprep.subr.mxu0 0.0
        %2741 = vmatpush1.xpose.msra.mxu0 %v2637
        %2742 = vmatprep.subr.mxu0 0.0
        %2743 = vmatpush1.xpose.msra.mxu0 %v2634
        %2744 = vmatprep.subr.mxu0 0.0
        %2745 = vmatpush1.xpose.msra.mxu0 %v2631
        %2746 = vmatprep.subr.mxu0 0.0
        %2747 = vmatpush1.xpose.msra.mxu0 %v2628
        %2748 = vmatprep.subr.mxu0 0.0
        %2749 = vmatpush1.xpose.msra.mxu0 %v2625
        %2750 = vmatprep.subr.mxu0 0.0
        %2751 = vmatpush1.xpose.msra.mxu0 %v2622
        %2752 = vmatprep.subr.mxu0 0.0
        %2753 = vmatpush1.xpose.msra.mxu0 %v2619
        %2754 = vmatprep.subr.mxu0 0.0
        %2755 = vmatpush1.xpose.msra.mxu0 %v2616
        %2756 = vmatprep.subr.mxu0 0.0
        %2757 = vmatpush1.xpose.msra.mxu0 %v2613
        %2758 = vmatprep.subr.mxu0 0.0
        %2759 = vmatpush1.xpose.msra.mxu0 %v2610
        %2760 = vmatprep.subr.mxu0 0.0
        %2761 = vmatpush1.xpose.msra.mxu0 %v2607
        %2762 = vmatprep.subr.mxu0 0.0
        %2763 = vmatpush1.xpose.msra.mxu0 %v2604
        %2764 = vmatprep.subr.mxu0 0.0
        %2765 = vmatpush1.xpose.msra.mxu0 %v2601
        %2766 = vmatprep.subr.mxu0 0.0
        %2767 = vmatpush1.xpose.msra.mxu0 %v2598
        %2768 = vmatprep.subr.mxu0 0.0
        %2769 = vmatpush1.xpose.msra.mxu0 %v2595
        %2770 = vmatprep.subr.mxu0 0.0
        %2771 = vmatpush2.xpose.msra.mxu0 %v2688
        %2772 = vmatprep.subr.mxu0 0.0
        %2773 = vmatpush2.xpose.msra.mxu0 %v2685
        %2774 = vmatprep.subr.mxu0 0.0
        %2775 = vmatpush2.xpose.msra.mxu0 %v2682
        %2776 = vmatprep.subr.mxu0 0.0
        %2777 = vmatpush2.xpose.msra.mxu0 %v2679
        %2778 = vmatprep.subr.mxu0 0.0
        %2779 = vmatpush2.xpose.msra.mxu0 %v2676
        %2780 = vmatprep.subr.mxu0 0.0
        %2781 = vmatpush2.xpose.msra.mxu0 %v2673
        %2782 = vmatprep.subr.mxu0 0.0
        %2783 = vmatpush2.xpose.msra.mxu0 %v2670
        %2784 = vmatprep.subr.mxu0 0.0
        %2785 = vmatpush2.xpose.msra.mxu0 %v2667
        %2786 = vmatprep.subr.mxu0 0.0
        %2787 = vmatpush2.xpose.msra.mxu0 %v2664
        %2788 = vmatprep.subr.mxu0 0.0
        %2789 = vmatpush2.xpose.msra.mxu0 %v2661
        %2790 = vmatprep.subr.mxu0 0.0
        %2791 = vmatpush2.xpose.msra.mxu0 %v2658
        %2792 = vmatprep.subr.mxu0 0.0
        %2793 = vmatpush2.xpose.msra.mxu0 %v2655
        %2794 = vmatprep.subr.mxu0 0.0
        %2795 = vmatpush2.xpose.msra.mxu0 %v2652
        %2796 = vmatprep.subr.mxu0 0.0
        %2797 = vmatpush2.xpose.msra.mxu0 %v2649
        %2798 = vmatprep.subr.mxu0 0.0
        %2799 = vmatpush2.xpose.msra.mxu0 %v2646
        %2800 = vmatprep.subr.mxu0 0.0
        %2801 = vmatpush2.xpose.msra.mxu0 %v2643
        %2802 = vmatprep.mubr.f32.mxu0 0.0
        %2803 = vmatmul.mubr.f32.gmra.mxu0 %v2451
        %v2804 = vpop.f32.mrf.mxu0
        %v2805 = vadd.f32 0.0, %v2804
        %v2806 = vpop.f32.mrf.mxu0
        %v2807 = vadd.f32 0.0, %v2806
        %2808 = vmatprep.mubr.f32.mxu0 0.0
        %2809 = vmatmul.mubr.f32.gmra.mxu0 %v2454
        %v2810 = vpop.f32.mrf.mxu0
        %v2811 = vadd.f32 0.0, %v2810
        %v2812 = vpop.f32.mrf.mxu0
        %v2813 = vadd.f32 0.0, %v2812
        %2814 = vmatprep.mubr.f32.mxu0 0.0
        %2815 = vmatmul.mubr.f32.gmra.mxu0 %v2457
        %v2816 = vpop.f32.mrf.mxu0
        %v2817 = vadd.f32 0.0, %v2816
        %v2818 = vpop.f32.mrf.mxu0
        %v2819 = vadd.f32 0.0, %v2818
        %2820 = vmatprep.mubr.f32.mxu0 0.0
        %2821 = vmatmul.mubr.f32.gmra.mxu0 %v2460
        %v2822 = vpop.f32.mrf.mxu0
        %v2823 = vadd.f32 0.0, %v2822
        %v2824 = vpop.f32.mrf.mxu0
        %v2825 = vadd.f32 0.0, %v2824
        %2826 = vmatprep.mubr.f32.mxu0 0.0
        %2827 = vmatmul.mubr.f32.gmra.mxu0 %v2463
        %v2828 = vpop.f32.mrf.mxu0
        %v2829 = vadd.f32 0.0, %v2828
        %v2830 = vpop.f32.mrf.mxu0
        %v2831 = vadd.f32 0.0, %v2830
        %2832 = vmatprep.mubr.f32.mxu0 0.0
        %2833 = vmatmul.mubr.f32.gmra.mxu0 %v2466
        %v2834 = vpop.f32.mrf.mxu0
        %v2835 = vadd.f32 0.0, %v2834
        %v2836 = vpop.f32.mrf.mxu0
        %v2837 = vadd.f32 0.0, %v2836
        %2838 = vmatprep.mubr.f32.mxu0 0.0
        %2839 = vmatmul.mubr.f32.gmra.mxu0 %v2469
        %v2840 = vpop.f32.mrf.mxu0
        %v2841 = vadd.f32 0.0, %v2840
        %v2842 = vpop.f32.mrf.mxu0
        %v2843 = vadd.f32 0.0, %v2842
        %2844 = vmatprep.mubr.f32.mxu0 0.0
        %2845 = vmatmul.mubr.f32.gmra.mxu0 %v2472
        %v2846 = vpop.f32.mrf.mxu0
        %v2847 = vadd.f32 0.0, %v2846
        %v2848 = vpop.f32.mrf.mxu0
        %v2849 = vadd.f32 0.0, %v2848
        %2850 = vmatprep.mubr.f32.mxu0 0.0
        %2851 = vmatmul.mubr.f32.gmra.mxu0 %v2475
        %v2852 = vpop.f32.mrf.mxu0
        %v2853 = vadd.f32 0.0, %v2852
        %v2854 = vpop.f32.mrf.mxu0
        %v2855 = vadd.f32 0.0, %v2854
        %2856 = vmatprep.mubr.f32.mxu0 0.0
        %2857 = vmatmul.mubr.f32.gmra.mxu0 %v2478
        %v2858 = vpop.f32.mrf.mxu0
        %v2859 = vadd.f32 0.0, %v2858
        %v2860 = vpop.f32.mrf.mxu0
        %v2861 = vadd.f32 0.0, %v2860
        %2862 = vmatprep.mubr.f32.mxu0 0.0
        %2863 = vmatmul.mubr.f32.gmra.mxu0 %v2481
        %v2864 = vpop.f32.mrf.mxu0
        %v2865 = vadd.f32 0.0, %v2864
        %v2866 = vpop.f32.mrf.mxu0
        %v2867 = vadd.f32 0.0, %v2866
        %2868 = vmatprep.mubr.f32.mxu0 0.0
        %2869 = vmatmul.mubr.f32.gmra.mxu0 %v2484
        %v2870 = vpop.f32.mrf.mxu0
        %v2871 = vadd.f32 0.0, %v2870
        %v2872 = vpop.f32.mrf.mxu0
        %v2873 = vadd.f32 0.0, %v2872
        %2874 = vmatprep.mubr.f32.mxu0 0.0
        %2875 = vmatmul.mubr.f32.gmra.mxu0 %v2487
        %v2876 = vpop.f32.mrf.mxu0
        %v2877 = vadd.f32 0.0, %v2876
        %v2878 = vpop.f32.mrf.mxu0
        %v2879 = vadd.f32 0.0, %v2878
        %2880 = vmatprep.mubr.f32.mxu0 0.0
        %2881 = vmatmul.mubr.f32.gmra.mxu0 %v2490
        %v2882 = vpop.f32.mrf.mxu0
        %v2883 = vadd.f32 0.0, %v2882
        %v2884 = vpop.f32.mrf.mxu0
        %v2885 = vadd.f32 0.0, %v2884
        %2886 = vmatprep.mubr.f32.mxu0 0.0
        %2887 = vmatmul.mubr.f32.gmra.mxu0 %v2493
        %v2888 = vpop.f32.mrf.mxu0
        %v2889 = vadd.f32 0.0, %v2888
        %v2890 = vpop.f32.mrf.mxu0
        %v2891 = vadd.f32 0.0, %v2890
        %2892 = vmatprep.mubr.f32.mxu0 0.0
        %2893 = vmatmul.mubr.f32.gmra.mxu0 %v2496
        %v2894 = vpop.f32.mrf.mxu0
        %v2895 = vadd.f32 0.0, %v2894
        %v2896 = vpop.f32.mrf.mxu0
        %v2897 = vadd.f32 0.0, %v2896
        %2898 = vmatprep.mubr.f32.mxu0 0.0
        %2899 = vmatmul.mubr.f32.gmra.mxu0 %v2499
        %v2900 = vpop.f32.mrf.mxu0
        %v2901 = vadd.f32 0.0, %v2900
        %v2902 = vpop.f32.mrf.mxu0
        %v2903 = vadd.f32 0.0, %v2902
        %2904 = vmatprep.mubr.f32.mxu0 0.0
        %2905 = vmatmul.mubr.f32.gmra.mxu0 %v2502
        %v2906 = vpop.f32.mrf.mxu0
        %v2907 = vadd.f32 0.0, %v2906
        %v2908 = vpop.f32.mrf.mxu0
        %v2909 = vadd.f32 0.0, %v2908
        %2910 = vmatprep.mubr.f32.mxu0 0.0
        %2911 = vmatmul.mubr.f32.gmra.mxu0 %v2505
        %v2912 = vpop.f32.mrf.mxu0
        %v2913 = vadd.f32 0.0, %v2912
        %v2914 = vpop.f32.mrf.mxu0
        %v2915 = vadd.f32 0.0, %v2914
        %2916 = vmatprep.mubr.f32.mxu0 0.0
        %2917 = vmatmul.mubr.f32.gmra.mxu0 %v2508
        %v2918 = vpop.f32.mrf.mxu0
        %v2919 = vadd.f32 0.0, %v2918
        %v2920 = vpop.f32.mrf.mxu0
        %v2921 = vadd.f32 0.0, %v2920
        %2922 = vmatprep.mubr.f32.mxu0 0.0
        %2923 = vmatmul.mubr.f32.gmra.mxu0 %v2511
        %v2924 = vpop.f32.mrf.mxu0
        %v2925 = vadd.f32 0.0, %v2924
        %v2926 = vpop.f32.mrf.mxu0
        %v2927 = vadd.f32 0.0, %v2926
        %2928 = vmatprep.mubr.f32.mxu0 0.0
        %2929 = vmatmul.mubr.f32.gmra.mxu0 %v2514
        %v2930 = vpop.f32.mrf.mxu0
        %v2931 = vadd.f32 0.0, %v2930
        %v2932 = vpop.f32.mrf.mxu0
        %v2933 = vadd.f32 0.0, %v2932
        %2934 = vmatprep.mubr.f32.mxu0 0.0
        %2935 = vmatmul.mubr.f32.gmra.mxu0 %v2517
        %v2936 = vpop.f32.mrf.mxu0
        %v2937 = vadd.f32 0.0, %v2936
        %v2938 = vpop.f32.mrf.mxu0
        %v2939 = vadd.f32 0.0, %v2938
        %2940 = vmatprep.mubr.f32.mxu0 0.0
        %2941 = vmatmul.mubr.f32.gmra.mxu0 %v2520
        %v2942 = vpop.f32.mrf.mxu0
        %v2943 = vadd.f32 0.0, %v2942
        %v2944 = vpop.f32.mrf.mxu0
        %v2945 = vadd.f32 0.0, %v2944
        %2946 = vmatprep.mubr.f32.mxu0 0.0
        %2947 = vmatmul.mubr.f32.gmra.mxu0 %v2523
        %v2948 = vpop.f32.mrf.mxu0
        %v2949 = vadd.f32 0.0, %v2948
        %v2950 = vpop.f32.mrf.mxu0
        %v2951 = vadd.f32 0.0, %v2950
        %2952 = vmatprep.mubr.f32.mxu0 0.0
        %2953 = vmatmul.mubr.f32.gmra.mxu0 %v2526
        %v2954 = vpop.f32.mrf.mxu0
        %v2955 = vadd.f32 0.0, %v2954
        %v2956 = vpop.f32.mrf.mxu0
        %v2957 = vadd.f32 0.0, %v2956
        %2958 = vmatprep.mubr.f32.mxu0 0.0
        %2959 = vmatmul.mubr.f32.gmra.mxu0 %v2529
        %v2960 = vpop.f32.mrf.mxu0
        %v2961 = vadd.f32 0.0, %v2960
        %v2962 = vpop.f32.mrf.mxu0
        %v2963 = vadd.f32 0.0, %v2962
        %2964 = vmatprep.mubr.f32.mxu0 0.0
        %2965 = vmatmul.mubr.f32.gmra.mxu0 %v2532
        %v2966 = vpop.f32.mrf.mxu0
        %v2967 = vadd.f32 0.0, %v2966
        %v2968 = vpop.f32.mrf.mxu0
        %v2969 = vadd.f32 0.0, %v2968
        %2970 = vmatprep.mubr.f32.mxu0 0.0
        %2971 = vmatmul.mubr.f32.gmra.mxu0 %v2535
        %v2972 = vpop.f32.mrf.mxu0
        %v2973 = vadd.f32 0.0, %v2972
        %v2974 = vpop.f32.mrf.mxu0
        %v2975 = vadd.f32 0.0, %v2974
        %2976 = vmatprep.mubr.f32.mxu0 0.0
        %2977 = vmatmul.mubr.f32.gmra.mxu0 %v2538
        %v2978 = vpop.f32.mrf.mxu0
        %v2979 = vadd.f32 0.0, %v2978
        %v2980 = vpop.f32.mrf.mxu0
        %v2981 = vadd.f32 0.0, %v2980
        %2982 = vmatprep.mubr.f32.mxu0 0.0
        %2983 = vmatmul.mubr.f32.gmra.mxu0 %v2541
        %v2984 = vpop.f32.mrf.mxu0
        %v2985 = vadd.f32 0.0, %v2984
        %v2986 = vpop.f32.mrf.mxu0
        %v2987 = vadd.f32 0.0, %v2986
        %2988 = vmatprep.mubr.f32.mxu0 0.0
        %2989 = vmatmul.mubr.f32.gmra.mxu0 %v2544
        %v2990 = vpop.f32.mrf.mxu0
        %v2991 = vadd.f32 0.0, %v2990
        %v2992 = vpop.f32.mrf.mxu0
        %v2993 = vadd.f32 0.0, %v2992
        %2994 = vmatprep.mubr.f32.mxu0 0.0
        %2995 = vmatmul.mubr.f32.gmra.mxu0 %v2547
        %v2996 = vpop.f32.mrf.mxu0
        %v2997 = vadd.f32 0.0, %v2996
        %v2998 = vpop.f32.mrf.mxu0
        %v2999 = vadd.f32 0.0, %v2998
        %3000 = vmatprep.mubr.f32.mxu0 0.0
        %3001 = vmatmul.mubr.f32.gmra.mxu0 %v2550
        %v3002 = vpop.f32.mrf.mxu0
        %v3003 = vadd.f32 0.0, %v3002
        %v3004 = vpop.f32.mrf.mxu0
        %v3005 = vadd.f32 0.0, %v3004
        %3006 = vmatprep.mubr.f32.mxu0 0.0
        %3007 = vmatmul.mubr.f32.gmra.mxu0 %v2553
        %v3008 = vpop.f32.mrf.mxu0
        %v3009 = vadd.f32 0.0, %v3008
        %v3010 = vpop.f32.mrf.mxu0
        %v3011 = vadd.f32 0.0, %v3010
        %3012 = vmatprep.mubr.f32.mxu0 0.0
        %3013 = vmatmul.mubr.f32.gmra.mxu0 %v2556
        %v3014 = vpop.f32.mrf.mxu0
        %v3015 = vadd.f32 0.0, %v3014
        %v3016 = vpop.f32.mrf.mxu0
        %v3017 = vadd.f32 0.0, %v3016
        %3018 = vmatprep.mubr.f32.mxu0 0.0
        %3019 = vmatmul.mubr.f32.gmra.mxu0 %v2559
        %v3020 = vpop.f32.mrf.mxu0
        %v3021 = vadd.f32 0.0, %v3020
        %v3022 = vpop.f32.mrf.mxu0
        %v3023 = vadd.f32 0.0, %v3022
        %3024 = vmatprep.mubr.f32.mxu0 0.0
        %3025 = vmatmul.mubr.f32.gmra.mxu0 %v2562
        %v3026 = vpop.f32.mrf.mxu0
        %v3027 = vadd.f32 0.0, %v3026
        %v3028 = vpop.f32.mrf.mxu0
        %v3029 = vadd.f32 0.0, %v3028
        %3030 = vmatprep.mubr.f32.mxu0 0.0
        %3031 = vmatmul.mubr.f32.gmra.mxu0 %v2565
        %v3032 = vpop.f32.mrf.mxu0
        %v3033 = vadd.f32 0.0, %v3032
        %v3034 = vpop.f32.mrf.mxu0
        %v3035 = vadd.f32 0.0, %v3034
        %3036 = vmatprep.mubr.f32.mxu0 0.0
        %3037 = vmatmul.mubr.f32.gmra.mxu0 %v2568
        %v3038 = vpop.f32.mrf.mxu0
        %v3039 = vadd.f32 0.0, %v3038
        %v3040 = vpop.f32.mrf.mxu0
        %v3041 = vadd.f32 0.0, %v3040
        %3042 = vmatprep.mubr.f32.mxu0 0.0
        %3043 = vmatmul.mubr.f32.gmra.mxu0 %v2571
        %v3044 = vpop.f32.mrf.mxu0
        %v3045 = vadd.f32 0.0, %v3044
        %v3046 = vpop.f32.mrf.mxu0
        %v3047 = vadd.f32 0.0, %v3046
        %3048 = vmatprep.mubr.f32.mxu0 0.0
        %3049 = vmatmul.mubr.f32.gmra.mxu0 %v2574
        %v3050 = vpop.f32.mrf.mxu0
        %v3051 = vadd.f32 0.0, %v3050
        %v3052 = vpop.f32.mrf.mxu0
        %v3053 = vadd.f32 0.0, %v3052
        %3054 = vmatprep.mubr.f32.mxu0 0.0
        %3055 = vmatmul.mubr.f32.gmra.mxu0 %v2577
        %v3056 = vpop.f32.mrf.mxu0
        %v3057 = vadd.f32 0.0, %v3056
        %v3058 = vpop.f32.mrf.mxu0
        %v3059 = vadd.f32 0.0, %v3058
        %3060 = vmatprep.mubr.f32.mxu0 0.0
        %3061 = vmatmul.mubr.f32.gmra.mxu0 %v2580
        %v3062 = vpop.f32.mrf.mxu0
        %v3063 = vadd.f32 0.0, %v3062
        %v3064 = vpop.f32.mrf.mxu0
        %v3065 = vadd.f32 0.0, %v3064
        %3066 = vmatprep.mubr.f32.mxu0 0.0
        %3067 = vmatmul.mubr.f32.gmra.mxu0 %v2583
        %v3068 = vpop.f32.mrf.mxu0
        %v3069 = vadd.f32 0.0, %v3068
        %v3070 = vpop.f32.mrf.mxu0
        %v3071 = vadd.f32 0.0, %v3070
        %3072 = vmatprep.mubr.f32.mxu0 0.0
        %3073 = vmatmul.mubr.f32.gmra.mxu0 %v2586
        %v3074 = vpop.f32.mrf.mxu0
        %v3075 = vadd.f32 0.0, %v3074
        %v3076 = vpop.f32.mrf.mxu0
        %v3077 = vadd.f32 0.0, %v3076
        %3078 = vmatprep.mubr.f32.mxu0 0.0
        %3079 = vmatmul.mubr.f32.gmra.mxu0 %v2589
        %v3080 = vpop.f32.mrf.mxu0
        %v3081 = vadd.f32 0.0, %v3080
        %v3082 = vpop.f32.mrf.mxu0
        %v3083 = vadd.f32 0.0, %v3082
        %3084 = vmatprep.mubr.f32.mxu0 0.0
        %3085 = vmatmul.mubr.f32.gmra.mxu0 %v2592
        %v3086 = vpop.f32.mrf.mxu0
        %v3087 = vadd.f32 0.0, %v3086
        %v3088 = vpop.f32.mrf.mxu0
        %v3089 = vadd.f32 0.0, %v3088
        %3090 = vdwg.mxu0
        %3091 = vmatprep.subr.mxu0 0.0
        %3092 = vmatpush1.xpose.msra.mxu0 %v2736
        %3093 = vmatprep.subr.mxu0 0.0
        %3094 = vmatpush1.xpose.msra.mxu0 %v2733
        %3095 = vmatprep.subr.mxu0 0.0
        %3096 = vmatpush1.xpose.msra.mxu0 %v2730
        %3097 = vmatprep.subr.mxu0 0.0
        %3098 = vmatpush1.xpose.msra.mxu0 %v2727
        %3099 = vmatprep.subr.mxu0 0.0
        %3100 = vmatpush1.xpose.msra.mxu0 %v2724
        %3101 = vmatprep.subr.mxu0 0.0
        %3102 = vmatpush1.xpose.msra.mxu0 %v2721
        %3103 = vmatprep.subr.mxu0 0.0
        %3104 = vmatpush1.xpose.msra.mxu0 %v2718
        %3105 = vmatprep.subr.mxu0 0.0
        %3106 = vmatpush1.xpose.msra.mxu0 %v2715
        %3107 = vmatprep.subr.mxu0 0.0
        %3108 = vmatpush1.xpose.msra.mxu0 %v2712
        %3109 = vmatprep.subr.mxu0 0.0
        %3110 = vmatpush1.xpose.msra.mxu0 %v2709
        %3111 = vmatprep.subr.mxu0 0.0
        %3112 = vmatpush1.xpose.msra.mxu0 %v2706
        %3113 = vmatprep.subr.mxu0 0.0
        %3114 = vmatpush1.xpose.msra.mxu0 %v2703
        %3115 = vmatprep.subr.mxu0 0.0
        %3116 = vmatpush1.xpose.msra.mxu0 %v2700
        %3117 = vmatprep.subr.mxu0 0.0
        %3118 = vmatpush1.xpose.msra.mxu0 %v2697
        %3119 = vmatprep.subr.mxu0 0.0
        %3120 = vmatpush1.xpose.msra.mxu0 %v2694
        %3121 = vmatprep.subr.mxu0 0.0
        %3122 = vmatpush1.xpose.msra.mxu0 %v2691
        %3123 = vmatprep.subr.mxu0 0.0
        %3124 = vmatpush2.xpose.msra.mxu0 0.0
        %3125 = vmatprep.subr.mxu0 0.0
        %3126 = vmatpush2.xpose.msra.mxu0 0.0
        %3127 = vmatprep.subr.mxu0 0.0
        %3128 = vmatpush2.xpose.msra.mxu0 0.0
        %3129 = vmatprep.subr.mxu0 0.0
        %3130 = vmatpush2.xpose.msra.mxu0 0.0
        %3131 = vmatprep.subr.mxu0 0.0
        %3132 = vmatpush2.xpose.msra.mxu0 0.0
        %3133 = vmatprep.subr.mxu0 0.0
        %3134 = vmatpush2.xpose.msra.mxu0 0.0
        %3135 = vmatprep.subr.mxu0 0.0
        %3136 = vmatpush2.xpose.msra.mxu0 0.0
        %3137 = vmatprep.subr.mxu0 0.0
        %3138 = vmatpush2.xpose.msra.mxu0 0.0
        %3139 = vmatprep.subr.mxu0 0.0
        %3140 = vmatpush2.xpose.msra.mxu0 0.0
        %3141 = vmatprep.subr.mxu0 0.0
        %3142 = vmatpush2.xpose.msra.mxu0 0.0
        %3143 = vmatprep.subr.mxu0 0.0
        %3144 = vmatpush2.xpose.msra.mxu0 0.0
        %3145 = vmatprep.subr.mxu0 0.0
        %3146 = vmatpush2.xpose.msra.mxu0 0.0
        %3147 = vmatprep.subr.mxu0 0.0
        %3148 = vmatpush2.xpose.msra.mxu0 0.0
        %3149 = vmatprep.subr.mxu0 0.0
        %3150 = vmatpush2.xpose.msra.mxu0 0.0
        %3151 = vmatprep.subr.mxu0 0.0
        %3152 = vmatpush2.xpose.msra.mxu0 0.0
        %3153 = vmatprep.subr.mxu0 0.0
        %3154 = vmatpush2.xpose.msra.mxu0 0.0
        %3155 = vmatprep.mubr.f32.mxu0 0.0
        %3156 = vmatmul.mubr.f32.gmra.mxu0 %v2451
        %v3157 = vpop.f32.mrf.mxu0
        %v3158 = vadd.f32 0.0, %v3157
        %v3159 = vpop.f32.mrf.mxu0
        %3160 = vmatprep.mubr.f32.mxu0 0.0
        %3161 = vmatmul.mubr.f32.gmra.mxu0 %v2454
        %v3162 = vpop.f32.mrf.mxu0
        %v3163 = vadd.f32 0.0, %v3162
        %v3164 = vpop.f32.mrf.mxu0
        %3165 = vmatprep.mubr.f32.mxu0 0.0
        %3166 = vmatmul.mubr.f32.gmra.mxu0 %v2457
        %v3167 = vpop.f32.mrf.mxu0
        %v3168 = vadd.f32 0.0, %v3167
        %v3169 = vpop.f32.mrf.mxu0
        %3170 = vmatprep.mubr.f32.mxu0 0.0
        %3171 = vmatmul.mubr.f32.gmra.mxu0 %v2460
        %v3172 = vpop.f32.mrf.mxu0
        %v3173 = vadd.f32 0.0, %v3172
        %v3174 = vpop.f32.mrf.mxu0
        %3175 = vmatprep.mubr.f32.mxu0 0.0
        %3176 = vmatmul.mubr.f32.gmra.mxu0 %v2463
        %v3177 = vpop.f32.mrf.mxu0
        %v3178 = vadd.f32 0.0, %v3177
        %v3179 = vpop.f32.mrf.mxu0
        %3180 = vmatprep.mubr.f32.mxu0 0.0
        %3181 = vmatmul.mubr.f32.gmra.mxu0 %v2466
        %v3182 = vpop.f32.mrf.mxu0
        %v3183 = vadd.f32 0.0, %v3182
        %v3184 = vpop.f32.mrf.mxu0
        %3185 = vmatprep.mubr.f32.mxu0 0.0
        %3186 = vmatmul.mubr.f32.gmra.mxu0 %v2469
        %v3187 = vpop.f32.mrf.mxu0
        %v3188 = vadd.f32 0.0, %v3187
        %v3189 = vpop.f32.mrf.mxu0
        %3190 = vmatprep.mubr.f32.mxu0 0.0
        %3191 = vmatmul.mubr.f32.gmra.mxu0 %v2472
        %v3192 = vpop.f32.mrf.mxu0
        %v3193 = vadd.f32 0.0, %v3192
        %v3194 = vpop.f32.mrf.mxu0
        %3195 = vmatprep.mubr.f32.mxu0 0.0
        %3196 = vmatmul.mubr.f32.gmra.mxu0 %v2475
        %v3197 = vpop.f32.mrf.mxu0
        %v3198 = vadd.f32 0.0, %v3197
        %v3199 = vpop.f32.mrf.mxu0
        %3200 = vmatprep.mubr.f32.mxu0 0.0
        %3201 = vmatmul.mubr.f32.gmra.mxu0 %v2478
        %v3202 = vpop.f32.mrf.mxu0
        %v3203 = vadd.f32 0.0, %v3202
        %v3204 = vpop.f32.mrf.mxu0
        %3205 = vmatprep.mubr.f32.mxu0 0.0
        %3206 = vmatmul.mubr.f32.gmra.mxu0 %v2481
        %v3207 = vpop.f32.mrf.mxu0
        %v3208 = vadd.f32 0.0, %v3207
        %v3209 = vpop.f32.mrf.mxu0
        %3210 = vmatprep.mubr.f32.mxu0 0.0
        %3211 = vmatmul.mubr.f32.gmra.mxu0 %v2484
        %v3212 = vpop.f32.mrf.mxu0
        %v3213 = vadd.f32 0.0, %v3212
        %v3214 = vpop.f32.mrf.mxu0
        %3215 = vmatprep.mubr.f32.mxu0 0.0
        %3216 = vmatmul.mubr.f32.gmra.mxu0 %v2487
        %v3217 = vpop.f32.mrf.mxu0
        %v3218 = vadd.f32 0.0, %v3217
        %v3219 = vpop.f32.mrf.mxu0
        %3220 = vmatprep.mubr.f32.mxu0 0.0
        %3221 = vmatmul.mubr.f32.gmra.mxu0 %v2490
        %v3222 = vpop.f32.mrf.mxu0
        %v3223 = vadd.f32 0.0, %v3222
        %v3224 = vpop.f32.mrf.mxu0
        %3225 = vmatprep.mubr.f32.mxu0 0.0
        %3226 = vmatmul.mubr.f32.gmra.mxu0 %v2493
        %v3227 = vpop.f32.mrf.mxu0
        %v3228 = vadd.f32 0.0, %v3227
        %v3229 = vpop.f32.mrf.mxu0
        %3230 = vmatprep.mubr.f32.mxu0 0.0
        %3231 = vmatmul.mubr.f32.gmra.mxu0 %v2496
        %v3232 = vpop.f32.mrf.mxu0
        %v3233 = vadd.f32 0.0, %v3232
        %v3234 = vpop.f32.mrf.mxu0
        %3235 = vmatprep.mubr.f32.mxu0 0.0
        %3236 = vmatmul.mubr.f32.gmra.mxu0 %v2499
        %v3237 = vpop.f32.mrf.mxu0
        %v3238 = vadd.f32 0.0, %v3237
        %v3239 = vpop.f32.mrf.mxu0
        %3240 = vmatprep.mubr.f32.mxu0 0.0
        %3241 = vmatmul.mubr.f32.gmra.mxu0 %v2502
        %v3242 = vpop.f32.mrf.mxu0
        %v3243 = vadd.f32 0.0, %v3242
        %v3244 = vpop.f32.mrf.mxu0
        %3245 = vmatprep.mubr.f32.mxu0 0.0
        %3246 = vmatmul.mubr.f32.gmra.mxu0 %v2505
        %v3247 = vpop.f32.mrf.mxu0
        %v3248 = vadd.f32 0.0, %v3247
        %v3249 = vpop.f32.mrf.mxu0
        %3250 = vmatprep.mubr.f32.mxu0 0.0
        %3251 = vmatmul.mubr.f32.gmra.mxu0 %v2508
        %v3252 = vpop.f32.mrf.mxu0
        %v3253 = vadd.f32 0.0, %v3252
        %v3254 = vpop.f32.mrf.mxu0
        %3255 = vmatprep.mubr.f32.mxu0 0.0
        %3256 = vmatmul.mubr.f32.gmra.mxu0 %v2511
        %v3257 = vpop.f32.mrf.mxu0
        %v3258 = vadd.f32 0.0, %v3257
        %v3259 = vpop.f32.mrf.mxu0
        %3260 = vmatprep.mubr.f32.mxu0 0.0
        %3261 = vmatmul.mubr.f32.gmra.mxu0 %v2514
        %v3262 = vpop.f32.mrf.mxu0
        %v3263 = vadd.f32 0.0, %v3262
        %v3264 = vpop.f32.mrf.mxu0
        %3265 = vmatprep.mubr.f32.mxu0 0.0
        %3266 = vmatmul.mubr.f32.gmra.mxu0 %v2517
        %v3267 = vpop.f32.mrf.mxu0
        %v3268 = vadd.f32 0.0, %v3267
        %v3269 = vpop.f32.mrf.mxu0
        %3270 = vmatprep.mubr.f32.mxu0 0.0
        %3271 = vmatmul.mubr.f32.gmra.mxu0 %v2520
        %v3272 = vpop.f32.mrf.mxu0
        %v3273 = vadd.f32 0.0, %v3272
        %v3274 = vpop.f32.mrf.mxu0
        %3275 = vmatprep.mubr.f32.mxu0 0.0
        %3276 = vmatmul.mubr.f32.gmra.mxu0 %v2523
        %v3277 = vpop.f32.mrf.mxu0
        %v3278 = vadd.f32 0.0, %v3277
        %v3279 = vpop.f32.mrf.mxu0
        %3280 = vmatprep.mubr.f32.mxu0 0.0
        %3281 = vmatmul.mubr.f32.gmra.mxu0 %v2526
        %v3282 = vpop.f32.mrf.mxu0
        %v3283 = vadd.f32 0.0, %v3282
        %v3284 = vpop.f32.mrf.mxu0
        %3285 = vmatprep.mubr.f32.mxu0 0.0
        %3286 = vmatmul.mubr.f32.gmra.mxu0 %v2529
        %v3287 = vpop.f32.mrf.mxu0
        %v3288 = vadd.f32 0.0, %v3287
        %v3289 = vpop.f32.mrf.mxu0
        %3290 = vmatprep.mubr.f32.mxu0 0.0
        %3291 = vmatmul.mubr.f32.gmra.mxu0 %v2532
        %v3292 = vpop.f32.mrf.mxu0
        %v3293 = vadd.f32 0.0, %v3292
        %v3294 = vpop.f32.mrf.mxu0
        %3295 = vmatprep.mubr.f32.mxu0 0.0
        %3296 = vmatmul.mubr.f32.gmra.mxu0 %v2535
        %v3297 = vpop.f32.mrf.mxu0
        %v3298 = vadd.f32 0.0, %v3297
        %v3299 = vpop.f32.mrf.mxu0
        %3300 = vmatprep.mubr.f32.mxu0 0.0
        %3301 = vmatmul.mubr.f32.gmra.mxu0 %v2538
        %v3302 = vpop.f32.mrf.mxu0
        %v3303 = vadd.f32 0.0, %v3302
        %v3304 = vpop.f32.mrf.mxu0
        %3305 = vmatprep.mubr.f32.mxu0 0.0
        %3306 = vmatmul.mubr.f32.gmra.mxu0 %v2541
        %v3307 = vpop.f32.mrf.mxu0
        %v3308 = vadd.f32 0.0, %v3307
        %v3309 = vpop.f32.mrf.mxu0
        %3310 = vmatprep.mubr.f32.mxu0 0.0
        %3311 = vmatmul.mubr.f32.gmra.mxu0 %v2544
        %v3312 = vpop.f32.mrf.mxu0
        %v3313 = vadd.f32 0.0, %v3312
        %v3314 = vpop.f32.mrf.mxu0
        %3315 = vmatprep.mubr.f32.mxu0 0.0
        %3316 = vmatmul.mubr.f32.gmra.mxu0 %v2547
        %v3317 = vpop.f32.mrf.mxu0
        %v3318 = vadd.f32 0.0, %v3317
        %v3319 = vpop.f32.mrf.mxu0
        %3320 = vmatprep.mubr.f32.mxu0 0.0
        %3321 = vmatmul.mubr.f32.gmra.mxu0 %v2550
        %v3322 = vpop.f32.mrf.mxu0
        %v3323 = vadd.f32 0.0, %v3322
        %v3324 = vpop.f32.mrf.mxu0
        %3325 = vmatprep.mubr.f32.mxu0 0.0
        %3326 = vmatmul.mubr.f32.gmra.mxu0 %v2553
        %v3327 = vpop.f32.mrf.mxu0
        %v3328 = vadd.f32 0.0, %v3327
        %v3329 = vpop.f32.mrf.mxu0
        %3330 = vmatprep.mubr.f32.mxu0 0.0
        %3331 = vmatmul.mubr.f32.gmra.mxu0 %v2556
        %v3332 = vpop.f32.mrf.mxu0
        %v3333 = vadd.f32 0.0, %v3332
        %v3334 = vpop.f32.mrf.mxu0
        %3335 = vmatprep.mubr.f32.mxu0 0.0
        %3336 = vmatmul.mubr.f32.gmra.mxu0 %v2559
        %v3337 = vpop.f32.mrf.mxu0
        %v3338 = vadd.f32 0.0, %v3337
        %v3339 = vpop.f32.mrf.mxu0
        %3340 = vmatprep.mubr.f32.mxu0 0.0
        %3341 = vmatmul.mubr.f32.gmra.mxu0 %v2562
        %v3342 = vpop.f32.mrf.mxu0
        %v3343 = vadd.f32 0.0, %v3342
        %v3344 = vpop.f32.mrf.mxu0
        %3345 = vmatprep.mubr.f32.mxu0 0.0
        %3346 = vmatmul.mubr.f32.gmra.mxu0 %v2565
        %v3347 = vpop.f32.mrf.mxu0
        %v3348 = vadd.f32 0.0, %v3347
        %v3349 = vpop.f32.mrf.mxu0
        %3350 = vmatprep.mubr.f32.mxu0 0.0
        %3351 = vmatmul.mubr.f32.gmra.mxu0 %v2568
        %v3352 = vpop.f32.mrf.mxu0
        %v3353 = vadd.f32 0.0, %v3352
        %v3354 = vpop.f32.mrf.mxu0
        %3355 = vmatprep.mubr.f32.mxu0 0.0
        %3356 = vmatmul.mubr.f32.gmra.mxu0 %v2571
        %v3357 = vpop.f32.mrf.mxu0
        %v3358 = vadd.f32 0.0, %v3357
        %v3359 = vpop.f32.mrf.mxu0
        %3360 = vmatprep.mubr.f32.mxu0 0.0
        %3361 = vmatmul.mubr.f32.gmra.mxu0 %v2574
        %v3362 = vpop.f32.mrf.mxu0
        %v3363 = vadd.f32 0.0, %v3362
        %v3364 = vpop.f32.mrf.mxu0
        %3365 = vmatprep.mubr.f32.mxu0 0.0
        %3366 = vmatmul.mubr.f32.gmra.mxu0 %v2577
        %v3367 = vpop.f32.mrf.mxu0
        %v3368 = vadd.f32 0.0, %v3367
        %v3369 = vpop.f32.mrf.mxu0
        %3370 = vmatprep.mubr.f32.mxu0 0.0
        %3371 = vmatmul.mubr.f32.gmra.mxu0 %v2580
        %v3372 = vpop.f32.mrf.mxu0
        %v3373 = vadd.f32 0.0, %v3372
        %v3374 = vpop.f32.mrf.mxu0
        %3375 = vmatprep.mubr.f32.mxu0 0.0
        %3376 = vmatmul.mubr.f32.gmra.mxu0 %v2583
        %v3377 = vpop.f32.mrf.mxu0
        %v3378 = vadd.f32 0.0, %v3377
        %v3379 = vpop.f32.mrf.mxu0
        %3380 = vmatprep.mubr.f32.mxu0 0.0
        %3381 = vmatmul.mubr.f32.gmra.mxu0 %v2586
        %v3382 = vpop.f32.mrf.mxu0
        %v3383 = vadd.f32 0.0, %v3382
        %v3384 = vpop.f32.mrf.mxu0
        %3385 = vmatprep.mubr.f32.mxu0 0.0
        %3386 = vmatmul.mubr.f32.gmra.mxu0 %v2589
        %v3387 = vpop.f32.mrf.mxu0
        %v3388 = vadd.f32 0.0, %v3387
        %v3389 = vpop.f32.mrf.mxu0
        %3390 = vmatprep.mubr.f32.mxu0 0.0
        %3391 = vmatmul.mubr.f32.gmra.mxu0 %v2592
        %v3392 = vpop.f32.mrf.mxu0
        %v3393 = vadd.f32 0.0, %v3392
        %v3394 = vpop.f32.mrf.mxu0
        %3395 = vdwg.mxu0
        %v3397 = vsel %vm557, %v317, 0
        %v3400 = vsel %vm557, %v318, 0
        %v3403 = vsel %vm557, %v319, 0
        %v3406 = vsel %vm557, %v320, 0
        %v3409 = vsel %vm557, %v321, 0
        %v3412 = vsel %vm557, %v322, 0
        %v3415 = vsel %vm557, %v323, 0
        %v3418 = vsel %vm557, %v324, 0
        %v3421 = vsel %vm557, %v325, 0
        %v3424 = vsel %vm557, %v326, 0
        %v3427 = vsel %vm557, %v327, 0
        %v3430 = vsel %vm557, %v328, 0
        %v3433 = vsel %vm557, %v329, 0
        %v3436 = vsel %vm557, %v330, 0
        %v3439 = vsel %vm557, %v331, 0
        %v3442 = vsel %vm557, %v332, 0
        %v3445 = vsel %vm557, %v333, 0
        %v3448 = vsel %vm557, %v334, 0
        %v3451 = vsel %vm557, %v335, 0
        %v3454 = vsel %vm557, %v336, 0
        %v3457 = vsel %vm557, %v337, 0
        %v3460 = vsel %vm557, %v338, 0
        %v3463 = vsel %vm557, %v339, 0
        %v3466 = vsel %vm557, %v340, 0
        %v3469 = vsel %vm557, %v341, 0
        %v3472 = vsel %vm557, %v342, 0
        %v3475 = vsel %vm557, %v343, 0
        %v3478 = vsel %vm557, %v344, 0
        %v3481 = vsel %vm557, %v345, 0
        %v3484 = vsel %vm557, %v346, 0
        %v3487 = vsel %vm557, %v347, 0
        %v3490 = vsel %vm557, %v348, 0
        %v3493 = vsel %vm557, %v349, 0
        %v3496 = vsel %vm557, %v350, 0
        %v3499 = vsel %vm557, %v351, 0
        %v3502 = vsel %vm557, %v352, 0
        %v3505 = vsel %vm557, %v353, 0
        %v3508 = vsel %vm557, %v354, 0
        %v3511 = vsel %vm557, %v355, 0
        %v3514 = vsel %vm557, %v356, 0
        %v3517 = vsel %vm557, %v357, 0
        %v3520 = vsel %vm557, %v358, 0
        %v3523 = vsel %vm557, %v359, 0
        %v3526 = vsel %vm557, %v360, 0
        %v3529 = vsel %vm557, %v361, 0
        %v3532 = vsel %vm557, %v362, 0
        %v3535 = vsel %vm557, %v363, 0
        %v3538 = vsel %vm557, %v364, 0
        %v3541 = vsel %vm557, %v509, 0
        %v3544 = vsel %vm557, %v510, 0
        %v3547 = vsel %vm557, %v511, 0
        %v3550 = vsel %vm557, %v512, 0
        %v3553 = vsel %vm557, %v513, 0
        %v3556 = vsel %vm557, %v514, 0
        %v3559 = vsel %vm557, %v515, 0
        %v3562 = vsel %vm557, %v516, 0
        %v3565 = vsel %vm557, %v517, 0
        %v3568 = vsel %vm557, %v518, 0
        %v3571 = vsel %vm557, %v519, 0
        %v3574 = vsel %vm557, %v520, 0
        %v3577 = vsel %vm557, %v521, 0
        %v3580 = vsel %vm557, %v522, 0
        %v3583 = vsel %vm557, %v523, 0
        %v3586 = vsel %vm557, %v524, 0
        %v3589 = vsel %vm557, %v525, 0
        %v3592 = vsel %vm557, %v526, 0
        %v3595 = vsel %vm557, %v527, 0
        %v3598 = vsel %vm557, %v528, 0
        %v3601 = vsel %vm557, %v529, 0
        %v3604 = vsel %vm557, %v530, 0
        %v3607 = vsel %vm557, %v531, 0
        %v3610 = vsel %vm557, %v532, 0
        %v3613 = vsel %vm557, %v533, 0
        %v3616 = vsel %vm557, %v534, 0
        %v3619 = vsel %vm557, %v535, 0
        %v3622 = vsel %vm557, %v536, 0
        %v3625 = vsel %vm557, %v537, 0
        %v3628 = vsel %vm557, %v538, 0
        %v3631 = vsel %vm557, %v539, 0
        %v3634 = vsel %vm557, %v540, 0
        %v3637 = vsel %vm557, %v541, 0
        %v3640 = vsel %vm557, %v542, 0
        %v3643 = vsel %vm557, %v543, 0
        %v3646 = vsel %vm557, %v544, 0
        %v3649 = vsel %vm557, %v545, 0
        %v3652 = vsel %vm557, %v546, 0
        %v3655 = vsel %vm557, %v547, 0
        %v3658 = vsel %vm557, %v548, 0
        %v3661 = vsel %vm557, %v549, 0
        %v3664 = vsel %vm557, %v550, 0
        %v3667 = vsel %vm557, %v551, 0
        %v3670 = vsel %vm557, %v552, 0
        %v3673 = vsel %vm557, %v553, 0
        %v3676 = vsel %vm557, %v554, 0
        %v3679 = vsel %vm557, %v555, 0
        %v3682 = vsel %vm557, %v556, 0
        %3684 = vmatprep.subr.mxu0 0.0
        %3685 = vmatpush1.xpose.msra.mxu0 %v3586
        %3686 = vmatprep.subr.mxu0 0.0
        %3687 = vmatpush1.xpose.msra.mxu0 %v3583
        %3688 = vmatprep.subr.mxu0 0.0
        %3689 = vmatpush1.xpose.msra.mxu0 %v3580
        %3690 = vmatprep.subr.mxu0 0.0
        %3691 = vmatpush1.xpose.msra.mxu0 %v3577
        %3692 = vmatprep.subr.mxu0 0.0
        %3693 = vmatpush1.xpose.msra.mxu0 %v3574
        %3694 = vmatprep.subr.mxu0 0.0
        %3695 = vmatpush1.xpose.msra.mxu0 %v3571
        %3696 = vmatprep.subr.mxu0 0.0
        %3697 = vmatpush1.xpose.msra.mxu0 %v3568
        %3698 = vmatprep.subr.mxu0 0.0
        %3699 = vmatpush1.xpose.msra.mxu0 %v3565
        %3700 = vmatprep.subr.mxu0 0.0
        %3701 = vmatpush1.xpose.msra.mxu0 %v3562
        %3702 = vmatprep.subr.mxu0 0.0
        %3703 = vmatpush1.xpose.msra.mxu0 %v3559
        %3704 = vmatprep.subr.mxu0 0.0
        %3705 = vmatpush1.xpose.msra.mxu0 %v3556
        %3706 = vmatprep.subr.mxu0 0.0
        %3707 = vmatpush1.xpose.msra.mxu0 %v3553
        %3708 = vmatprep.subr.mxu0 0.0
        %3709 = vmatpush1.xpose.msra.mxu0 %v3550
        %3710 = vmatprep.subr.mxu0 0.0
        %3711 = vmatpush1.xpose.msra.mxu0 %v3547
        %3712 = vmatprep.subr.mxu0 0.0
        %3713 = vmatpush1.xpose.msra.mxu0 %v3544
        %3714 = vmatprep.subr.mxu0 0.0
        %3715 = vmatpush1.xpose.msra.mxu0 %v3541
        %3716 = vmatprep.subr.mxu0 0.0
        %3717 = vmatpush2.xpose.msra.mxu0 %v3634
        %3718 = vmatprep.subr.mxu0 0.0
        %3719 = vmatpush2.xpose.msra.mxu0 %v3631
        %3720 = vmatprep.subr.mxu0 0.0
        %3721 = vmatpush2.xpose.msra.mxu0 %v3628
        %3722 = vmatprep.subr.mxu0 0.0
        %3723 = vmatpush2.xpose.msra.mxu0 %v3625
        %3724 = vmatprep.subr.mxu0 0.0
        %3725 = vmatpush2.xpose.msra.mxu0 %v3622
        %3726 = vmatprep.subr.mxu0 0.0
        %3727 = vmatpush2.xpose.msra.mxu0 %v3619
        %3728 = vmatprep.subr.mxu0 0.0
        %3729 = vmatpush2.xpose.msra.mxu0 %v3616
        %3730 = vmatprep.subr.mxu0 0.0
        %3731 = vmatpush2.xpose.msra.mxu0 %v3613
        %3732 = vmatprep.subr.mxu0 0.0
        %3733 = vmatpush2.xpose.msra.mxu0 %v3610
        %3734 = vmatprep.subr.mxu0 0.0
        %3735 = vmatpush2.xpose.msra.mxu0 %v3607
        %3736 = vmatprep.subr.mxu0 0.0
        %3737 = vmatpush2.xpose.msra.mxu0 %v3604
        %3738 = vmatprep.subr.mxu0 0.0
        %3739 = vmatpush2.xpose.msra.mxu0 %v3601
        %3740 = vmatprep.subr.mxu0 0.0
        %3741 = vmatpush2.xpose.msra.mxu0 %v3598
        %3742 = vmatprep.subr.mxu0 0.0
        %3743 = vmatpush2.xpose.msra.mxu0 %v3595
        %3744 = vmatprep.subr.mxu0 0.0
        %3745 = vmatpush2.xpose.msra.mxu0 %v3592
        %3746 = vmatprep.subr.mxu0 0.0
        %3747 = vmatpush2.xpose.msra.mxu0 %v3589
        %3748 = vmatprep.mubr.f32.mxu0 0.0
        %3749 = vmatmul.mubr.f32.gmra.mxu0 %v3397
        %v3750 = vpop.f32.mrf.mxu0
        %v3751 = vadd.f32 0.0, %v3750
        %v3752 = vpop.f32.mrf.mxu0
        %v3753 = vadd.f32 0.0, %v3752
        %3754 = vmatprep.mubr.f32.mxu0 0.0
        %3755 = vmatmul.mubr.f32.gmra.mxu0 %v3400
        %v3756 = vpop.f32.mrf.mxu0
        %v3757 = vadd.f32 0.0, %v3756
        %v3758 = vpop.f32.mrf.mxu0
        %v3759 = vadd.f32 0.0, %v3758
        %3760 = vmatprep.mubr.f32.mxu0 0.0
        %3761 = vmatmul.mubr.f32.gmra.mxu0 %v3403
        %v3762 = vpop.f32.mrf.mxu0
        %v3763 = vadd.f32 0.0, %v3762
        %v3764 = vpop.f32.mrf.mxu0
        %v3765 = vadd.f32 0.0, %v3764
        %3766 = vmatprep.mubr.f32.mxu0 0.0
        %3767 = vmatmul.mubr.f32.gmra.mxu0 %v3406
        %v3768 = vpop.f32.mrf.mxu0
        %v3769 = vadd.f32 0.0, %v3768
        %v3770 = vpop.f32.mrf.mxu0
        %v3771 = vadd.f32 0.0, %v3770
        %3772 = vmatprep.mubr.f32.mxu0 0.0
        %3773 = vmatmul.mubr.f32.gmra.mxu0 %v3409
        %v3774 = vpop.f32.mrf.mxu0
        %v3775 = vadd.f32 0.0, %v3774
        %v3776 = vpop.f32.mrf.mxu0
        %v3777 = vadd.f32 0.0, %v3776
        %3778 = vmatprep.mubr.f32.mxu0 0.0
        %3779 = vmatmul.mubr.f32.gmra.mxu0 %v3412
        %v3780 = vpop.f32.mrf.mxu0
        %v3781 = vadd.f32 0.0, %v3780
        %v3782 = vpop.f32.mrf.mxu0
        %v3783 = vadd.f32 0.0, %v3782
        %3784 = vmatprep.mubr.f32.mxu0 0.0
        %3785 = vmatmul.mubr.f32.gmra.mxu0 %v3415
        %v3786 = vpop.f32.mrf.mxu0
        %v3787 = vadd.f32 0.0, %v3786
        %v3788 = vpop.f32.mrf.mxu0
        %v3789 = vadd.f32 0.0, %v3788
        %3790 = vmatprep.mubr.f32.mxu0 0.0
        %3791 = vmatmul.mubr.f32.gmra.mxu0 %v3418
        %v3792 = vpop.f32.mrf.mxu0
        %v3793 = vadd.f32 0.0, %v3792
        %v3794 = vpop.f32.mrf.mxu0
        %v3795 = vadd.f32 0.0, %v3794
        %3796 = vmatprep.mubr.f32.mxu0 0.0
        %3797 = vmatmul.mubr.f32.gmra.mxu0 %v3421
        %v3798 = vpop.f32.mrf.mxu0
        %v3799 = vadd.f32 0.0, %v3798
        %v3800 = vpop.f32.mrf.mxu0
        %v3801 = vadd.f32 0.0, %v3800
        %3802 = vmatprep.mubr.f32.mxu0 0.0
        %3803 = vmatmul.mubr.f32.gmra.mxu0 %v3424
        %v3804 = vpop.f32.mrf.mxu0
        %v3805 = vadd.f32 0.0, %v3804
        %v3806 = vpop.f32.mrf.mxu0
        %v3807 = vadd.f32 0.0, %v3806
        %3808 = vmatprep.mubr.f32.mxu0 0.0
        %3809 = vmatmul.mubr.f32.gmra.mxu0 %v3427
        %v3810 = vpop.f32.mrf.mxu0
        %v3811 = vadd.f32 0.0, %v3810
        %v3812 = vpop.f32.mrf.mxu0
        %v3813 = vadd.f32 0.0, %v3812
        %3814 = vmatprep.mubr.f32.mxu0 0.0
        %3815 = vmatmul.mubr.f32.gmra.mxu0 %v3430
        %v3816 = vpop.f32.mrf.mxu0
        %v3817 = vadd.f32 0.0, %v3816
        %v3818 = vpop.f32.mrf.mxu0
        %v3819 = vadd.f32 0.0, %v3818
        %3820 = vmatprep.mubr.f32.mxu0 0.0
        %3821 = vmatmul.mubr.f32.gmra.mxu0 %v3433
        %v3822 = vpop.f32.mrf.mxu0
        %v3823 = vadd.f32 0.0, %v3822
        %v3824 = vpop.f32.mrf.mxu0
        %v3825 = vadd.f32 0.0, %v3824
        %3826 = vmatprep.mubr.f32.mxu0 0.0
        %3827 = vmatmul.mubr.f32.gmra.mxu0 %v3436
        %v3828 = vpop.f32.mrf.mxu0
        %v3829 = vadd.f32 0.0, %v3828
        %v3830 = vpop.f32.mrf.mxu0
        %v3831 = vadd.f32 0.0, %v3830
        %3832 = vmatprep.mubr.f32.mxu0 0.0
        %3833 = vmatmul.mubr.f32.gmra.mxu0 %v3439
        %v3834 = vpop.f32.mrf.mxu0
        %v3835 = vadd.f32 0.0, %v3834
        %v3836 = vpop.f32.mrf.mxu0
        %v3837 = vadd.f32 0.0, %v3836
        %3838 = vmatprep.mubr.f32.mxu0 0.0
        %3839 = vmatmul.mubr.f32.gmra.mxu0 %v3442
        %v3840 = vpop.f32.mrf.mxu0
        %v3841 = vadd.f32 0.0, %v3840
        %v3842 = vpop.f32.mrf.mxu0
        %v3843 = vadd.f32 0.0, %v3842
        %3844 = vmatprep.mubr.f32.mxu0 0.0
        %3845 = vmatmul.mubr.f32.gmra.mxu0 %v3445
        %v3846 = vpop.f32.mrf.mxu0
        %v3847 = vadd.f32 0.0, %v3846
        %v3848 = vpop.f32.mrf.mxu0
        %v3849 = vadd.f32 0.0, %v3848
        %3850 = vmatprep.mubr.f32.mxu0 0.0
        %3851 = vmatmul.mubr.f32.gmra.mxu0 %v3448
        %v3852 = vpop.f32.mrf.mxu0
        %v3853 = vadd.f32 0.0, %v3852
        %v3854 = vpop.f32.mrf.mxu0
        %v3855 = vadd.f32 0.0, %v3854
        %3856 = vmatprep.mubr.f32.mxu0 0.0
        %3857 = vmatmul.mubr.f32.gmra.mxu0 %v3451
        %v3858 = vpop.f32.mrf.mxu0
        %v3859 = vadd.f32 0.0, %v3858
        %v3860 = vpop.f32.mrf.mxu0
        %v3861 = vadd.f32 0.0, %v3860
        %3862 = vmatprep.mubr.f32.mxu0 0.0
        %3863 = vmatmul.mubr.f32.gmra.mxu0 %v3454
        %v3864 = vpop.f32.mrf.mxu0
        %v3865 = vadd.f32 0.0, %v3864
        %v3866 = vpop.f32.mrf.mxu0
        %v3867 = vadd.f32 0.0, %v3866
        %3868 = vmatprep.mubr.f32.mxu0 0.0
        %3869 = vmatmul.mubr.f32.gmra.mxu0 %v3457
        %v3870 = vpop.f32.mrf.mxu0
        %v3871 = vadd.f32 0.0, %v3870
        %v3872 = vpop.f32.mrf.mxu0
        %v3873 = vadd.f32 0.0, %v3872
        %3874 = vmatprep.mubr.f32.mxu0 0.0
        %3875 = vmatmul.mubr.f32.gmra.mxu0 %v3460
        %v3876 = vpop.f32.mrf.mxu0
        %v3877 = vadd.f32 0.0, %v3876
        %v3878 = vpop.f32.mrf.mxu0
        %v3879 = vadd.f32 0.0, %v3878
        %3880 = vmatprep.mubr.f32.mxu0 0.0
        %3881 = vmatmul.mubr.f32.gmra.mxu0 %v3463
        %v3882 = vpop.f32.mrf.mxu0
        %v3883 = vadd.f32 0.0, %v3882
        %v3884 = vpop.f32.mrf.mxu0
        %v3885 = vadd.f32 0.0, %v3884
        %3886 = vmatprep.mubr.f32.mxu0 0.0
        %3887 = vmatmul.mubr.f32.gmra.mxu0 %v3466
        %v3888 = vpop.f32.mrf.mxu0
        %v3889 = vadd.f32 0.0, %v3888
        %v3890 = vpop.f32.mrf.mxu0
        %v3891 = vadd.f32 0.0, %v3890
        %3892 = vmatprep.mubr.f32.mxu0 0.0
        %3893 = vmatmul.mubr.f32.gmra.mxu0 %v3469
        %v3894 = vpop.f32.mrf.mxu0
        %v3895 = vadd.f32 0.0, %v3894
        %v3896 = vpop.f32.mrf.mxu0
        %v3897 = vadd.f32 0.0, %v3896
        %3898 = vmatprep.mubr.f32.mxu0 0.0
        %3899 = vmatmul.mubr.f32.gmra.mxu0 %v3472
        %v3900 = vpop.f32.mrf.mxu0
        %v3901 = vadd.f32 0.0, %v3900
        %v3902 = vpop.f32.mrf.mxu0
        %v3903 = vadd.f32 0.0, %v3902
        %3904 = vmatprep.mubr.f32.mxu0 0.0
        %3905 = vmatmul.mubr.f32.gmra.mxu0 %v3475
        %v3906 = vpop.f32.mrf.mxu0
        %v3907 = vadd.f32 0.0, %v3906
        %v3908 = vpop.f32.mrf.mxu0
        %v3909 = vadd.f32 0.0, %v3908
        %3910 = vmatprep.mubr.f32.mxu0 0.0
        %3911 = vmatmul.mubr.f32.gmra.mxu0 %v3478
        %v3912 = vpop.f32.mrf.mxu0
        %v3913 = vadd.f32 0.0, %v3912
        %v3914 = vpop.f32.mrf.mxu0
        %v3915 = vadd.f32 0.0, %v3914
        %3916 = vmatprep.mubr.f32.mxu0 0.0
        %3917 = vmatmul.mubr.f32.gmra.mxu0 %v3481
        %v3918 = vpop.f32.mrf.mxu0
        %v3919 = vadd.f32 0.0, %v3918
        %v3920 = vpop.f32.mrf.mxu0
        %v3921 = vadd.f32 0.0, %v3920
        %3922 = vmatprep.mubr.f32.mxu0 0.0
        %3923 = vmatmul.mubr.f32.gmra.mxu0 %v3484
        %v3924 = vpop.f32.mrf.mxu0
        %v3925 = vadd.f32 0.0, %v3924
        %v3926 = vpop.f32.mrf.mxu0
        %v3927 = vadd.f32 0.0, %v3926
        %3928 = vmatprep.mubr.f32.mxu0 0.0
        %3929 = vmatmul.mubr.f32.gmra.mxu0 %v3487
        %v3930 = vpop.f32.mrf.mxu0
        %v3931 = vadd.f32 0.0, %v3930
        %v3932 = vpop.f32.mrf.mxu0
        %v3933 = vadd.f32 0.0, %v3932
        %3934 = vmatprep.mubr.f32.mxu0 0.0
        %3935 = vmatmul.mubr.f32.gmra.mxu0 %v3490
        %v3936 = vpop.f32.mrf.mxu0
        %v3937 = vadd.f32 0.0, %v3936
        %v3938 = vpop.f32.mrf.mxu0
        %v3939 = vadd.f32 0.0, %v3938
        %3940 = vmatprep.mubr.f32.mxu0 0.0
        %3941 = vmatmul.mubr.f32.gmra.mxu0 %v3493
        %v3942 = vpop.f32.mrf.mxu0
        %v3943 = vadd.f32 0.0, %v3942
        %v3944 = vpop.f32.mrf.mxu0
        %v3945 = vadd.f32 0.0, %v3944
        %3946 = vmatprep.mubr.f32.mxu0 0.0
        %3947 = vmatmul.mubr.f32.gmra.mxu0 %v3496
        %v3948 = vpop.f32.mrf.mxu0
        %v3949 = vadd.f32 0.0, %v3948
        %v3950 = vpop.f32.mrf.mxu0
        %v3951 = vadd.f32 0.0, %v3950
        %3952 = vmatprep.mubr.f32.mxu0 0.0
        %3953 = vmatmul.mubr.f32.gmra.mxu0 %v3499
        %v3954 = vpop.f32.mrf.mxu0
        %v3955 = vadd.f32 0.0, %v3954
        %v3956 = vpop.f32.mrf.mxu0
        %v3957 = vadd.f32 0.0, %v3956
        %3958 = vmatprep.mubr.f32.mxu0 0.0
        %3959 = vmatmul.mubr.f32.gmra.mxu0 %v3502
        %v3960 = vpop.f32.mrf.mxu0
        %v3961 = vadd.f32 0.0, %v3960
        %v3962 = vpop.f32.mrf.mxu0
        %v3963 = vadd.f32 0.0, %v3962
        %3964 = vmatprep.mubr.f32.mxu0 0.0
        %3965 = vmatmul.mubr.f32.gmra.mxu0 %v3505
        %v3966 = vpop.f32.mrf.mxu0
        %v3967 = vadd.f32 0.0, %v3966
        %v3968 = vpop.f32.mrf.mxu0
        %v3969 = vadd.f32 0.0, %v3968
        %3970 = vmatprep.mubr.f32.mxu0 0.0
        %3971 = vmatmul.mubr.f32.gmra.mxu0 %v3508
        %v3972 = vpop.f32.mrf.mxu0
        %v3973 = vadd.f32 0.0, %v3972
        %v3974 = vpop.f32.mrf.mxu0
        %v3975 = vadd.f32 0.0, %v3974
        %3976 = vmatprep.mubr.f32.mxu0 0.0
        %3977 = vmatmul.mubr.f32.gmra.mxu0 %v3511
        %v3978 = vpop.f32.mrf.mxu0
        %v3979 = vadd.f32 0.0, %v3978
        %v3980 = vpop.f32.mrf.mxu0
        %v3981 = vadd.f32 0.0, %v3980
        %3982 = vmatprep.mubr.f32.mxu0 0.0
        %3983 = vmatmul.mubr.f32.gmra.mxu0 %v3514
        %v3984 = vpop.f32.mrf.mxu0
        %v3985 = vadd.f32 0.0, %v3984
        %v3986 = vpop.f32.mrf.mxu0
        %v3987 = vadd.f32 0.0, %v3986
        %3988 = vmatprep.mubr.f32.mxu0 0.0
        %3989 = vmatmul.mubr.f32.gmra.mxu0 %v3517
        %v3990 = vpop.f32.mrf.mxu0
        %v3991 = vadd.f32 0.0, %v3990
        %v3992 = vpop.f32.mrf.mxu0
        %v3993 = vadd.f32 0.0, %v3992
        %3994 = vmatprep.mubr.f32.mxu0 0.0
        %3995 = vmatmul.mubr.f32.gmra.mxu0 %v3520
        %v3996 = vpop.f32.mrf.mxu0
        %v3997 = vadd.f32 0.0, %v3996
        %v3998 = vpop.f32.mrf.mxu0
        %v3999 = vadd.f32 0.0, %v3998
        %4000 = vmatprep.mubr.f32.mxu0 0.0
        %4001 = vmatmul.mubr.f32.gmra.mxu0 %v3523
        %v4002 = vpop.f32.mrf.mxu0
        %v4003 = vadd.f32 0.0, %v4002
        %v4004 = vpop.f32.mrf.mxu0
        %v4005 = vadd.f32 0.0, %v4004
        %4006 = vmatprep.mubr.f32.mxu0 0.0
        %4007 = vmatmul.mubr.f32.gmra.mxu0 %v3526
        %v4008 = vpop.f32.mrf.mxu0
        %v4009 = vadd.f32 0.0, %v4008
        %v4010 = vpop.f32.mrf.mxu0
        %v4011 = vadd.f32 0.0, %v4010
        %4012 = vmatprep.mubr.f32.mxu0 0.0
        %4013 = vmatmul.mubr.f32.gmra.mxu0 %v3529
        %v4014 = vpop.f32.mrf.mxu0
        %v4015 = vadd.f32 0.0, %v4014
        %v4016 = vpop.f32.mrf.mxu0
        %v4017 = vadd.f32 0.0, %v4016
        %4018 = vmatprep.mubr.f32.mxu0 0.0
        %4019 = vmatmul.mubr.f32.gmra.mxu0 %v3532
        %v4020 = vpop.f32.mrf.mxu0
        %v4021 = vadd.f32 0.0, %v4020
        %v4022 = vpop.f32.mrf.mxu0
        %v4023 = vadd.f32 0.0, %v4022
        %4024 = vmatprep.mubr.f32.mxu0 0.0
        %4025 = vmatmul.mubr.f32.gmra.mxu0 %v3535
        %v4026 = vpop.f32.mrf.mxu0
        %v4027 = vadd.f32 0.0, %v4026
        %v4028 = vpop.f32.mrf.mxu0
        %v4029 = vadd.f32 0.0, %v4028
        %4030 = vmatprep.mubr.f32.mxu0 0.0
        %4031 = vmatmul.mubr.f32.gmra.mxu0 %v3538
        %v4032 = vpop.f32.mrf.mxu0
        %v4033 = vadd.f32 0.0, %v4032
        %v4034 = vpop.f32.mrf.mxu0
        %v4035 = vadd.f32 0.0, %v4034
        %4036 = vdwg.mxu0
        %4037 = vmatprep.subr.mxu0 0.0
        %4038 = vmatpush1.xpose.msra.mxu0 %v3682
        %4039 = vmatprep.subr.mxu0 0.0
        %4040 = vmatpush1.xpose.msra.mxu0 %v3679
        %4041 = vmatprep.subr.mxu0 0.0
        %4042 = vmatpush1.xpose.msra.mxu0 %v3676
        %4043 = vmatprep.subr.mxu0 0.0
        %4044 = vmatpush1.xpose.msra.mxu0 %v3673
        %4045 = vmatprep.subr.mxu0 0.0
        %4046 = vmatpush1.xpose.msra.mxu0 %v3670
        %4047 = vmatprep.subr.mxu0 0.0
        %4048 = vmatpush1.xpose.msra.mxu0 %v3667
        %4049 = vmatprep.subr.mxu0 0.0
        %4050 = vmatpush1.xpose.msra.mxu0 %v3664
        %4051 = vmatprep.subr.mxu0 0.0
        %4052 = vmatpush1.xpose.msra.mxu0 %v3661
        %4053 = vmatprep.subr.mxu0 0.0
        %4054 = vmatpush1.xpose.msra.mxu0 %v3658
        %4055 = vmatprep.subr.mxu0 0.0
        %4056 = vmatpush1.xpose.msra.mxu0 %v3655
        %4057 = vmatprep.subr.mxu0 0.0
        %4058 = vmatpush1.xpose.msra.mxu0 %v3652
        %4059 = vmatprep.subr.mxu0 0.0
        %4060 = vmatpush1.xpose.msra.mxu0 %v3649
        %4061 = vmatprep.subr.mxu0 0.0
        %4062 = vmatpush1.xpose.msra.mxu0 %v3646
        %4063 = vmatprep.subr.mxu0 0.0
        %4064 = vmatpush1.xpose.msra.mxu0 %v3643
        %4065 = vmatprep.subr.mxu0 0.0
        %4066 = vmatpush1.xpose.msra.mxu0 %v3640
        %4067 = vmatprep.subr.mxu0 0.0
        %4068 = vmatpush1.xpose.msra.mxu0 %v3637
        %4069 = vmatprep.subr.mxu0 0.0
        %4070 = vmatpush2.xpose.msra.mxu0 0.0
        %4071 = vmatprep.subr.mxu0 0.0
        %4072 = vmatpush2.xpose.msra.mxu0 0.0
        %4073 = vmatprep.subr.mxu0 0.0
        %4074 = vmatpush2.xpose.msra.mxu0 0.0
        %4075 = vmatprep.subr.mxu0 0.0
        %4076 = vmatpush2.xpose.msra.mxu0 0.0
        %4077 = vmatprep.subr.mxu0 0.0
        %4078 = vmatpush2.xpose.msra.mxu0 0.0
        %4079 = vmatprep.subr.mxu0 0.0
        %4080 = vmatpush2.xpose.msra.mxu0 0.0
        %4081 = vmatprep.subr.mxu0 0.0
        %4082 = vmatpush2.xpose.msra.mxu0 0.0
        %4083 = vmatprep.subr.mxu0 0.0
        %4084 = vmatpush2.xpose.msra.mxu0 0.0
        %4085 = vmatprep.subr.mxu0 0.0
        %4086 = vmatpush2.xpose.msra.mxu0 0.0
        %4087 = vmatprep.subr.mxu0 0.0
        %4088 = vmatpush2.xpose.msra.mxu0 0.0
        %4089 = vmatprep.subr.mxu0 0.0
        %4090 = vmatpush2.xpose.msra.mxu0 0.0
        %4091 = vmatprep.subr.mxu0 0.0
        %4092 = vmatpush2.xpose.msra.mxu0 0.0
        %4093 = vmatprep.subr.mxu0 0.0
        %4094 = vmatpush2.xpose.msra.mxu0 0.0
        %4095 = vmatprep.subr.mxu0 0.0
        %4096 = vmatpush2.xpose.msra.mxu0 0.0
        %4097 = vmatprep.subr.mxu0 0.0
        %4098 = vmatpush2.xpose.msra.mxu0 0.0
        %4099 = vmatprep.subr.mxu0 0.0
        %4100 = vmatpush2.xpose.msra.mxu0 0.0
        %4101 = vmatprep.mubr.f32.mxu0 0.0
        %4102 = vmatmul.mubr.f32.gmra.mxu0 %v3397
        %v4103 = vpop.f32.mrf.mxu0
        %v4104 = vadd.f32 0.0, %v4103
        %v4105 = vpop.f32.mrf.mxu0
        %4106 = vmatprep.mubr.f32.mxu0 0.0
        %4107 = vmatmul.mubr.f32.gmra.mxu0 %v3400
        %v4108 = vpop.f32.mrf.mxu0
        %v4109 = vadd.f32 0.0, %v4108
        %v4110 = vpop.f32.mrf.mxu0
        %4111 = vmatprep.mubr.f32.mxu0 0.0
        %4112 = vmatmul.mubr.f32.gmra.mxu0 %v3403
        %v4113 = vpop.f32.mrf.mxu0
        %v4114 = vadd.f32 0.0, %v4113
        %v4115 = vpop.f32.mrf.mxu0
        %4116 = vmatprep.mubr.f32.mxu0 0.0
        %4117 = vmatmul.mubr.f32.gmra.mxu0 %v3406
        %v4118 = vpop.f32.mrf.mxu0
        %v4119 = vadd.f32 0.0, %v4118
        %v4120 = vpop.f32.mrf.mxu0
        %4121 = vmatprep.mubr.f32.mxu0 0.0
        %4122 = vmatmul.mubr.f32.gmra.mxu0 %v3409
        %v4123 = vpop.f32.mrf.mxu0
        %v4124 = vadd.f32 0.0, %v4123
        %v4125 = vpop.f32.mrf.mxu0
        %4126 = vmatprep.mubr.f32.mxu0 0.0
        %4127 = vmatmul.mubr.f32.gmra.mxu0 %v3412
        %v4128 = vpop.f32.mrf.mxu0
        %v4129 = vadd.f32 0.0, %v4128
        %v4130 = vpop.f32.mrf.mxu0
        %4131 = vmatprep.mubr.f32.mxu0 0.0
        %4132 = vmatmul.mubr.f32.gmra.mxu0 %v3415
        %v4133 = vpop.f32.mrf.mxu0
        %v4134 = vadd.f32 0.0, %v4133
        %v4135 = vpop.f32.mrf.mxu0
        %4136 = vmatprep.mubr.f32.mxu0 0.0
        %4137 = vmatmul.mubr.f32.gmra.mxu0 %v3418
        %v4138 = vpop.f32.mrf.mxu0
        %v4139 = vadd.f32 0.0, %v4138
        %v4140 = vpop.f32.mrf.mxu0
        %4141 = vmatprep.mubr.f32.mxu0 0.0
        %4142 = vmatmul.mubr.f32.gmra.mxu0 %v3421
        %v4143 = vpop.f32.mrf.mxu0
        %v4144 = vadd.f32 0.0, %v4143
        %v4145 = vpop.f32.mrf.mxu0
        %4146 = vmatprep.mubr.f32.mxu0 0.0
        %4147 = vmatmul.mubr.f32.gmra.mxu0 %v3424
        %v4148 = vpop.f32.mrf.mxu0
        %v4149 = vadd.f32 0.0, %v4148
        %v4150 = vpop.f32.mrf.mxu0
        %4151 = vmatprep.mubr.f32.mxu0 0.0
        %4152 = vmatmul.mubr.f32.gmra.mxu0 %v3427
        %v4153 = vpop.f32.mrf.mxu0
        %v4154 = vadd.f32 0.0, %v4153
        %v4155 = vpop.f32.mrf.mxu0
        %4156 = vmatprep.mubr.f32.mxu0 0.0
        %4157 = vmatmul.mubr.f32.gmra.mxu0 %v3430
        %v4158 = vpop.f32.mrf.mxu0
        %v4159 = vadd.f32 0.0, %v4158
        %v4160 = vpop.f32.mrf.mxu0
        %4161 = vmatprep.mubr.f32.mxu0 0.0
        %4162 = vmatmul.mubr.f32.gmra.mxu0 %v3433
        %v4163 = vpop.f32.mrf.mxu0
        %v4164 = vadd.f32 0.0, %v4163
        %v4165 = vpop.f32.mrf.mxu0
        %4166 = vmatprep.mubr.f32.mxu0 0.0
        %4167 = vmatmul.mubr.f32.gmra.mxu0 %v3436
        %v4168 = vpop.f32.mrf.mxu0
        %v4169 = vadd.f32 0.0, %v4168
        %v4170 = vpop.f32.mrf.mxu0
        %4171 = vmatprep.mubr.f32.mxu0 0.0
        %4172 = vmatmul.mubr.f32.gmra.mxu0 %v3439
        %v4173 = vpop.f32.mrf.mxu0
        %v4174 = vadd.f32 0.0, %v4173
        %v4175 = vpop.f32.mrf.mxu0
        %4176 = vmatprep.mubr.f32.mxu0 0.0
        %4177 = vmatmul.mubr.f32.gmra.mxu0 %v3442
        %v4178 = vpop.f32.mrf.mxu0
        %v4179 = vadd.f32 0.0, %v4178
        %v4180 = vpop.f32.mrf.mxu0
        %4181 = vmatprep.mubr.f32.mxu0 0.0
        %4182 = vmatmul.mubr.f32.gmra.mxu0 %v3445
        %v4183 = vpop.f32.mrf.mxu0
        %v4184 = vadd.f32 0.0, %v4183
        %v4185 = vpop.f32.mrf.mxu0
        %4186 = vmatprep.mubr.f32.mxu0 0.0
        %4187 = vmatmul.mubr.f32.gmra.mxu0 %v3448
        %v4188 = vpop.f32.mrf.mxu0
        %v4189 = vadd.f32 0.0, %v4188
        %v4190 = vpop.f32.mrf.mxu0
        %4191 = vmatprep.mubr.f32.mxu0 0.0
        %4192 = vmatmul.mubr.f32.gmra.mxu0 %v3451
        %v4193 = vpop.f32.mrf.mxu0
        %v4194 = vadd.f32 0.0, %v4193
        %v4195 = vpop.f32.mrf.mxu0
        %4196 = vmatprep.mubr.f32.mxu0 0.0
        %4197 = vmatmul.mubr.f32.gmra.mxu0 %v3454
        %v4198 = vpop.f32.mrf.mxu0
        %v4199 = vadd.f32 0.0, %v4198
        %v4200 = vpop.f32.mrf.mxu0
        %4201 = vmatprep.mubr.f32.mxu0 0.0
        %4202 = vmatmul.mubr.f32.gmra.mxu0 %v3457
        %v4203 = vpop.f32.mrf.mxu0
        %v4204 = vadd.f32 0.0, %v4203
        %v4205 = vpop.f32.mrf.mxu0
        %4206 = vmatprep.mubr.f32.mxu0 0.0
        %4207 = vmatmul.mubr.f32.gmra.mxu0 %v3460
        %v4208 = vpop.f32.mrf.mxu0
        %v4209 = vadd.f32 0.0, %v4208
        %v4210 = vpop.f32.mrf.mxu0
        %4211 = vmatprep.mubr.f32.mxu0 0.0
        %4212 = vmatmul.mubr.f32.gmra.mxu0 %v3463
        %v4213 = vpop.f32.mrf.mxu0
        %v4214 = vadd.f32 0.0, %v4213
        %v4215 = vpop.f32.mrf.mxu0
        %4216 = vmatprep.mubr.f32.mxu0 0.0
        %4217 = vmatmul.mubr.f32.gmra.mxu0 %v3466
        %v4218 = vpop.f32.mrf.mxu0
        %v4219 = vadd.f32 0.0, %v4218
        %v4220 = vpop.f32.mrf.mxu0
        %4221 = vmatprep.mubr.f32.mxu0 0.0
        %4222 = vmatmul.mubr.f32.gmra.mxu0 %v3469
        %v4223 = vpop.f32.mrf.mxu0
        %v4224 = vadd.f32 0.0, %v4223
        %v4225 = vpop.f32.mrf.mxu0
        %4226 = vmatprep.mubr.f32.mxu0 0.0
        %4227 = vmatmul.mubr.f32.gmra.mxu0 %v3472
        %v4228 = vpop.f32.mrf.mxu0
        %v4229 = vadd.f32 0.0, %v4228
        %v4230 = vpop.f32.mrf.mxu0
        %4231 = vmatprep.mubr.f32.mxu0 0.0
        %4232 = vmatmul.mubr.f32.gmra.mxu0 %v3475
        %v4233 = vpop.f32.mrf.mxu0
        %v4234 = vadd.f32 0.0, %v4233
        %v4235 = vpop.f32.mrf.mxu0
        %4236 = vmatprep.mubr.f32.mxu0 0.0
        %4237 = vmatmul.mubr.f32.gmra.mxu0 %v3478
        %v4238 = vpop.f32.mrf.mxu0
        %v4239 = vadd.f32 0.0, %v4238
        %v4240 = vpop.f32.mrf.mxu0
        %4241 = vmatprep.mubr.f32.mxu0 0.0
        %4242 = vmatmul.mubr.f32.gmra.mxu0 %v3481
        %v4243 = vpop.f32.mrf.mxu0
        %v4244 = vadd.f32 0.0, %v4243
        %v4245 = vpop.f32.mrf.mxu0
        %4246 = vmatprep.mubr.f32.mxu0 0.0
        %4247 = vmatmul.mubr.f32.gmra.mxu0 %v3484
        %v4248 = vpop.f32.mrf.mxu0
        %v4249 = vadd.f32 0.0, %v4248
        %v4250 = vpop.f32.mrf.mxu0
        %4251 = vmatprep.mubr.f32.mxu0 0.0
        %4252 = vmatmul.mubr.f32.gmra.mxu0 %v3487
        %v4253 = vpop.f32.mrf.mxu0
        %v4254 = vadd.f32 0.0, %v4253
        %v4255 = vpop.f32.mrf.mxu0
        %4256 = vmatprep.mubr.f32.mxu0 0.0
        %4257 = vmatmul.mubr.f32.gmra.mxu0 %v3490
        %v4258 = vpop.f32.mrf.mxu0
        %v4259 = vadd.f32 0.0, %v4258
        %v4260 = vpop.f32.mrf.mxu0
        %4261 = vmatprep.mubr.f32.mxu0 0.0
        %4262 = vmatmul.mubr.f32.gmra.mxu0 %v3493
        %v4263 = vpop.f32.mrf.mxu0
        %v4264 = vadd.f32 0.0, %v4263
        %v4265 = vpop.f32.mrf.mxu0
        %4266 = vmatprep.mubr.f32.mxu0 0.0
        %4267 = vmatmul.mubr.f32.gmra.mxu0 %v3496
        %v4268 = vpop.f32.mrf.mxu0
        %v4269 = vadd.f32 0.0, %v4268
        %v4270 = vpop.f32.mrf.mxu0
        %4271 = vmatprep.mubr.f32.mxu0 0.0
        %4272 = vmatmul.mubr.f32.gmra.mxu0 %v3499
        %v4273 = vpop.f32.mrf.mxu0
        %v4274 = vadd.f32 0.0, %v4273
        %v4275 = vpop.f32.mrf.mxu0
        %4276 = vmatprep.mubr.f32.mxu0 0.0
        %4277 = vmatmul.mubr.f32.gmra.mxu0 %v3502
        %v4278 = vpop.f32.mrf.mxu0
        %v4279 = vadd.f32 0.0, %v4278
        %v4280 = vpop.f32.mrf.mxu0
        %4281 = vmatprep.mubr.f32.mxu0 0.0
        %4282 = vmatmul.mubr.f32.gmra.mxu0 %v3505
        %v4283 = vpop.f32.mrf.mxu0
        %v4284 = vadd.f32 0.0, %v4283
        %v4285 = vpop.f32.mrf.mxu0
        %4286 = vmatprep.mubr.f32.mxu0 0.0
        %4287 = vmatmul.mubr.f32.gmra.mxu0 %v3508
        %v4288 = vpop.f32.mrf.mxu0
        %v4289 = vadd.f32 0.0, %v4288
        %v4290 = vpop.f32.mrf.mxu0
        %4291 = vmatprep.mubr.f32.mxu0 0.0
        %4292 = vmatmul.mubr.f32.gmra.mxu0 %v3511
        %v4293 = vpop.f32.mrf.mxu0
        %v4294 = vadd.f32 0.0, %v4293
        %v4295 = vpop.f32.mrf.mxu0
        %4296 = vmatprep.mubr.f32.mxu0 0.0
        %4297 = vmatmul.mubr.f32.gmra.mxu0 %v3514
        %v4298 = vpop.f32.mrf.mxu0
        %v4299 = vadd.f32 0.0, %v4298
        %v4300 = vpop.f32.mrf.mxu0
        %4301 = vmatprep.mubr.f32.mxu0 0.0
        %4302 = vmatmul.mubr.f32.gmra.mxu0 %v3517
        %v4303 = vpop.f32.mrf.mxu0
        %v4304 = vadd.f32 0.0, %v4303
        %v4305 = vpop.f32.mrf.mxu0
        %4306 = vmatprep.mubr.f32.mxu0 0.0
        %4307 = vmatmul.mubr.f32.gmra.mxu0 %v3520
        %v4308 = vpop.f32.mrf.mxu0
        %v4309 = vadd.f32 0.0, %v4308
        %v4310 = vpop.f32.mrf.mxu0
        %4311 = vmatprep.mubr.f32.mxu0 0.0
        %4312 = vmatmul.mubr.f32.gmra.mxu0 %v3523
        %v4313 = vpop.f32.mrf.mxu0
        %v4314 = vadd.f32 0.0, %v4313
        %v4315 = vpop.f32.mrf.mxu0
        %4316 = vmatprep.mubr.f32.mxu0 0.0
        %4317 = vmatmul.mubr.f32.gmra.mxu0 %v3526
        %v4318 = vpop.f32.mrf.mxu0
        %v4319 = vadd.f32 0.0, %v4318
        %v4320 = vpop.f32.mrf.mxu0
        %4321 = vmatprep.mubr.f32.mxu0 0.0
        %4322 = vmatmul.mubr.f32.gmra.mxu0 %v3529
        %v4323 = vpop.f32.mrf.mxu0
        %v4324 = vadd.f32 0.0, %v4323
        %v4325 = vpop.f32.mrf.mxu0
        %4326 = vmatprep.mubr.f32.mxu0 0.0
        %4327 = vmatmul.mubr.f32.gmra.mxu0 %v3532
        %v4328 = vpop.f32.mrf.mxu0
        %v4329 = vadd.f32 0.0, %v4328
        %v4330 = vpop.f32.mrf.mxu0
        %4331 = vmatprep.mubr.f32.mxu0 0.0
        %4332 = vmatmul.mubr.f32.gmra.mxu0 %v3535
        %v4333 = vpop.f32.mrf.mxu0
        %v4334 = vadd.f32 0.0, %v4333
        %v4335 = vpop.f32.mrf.mxu0
        %4336 = vmatprep.mubr.f32.mxu0 0.0
        %4337 = vmatmul.mubr.f32.gmra.mxu0 %v3538
        %v4338 = vpop.f32.mrf.mxu0
        %v4339 = vadd.f32 0.0, %v4338
        %v4340 = vpop.f32.mrf.mxu0
        %4341 = vdwg.mxu0
        %4342 = vst [vmem:[%s157] sm:$0xff] %v913
        %4343 = vst [vmem:[%s157 + $0x8] sm:$0xff] %v915
        %4344 = vst [vmem:[%s157 + $0x10] sm:$0xff] %v1266
        %4345 = vst [vmem:[%s157 + $0x18] sm:$0xff] %v919
        %4346 = vst [vmem:[%s157 + $0x20] sm:$0xff] %v921
        %4347 = vst [vmem:[%s157 + $0x28] sm:$0xff] %v1271
        %4348 = vst [vmem:[%s157 + $0x30] sm:$0xff] %v925
        %4349 = vst [vmem:[%s157 + $0x38] sm:$0xff] %v927
        %4350 = vst [vmem:[%s157 + $0x40] sm:$0xff] %v1276
        %4351 = vst [vmem:[%s157 + $0x48] sm:$0xff] %v931
        %4352 = vst [vmem:[%s157 + $0x50] sm:$0xff] %v933
        %4353 = vst [vmem:[%s157 + $0x58] sm:$0xff] %v1281
        %4354 = vst [vmem:[%s157 + $0x60] sm:$0xff] %v937
        %4355 = vst [vmem:[%s157 + $0x68] sm:$0xff] %v939
        %4356 = vst [vmem:[%s157 + $0x70] sm:$0xff] %v1286
        %4357 = vst [vmem:[%s157 + $0x78] sm:$0xff] %v943
        %4358 = vst [vmem:[%s157 + $0x80] sm:$0xff] %v945
        %4359 = vst [vmem:[%s157 + $0x88] sm:$0xff] %v1291
        %4360 = vst [vmem:[%s157 + $0x90] sm:$0xff] %v949
        %4361 = vst [vmem:[%s157 + $0x98] sm:$0xff] %v951
        %4362 = vst [vmem:[%s157 + $0xa0] sm:$0xff] %v1296
        %4363 = vst [vmem:[%s157 + $0xa8] sm:$0xff] %v955
        %4364 = vst [vmem:[%s157 + $0xb0] sm:$0xff] %v957
        %4365 = vst [vmem:[%s157 + $0xb8] sm:$0xff] %v1301
        %4366 = vst [vmem:[%s157 + $0xc0] sm:$0xff] %v961
        %4367 = vst [vmem:[%s157 + $0xc8] sm:$0xff] %v963
        %4368 = vst [vmem:[%s157 + $0xd0] sm:$0xff] %v1306
        %4369 = vst [vmem:[%s157 + $0xd8] sm:$0xff] %v967
        %4370 = vst [vmem:[%s157 + $0xe0] sm:$0xff] %v969
        %4371 = vst [vmem:[%s157 + $0xe8] sm:$0xff] %v1311
        %4372 = vst [vmem:[%s157 + $0xf0] sm:$0xff] %v973
        %4373 = vst [vmem:[%s157 + $0xf8] sm:$0xff] %v975
        %4374 = vst [vmem:[%s157 + $0x100] sm:$0xff] %v1316
        %4375 = vst [vmem:[%s157 + $0x108] sm:$0xff] %v979
        %4376 = vst [vmem:[%s157 + $0x110] sm:$0xff] %v981
        %4377 = vst [vmem:[%s157 + $0x118] sm:$0xff] %v1321
        %4378 = vst [vmem:[%s157 + $0x120] sm:$0xff] %v985
        %4379 = vst [vmem:[%s157 + $0x128] sm:$0xff] %v987
        %4380 = vst [vmem:[%s157 + $0x130] sm:$0xff] %v1326
        %4381 = vst [vmem:[%s157 + $0x138] sm:$0xff] %v991
        %4382 = vst [vmem:[%s157 + $0x140] sm:$0xff] %v993
        %4383 = vst [vmem:[%s157 + $0x148] sm:$0xff] %v1331
        %4384 = vst [vmem:[%s157 + $0x150] sm:$0xff] %v997
        %4385 = vst [vmem:[%s157 + $0x158] sm:$0xff] %v999
        %4386 = vst [vmem:[%s157 + $0x160] sm:$0xff] %v1336
        %4387 = vst [vmem:[%s157 + $0x168] sm:$0xff] %v1003
        %4388 = vst [vmem:[%s157 + $0x170] sm:$0xff] %v1005
        %4389 = vst [vmem:[%s157 + $0x178] sm:$0xff] %v1341
        %4390 = vst [vmem:[%s157 + $0x180] sm:$0xff] %v1009
        %4391 = vst [vmem:[%s157 + $0x188] sm:$0xff] %v1011
        %4392 = vst [vmem:[%s157 + $0x190] sm:$0xff] %v1346
        %4393 = vst [vmem:[%s157 + $0x198] sm:$0xff] %v1015
        %4394 = vst [vmem:[%s157 + $0x1a0] sm:$0xff] %v1017
        %4395 = vst [vmem:[%s157 + $0x1a8] sm:$0xff] %v1351
        %4396 = vst [vmem:[%s157 + $0x1b0] sm:$0xff] %v1021
        %4397 = vst [vmem:[%s157 + $0x1b8] sm:$0xff] %v1023
        %4398 = vst [vmem:[%s157 + $0x1c0] sm:$0xff] %v1356
        %4399 = vst [vmem:[%s157 + $0x1c8] sm:$0xff] %v1027
        %4400 = vst [vmem:[%s157 + $0x1d0] sm:$0xff] %v1029
        %4401 = vst [vmem:[%s157 + $0x1d8] sm:$0xff] %v1361
        %4402 = vst [vmem:[%s157 + $0x1e0] sm:$0xff] %v1033
        %4403 = vst [vmem:[%s157 + $0x1e8] sm:$0xff] %v1035
        %4404 = vst [vmem:[%s157 + $0x1f0] sm:$0xff] %v1366
        %4405 = vst [vmem:[%s157 + $0x1f8] sm:$0xff] %v1039
        %4406 = vst [vmem:[%s157 + $0x200] sm:$0xff] %v1041
        %4407 = vst [vmem:[%s157 + $0x208] sm:$0xff] %v1371
        %4408 = vst [vmem:[%s157 + $0x210] sm:$0xff] %v1045
        %4409 = vst [vmem:[%s157 + $0x218] sm:$0xff] %v1047
        %4410 = vst [vmem:[%s157 + $0x220] sm:$0xff] %v1376
        %4411 = vst [vmem:[%s157 + $0x228] sm:$0xff] %v1051
        %4412 = vst [vmem:[%s157 + $0x230] sm:$0xff] %v1053
        %4413 = vst [vmem:[%s157 + $0x238] sm:$0xff] %v1381
        %4414 = vst [vmem:[%s157 + $0x240] sm:$0xff] %v1057
        %4415 = vst [vmem:[%s157 + $0x248] sm:$0xff] %v1059
        %4416 = vst [vmem:[%s157 + $0x250] sm:$0xff] %v1386
        %4417 = vst [vmem:[%s157 + $0x258] sm:$0xff] %v1063
        %4418 = vst [vmem:[%s157 + $0x260] sm:$0xff] %v1065
        %4419 = vst [vmem:[%s157 + $0x268] sm:$0xff] %v1391
        %4420 = vst [vmem:[%s157 + $0x270] sm:$0xff] %v1069
        %4421 = vst [vmem:[%s157 + $0x278] sm:$0xff] %v1071
        %4422 = vst [vmem:[%s157 + $0x280] sm:$0xff] %v1396
        %4423 = vst [vmem:[%s157 + $0x288] sm:$0xff] %v1075
        %4424 = vst [vmem:[%s157 + $0x290] sm:$0xff] %v1077
        %4425 = vst [vmem:[%s157 + $0x298] sm:$0xff] %v1401
        %4426 = vst [vmem:[%s157 + $0x2a0] sm:$0xff] %v1081
        %4427 = vst [vmem:[%s157 + $0x2a8] sm:$0xff] %v1083
        %4428 = vst [vmem:[%s157 + $0x2b0] sm:$0xff] %v1406
        %4429 = vst [vmem:[%s157 + $0x2b8] sm:$0xff] %v1087
        %4430 = vst [vmem:[%s157 + $0x2c0] sm:$0xff] %v1089
        %4431 = vst [vmem:[%s157 + $0x2c8] sm:$0xff] %v1411
        %4432 = vst [vmem:[%s157 + $0x2d0] sm:$0xff] %v1093
        %4433 = vst [vmem:[%s157 + $0x2d8] sm:$0xff] %v1095
        %4434 = vst [vmem:[%s157 + $0x2e0] sm:$0xff] %v1416
        %4435 = vst [vmem:[%s157 + $0x2e8] sm:$0xff] %v1099
        %4436 = vst [vmem:[%s157 + $0x2f0] sm:$0xff] %v1101
        %4437 = vst [vmem:[%s157 + $0x2f8] sm:$0xff] %v1421
        %4438 = vst [vmem:[%s157 + $0x300] sm:$0xff] %v1105
        %4439 = vst [vmem:[%s157 + $0x308] sm:$0xff] %v1107
        %4440 = vst [vmem:[%s157 + $0x310] sm:$0xff] %v1426
        %4441 = vst [vmem:[%s157 + $0x318] sm:$0xff] %v1111
        %4442 = vst [vmem:[%s157 + $0x320] sm:$0xff] %v1113
        %4443 = vst [vmem:[%s157 + $0x328] sm:$0xff] %v1431
        %4444 = vst [vmem:[%s157 + $0x330] sm:$0xff] %v1117
        %4445 = vst [vmem:[%s157 + $0x338] sm:$0xff] %v1119
        %4446 = vst [vmem:[%s157 + $0x340] sm:$0xff] %v1436
        %4447 = vst [vmem:[%s157 + $0x348] sm:$0xff] %v1123
        %4448 = vst [vmem:[%s157 + $0x350] sm:$0xff] %v1125
        %4449 = vst [vmem:[%s157 + $0x358] sm:$0xff] %v1441
        %4450 = vst [vmem:[%s157 + $0x360] sm:$0xff] %v1129
        %4451 = vst [vmem:[%s157 + $0x368] sm:$0xff] %v1131
        %4452 = vst [vmem:[%s157 + $0x370] sm:$0xff] %v1446
        %4453 = vst [vmem:[%s157 + $0x378] sm:$0xff] %v1135
        %4454 = vst [vmem:[%s157 + $0x380] sm:$0xff] %v1137
        %4455 = vst [vmem:[%s157 + $0x388] sm:$0xff] %v1451
        %4456 = vst [vmem:[%s157 + $0x390] sm:$0xff] %v1141
        %4457 = vst [vmem:[%s157 + $0x398] sm:$0xff] %v1143
        %4458 = vst [vmem:[%s157 + $0x3a0] sm:$0xff] %v1456
        %4459 = vst [vmem:[%s157 + $0x3a8] sm:$0xff] %v1147
        %4460 = vst [vmem:[%s157 + $0x3b0] sm:$0xff] %v1149
        %4461 = vst [vmem:[%s157 + $0x3b8] sm:$0xff] %v1461
        %4462 = vst [vmem:[%s157 + $0x3c0] sm:$0xff] %v1153
        %4463 = vst [vmem:[%s157 + $0x3c8] sm:$0xff] %v1155
        %4464 = vst [vmem:[%s157 + $0x3d0] sm:$0xff] %v1466
        %4465 = vst [vmem:[%s157 + $0x3d8] sm:$0xff] %v1159
        %4466 = vst [vmem:[%s157 + $0x3e0] sm:$0xff] %v1161
        %4467 = vst [vmem:[%s157 + $0x3e8] sm:$0xff] %v1471
        %4468 = vst [vmem:[%s157 + $0x3f0] sm:$0xff] %v1165
        %4469 = vst [vmem:[%s157 + $0x3f8] sm:$0xff] %v1167
        %4470 = vst [vmem:[%s157 + $0x400] sm:$0xff] %v1476
        %4471 = vst [vmem:[%s157 + $0x408] sm:$0xff] %v1171
        %4472 = vst [vmem:[%s157 + $0x410] sm:$0xff] %v1173
        %4473 = vst [vmem:[%s157 + $0x418] sm:$0xff] %v1481
        %4474 = vst [vmem:[%s157 + $0x420] sm:$0xff] %v1177
        %4475 = vst [vmem:[%s157 + $0x428] sm:$0xff] %v1179
        %4476 = vst [vmem:[%s157 + $0x430] sm:$0xff] %v1486
        %4477 = vst [vmem:[%s157 + $0x438] sm:$0xff] %v1183
        %4478 = vst [vmem:[%s157 + $0x440] sm:$0xff] %v1185
        %4479 = vst [vmem:[%s157 + $0x448] sm:$0xff] %v1491
        %4480 = vst [vmem:[%s157 + $0x450] sm:$0xff] %v1189
        %4481 = vst [vmem:[%s157 + $0x458] sm:$0xff] %v1191
        %4482 = vst [vmem:[%s157 + $0x460] sm:$0xff] %v1496
        %4483 = vst [vmem:[%s157 + $0x468] sm:$0xff] %v1195
        %4484 = vst [vmem:[%s157 + $0x470] sm:$0xff] %v1197
        %4485 = vst [vmem:[%s157 + $0x478] sm:$0xff] %v1501
        %4486 = vst [vmem:[%s157 + $0x480] sm:$0xff] %v1859
        %4487 = vst [vmem:[%s157 + $0x488] sm:$0xff] %v1861
        %4488 = vst [vmem:[%s157 + $0x490] sm:$0xff] %v2212
        %4489 = vst [vmem:[%s157 + $0x498] sm:$0xff] %v1865
        %4490 = vst [vmem:[%s157 + $0x4a0] sm:$0xff] %v1867
        %4491 = vst [vmem:[%s157 + $0x4a8] sm:$0xff] %v2217
        %4492 = vst [vmem:[%s157 + $0x4b0] sm:$0xff] %v1871
        %4493 = vst [vmem:[%s157 + $0x4b8] sm:$0xff] %v1873
        %4494 = vst [vmem:[%s157 + $0x4c0] sm:$0xff] %v2222
        %4495 = vst [vmem:[%s157 + $0x4c8] sm:$0xff] %v1877
        %4496 = vst [vmem:[%s157 + $0x4d0] sm:$0xff] %v1879
        %4497 = vst [vmem:[%s157 + $0x4d8] sm:$0xff] %v2227
        %4498 = vst [vmem:[%s157 + $0x4e0] sm:$0xff] %v1883
        %4499 = vst [vmem:[%s157 + $0x4e8] sm:$0xff] %v1885
        %4500 = vst [vmem:[%s157 + $0x4f0] sm:$0xff] %v2232
        %4501 = vst [vmem:[%s157 + $0x4f8] sm:$0xff] %v1889
        %4502 = vst [vmem:[%s157 + $0x500] sm:$0xff] %v1891
        %4503 = vst [vmem:[%s157 + $0x508] sm:$0xff] %v2237
        %4504 = vst [vmem:[%s157 + $0x510] sm:$0xff] %v1895
        %4505 = vst [vmem:[%s157 + $0x518] sm:$0xff] %v1897
        %4506 = vst [vmem:[%s157 + $0x520] sm:$0xff] %v2242
        %4507 = vst [vmem:[%s157 + $0x528] sm:$0xff] %v1901
        %4508 = vst [vmem:[%s157 + $0x530] sm:$0xff] %v1903
        %4509 = vst [vmem:[%s157 + $0x538] sm:$0xff] %v2247
        %4510 = vst [vmem:[%s157 + $0x540] sm:$0xff] %v1907
        %4511 = vst [vmem:[%s157 + $0x548] sm:$0xff] %v1909
        %4512 = vst [vmem:[%s157 + $0x550] sm:$0xff] %v2252
        %4513 = vst [vmem:[%s157 + $0x558] sm:$0xff] %v1913
        %4514 = vst [vmem:[%s157 + $0x560] sm:$0xff] %v1915
        %4515 = vst [vmem:[%s157 + $0x568] sm:$0xff] %v2257
        %4516 = vst [vmem:[%s157 + $0x570] sm:$0xff] %v1919
        %4517 = vst [vmem:[%s157 + $0x578] sm:$0xff] %v1921
        %4518 = vst [vmem:[%s157 + $0x580] sm:$0xff] %v2262
        %4519 = vst [vmem:[%s157 + $0x588] sm:$0xff] %v1925
        %4520 = vst [vmem:[%s157 + $0x590] sm:$0xff] %v1927
        %4521 = vst [vmem:[%s157 + $0x598] sm:$0xff] %v2267
        %4522 = vst [vmem:[%s157 + $0x5a0] sm:$0xff] %v1931
        %4523 = vst [vmem:[%s157 + $0x5a8] sm:$0xff] %v1933
        %4524 = vst [vmem:[%s157 + $0x5b0] sm:$0xff] %v2272
        %4525 = vst [vmem:[%s157 + $0x5b8] sm:$0xff] %v1937
        %4526 = vst [vmem:[%s157 + $0x5c0] sm:$0xff] %v1939
        %4527 = vst [vmem:[%s157 + $0x5c8] sm:$0xff] %v2277
        %4528 = vst [vmem:[%s157 + $0x5d0] sm:$0xff] %v1943
        %4529 = vst [vmem:[%s157 + $0x5d8] sm:$0xff] %v1945
        %4530 = vst [vmem:[%s157 + $0x5e0] sm:$0xff] %v2282
        %4531 = vst [vmem:[%s157 + $0x5e8] sm:$0xff] %v1949
        %4532 = vst [vmem:[%s157 + $0x5f0] sm:$0xff] %v1951
        %4533 = vst [vmem:[%s157 + $0x5f8] sm:$0xff] %v2287
        %4534 = vst [vmem:[%s157 + $0x600] sm:$0xff] %v1955
        %4535 = vst [vmem:[%s157 + $0x608] sm:$0xff] %v1957
        %4536 = vst [vmem:[%s157 + $0x610] sm:$0xff] %v2292
        %4537 = vst [vmem:[%s157 + $0x618] sm:$0xff] %v1961
        %4538 = vst [vmem:[%s157 + $0x620] sm:$0xff] %v1963
        %4539 = vst [vmem:[%s157 + $0x628] sm:$0xff] %v2297
        %4540 = vst [vmem:[%s157 + $0x630] sm:$0xff] %v1967
        %4541 = vst [vmem:[%s157 + $0x638] sm:$0xff] %v1969
        %4542 = vst [vmem:[%s157 + $0x640] sm:$0xff] %v2302
        %4543 = vst [vmem:[%s157 + $0x648] sm:$0xff] %v1973
        %4544 = vst [vmem:[%s157 + $0x650] sm:$0xff] %v1975
        %4545 = vst [vmem:[%s157 + $0x658] sm:$0xff] %v2307
        %4546 = vst [vmem:[%s157 + $0x660] sm:$0xff] %v1979
        %4547 = vst [vmem:[%s157 + $0x668] sm:$0xff] %v1981
        %4548 = vst [vmem:[%s157 + $0x670] sm:$0xff] %v2312
        %4549 = vst [vmem:[%s157 + $0x678] sm:$0xff] %v1985
        %4550 = vst [vmem:[%s157 + $0x680] sm:$0xff] %v1987
        %4551 = vst [vmem:[%s157 + $0x688] sm:$0xff] %v2317
        %4552 = vst [vmem:[%s157 + $0x690] sm:$0xff] %v1991
        %4553 = vst [vmem:[%s157 + $0x698] sm:$0xff] %v1993
        %4554 = vst [vmem:[%s157 + $0x6a0] sm:$0xff] %v2322
        %4555 = vst [vmem:[%s157 + $0x6a8] sm:$0xff] %v1997
        %4556 = vst [vmem:[%s157 + $0x6b0] sm:$0xff] %v1999
        %4557 = vst [vmem:[%s157 + $0x6b8] sm:$0xff] %v2327
        %4558 = vst [vmem:[%s157 + $0x6c0] sm:$0xff] %v2003
        %4559 = vst [vmem:[%s157 + $0x6c8] sm:$0xff] %v2005
        %4560 = vst [vmem:[%s157 + $0x6d0] sm:$0xff] %v2332
        %4561 = vst [vmem:[%s157 + $0x6d8] sm:$0xff] %v2009
        %4562 = vst [vmem:[%s157 + $0x6e0] sm:$0xff] %v2011
        %4563 = vst [vmem:[%s157 + $0x6e8] sm:$0xff] %v2337
        %4564 = vst [vmem:[%s157 + $0x6f0] sm:$0xff] %v2015
        %4565 = vst [vmem:[%s157 + $0x6f8] sm:$0xff] %v2017
        %4566 = vst [vmem:[%s157 + $0x700] sm:$0xff] %v2342
        %4567 = vst [vmem:[%s157 + $0x708] sm:$0xff] %v2021
        %4568 = vst [vmem:[%s157 + $0x710] sm:$0xff] %v2023
        %4569 = vst [vmem:[%s157 + $0x718] sm:$0xff] %v2347
        %4570 = vst [vmem:[%s157 + $0x720] sm:$0xff] %v2027
        %4571 = vst [vmem:[%s157 + $0x728] sm:$0xff] %v2029
        %4572 = vst [vmem:[%s157 + $0x730] sm:$0xff] %v2352
        %4573 = vst [vmem:[%s157 + $0x738] sm:$0xff] %v2033
        %4574 = vst [vmem:[%s157 + $0x740] sm:$0xff] %v2035
        %4575 = vst [vmem:[%s157 + $0x748] sm:$0xff] %v2357
        %4576 = vst [vmem:[%s157 + $0x750] sm:$0xff] %v2039
        %4577 = vst [vmem:[%s157 + $0x758] sm:$0xff] %v2041
        %4578 = vst [vmem:[%s157 + $0x760] sm:$0xff] %v2362
        %4579 = vst [vmem:[%s157 + $0x768] sm:$0xff] %v2045
        %4580 = vst [vmem:[%s157 + $0x770] sm:$0xff] %v2047
        %4581 = vst [vmem:[%s157 + $0x778] sm:$0xff] %v2367
        %4582 = vst [vmem:[%s157 + $0x780] sm:$0xff] %v2051
        %4583 = vst [vmem:[%s157 + $0x788] sm:$0xff] %v2053
        %4584 = vst [vmem:[%s157 + $0x790] sm:$0xff] %v2372
        %4585 = vst [vmem:[%s157 + $0x798] sm:$0xff] %v2057
        %4586 = vst [vmem:[%s157 + $0x7a0] sm:$0xff] %v2059
        %4587 = vst [vmem:[%s157 + $0x7a8] sm:$0xff] %v2377
        %4588 = vst [vmem:[%s157 + $0x7b0] sm:$0xff] %v2063
        %4589 = vst [vmem:[%s157 + $0x7b8] sm:$0xff] %v2065
        %4590 = vst [vmem:[%s157 + $0x7c0] sm:$0xff] %v2382
        %4591 = vst [vmem:[%s157 + $0x7c8] sm:$0xff] %v2069
        %4592 = vst [vmem:[%s157 + $0x7d0] sm:$0xff] %v2071
        %4593 = vst [vmem:[%s157 + $0x7d8] sm:$0xff] %v2387
        %4594 = vst [vmem:[%s157 + $0x7e0] sm:$0xff] %v2075
        %4595 = vst [vmem:[%s157 + $0x7e8] sm:$0xff] %v2077
        %4596 = vst [vmem:[%s157 + $0x7f0] sm:$0xff] %v2392
        %4597 = vst [vmem:[%s157 + $0x7f8] sm:$0xff] %v2081
        %4598 = vst [vmem:[%s157 + $0x800] sm:$0xff] %v2083
        %4599 = vst [vmem:[%s157 + $0x808] sm:$0xff] %v2397
        %4600 = vst [vmem:[%s157 + $0x810] sm:$0xff] %v2087
        %4601 = vst [vmem:[%s157 + $0x818] sm:$0xff] %v2089
        %4602 = vst [vmem:[%s157 + $0x820] sm:$0xff] %v2402
        %4603 = vst [vmem:[%s157 + $0x828] sm:$0xff] %v2093
        %4604 = vst [vmem:[%s157 + $0x830] sm:$0xff] %v2095
        %4605 = vst [vmem:[%s157 + $0x838] sm:$0xff] %v2407
        %4606 = vst [vmem:[%s157 + $0x840] sm:$0xff] %v2099
        %4607 = vst [vmem:[%s157 + $0x848] sm:$0xff] %v2101
        %4608 = vst [vmem:[%s157 + $0x850] sm:$0xff] %v2412
        %4609 = vst [vmem:[%s157 + $0x858] sm:$0xff] %v2105
        %4610 = vst [vmem:[%s157 + $0x860] sm:$0xff] %v2107
        %4611 = vst [vmem:[%s157 + $0x868] sm:$0xff] %v2417
        %4612 = vst [vmem:[%s157 + $0x870] sm:$0xff] %v2111
        %4613 = vst [vmem:[%s157 + $0x878] sm:$0xff] %v2113
        %4614 = vst [vmem:[%s157 + $0x880] sm:$0xff] %v2422
        %4615 = vst [vmem:[%s157 + $0x888] sm:$0xff] %v2117
        %4616 = vst [vmem:[%s157 + $0x890] sm:$0xff] %v2119
        %4617 = vst [vmem:[%s157 + $0x898] sm:$0xff] %v2427
        %4618 = vst [vmem:[%s157 + $0x8a0] sm:$0xff] %v2123
        %4619 = vst [vmem:[%s157 + $0x8a8] sm:$0xff] %v2125
        %4620 = vst [vmem:[%s157 + $0x8b0] sm:$0xff] %v2432
        %4621 = vst [vmem:[%s157 + $0x8b8] sm:$0xff] %v2129
        %4622 = vst [vmem:[%s157 + $0x8c0] sm:$0xff] %v2131
        %4623 = vst [vmem:[%s157 + $0x8c8] sm:$0xff] %v2437
        %4624 = vst [vmem:[%s157 + $0x8d0] sm:$0xff] %v2135
        %4625 = vst [vmem:[%s157 + $0x8d8] sm:$0xff] %v2137
        %4626 = vst [vmem:[%s157 + $0x8e0] sm:$0xff] %v2442
        %4627 = vst [vmem:[%s157 + $0x8e8] sm:$0xff] %v2141
        %4628 = vst [vmem:[%s157 + $0x8f0] sm:$0xff] %v2143
        %4629 = vst [vmem:[%s157 + $0x8f8] sm:$0xff] %v2447
        %4630 = vst [vmem:[%s157 + $0x900] sm:$0xff] %v2805
        %4631 = vst [vmem:[%s157 + $0x908] sm:$0xff] %v2807
        %4632 = vst [vmem:[%s157 + $0x910] sm:$0xff] %v3158
        %4633 = vst [vmem:[%s157 + $0x918] sm:$0xff] %v2811
        %4634 = vst [vmem:[%s157 + $0x920] sm:$0xff] %v2813
        %4635 = vst [vmem:[%s157 + $0x928] sm:$0xff] %v3163
        %4636 = vst [vmem:[%s157 + $0x930] sm:$0xff] %v2817
        %4637 = vst [vmem:[%s157 + $0x938] sm:$0xff] %v2819
        %4638 = vst [vmem:[%s157 + $0x940] sm:$0xff] %v3168
        %4639 = vst [vmem:[%s157 + $0x948] sm:$0xff] %v2823
        %4640 = vst [vmem:[%s157 + $0x950] sm:$0xff] %v2825
        %4641 = vst [vmem:[%s157 + $0x958] sm:$0xff] %v3173
        %4642 = vst [vmem:[%s157 + $0x960] sm:$0xff] %v2829
        %4643 = vst [vmem:[%s157 + $0x968] sm:$0xff] %v2831
        %4644 = vst [vmem:[%s157 + $0x970] sm:$0xff] %v3178
        %4645 = vst [vmem:[%s157 + $0x978] sm:$0xff] %v2835
        %4646 = vst [vmem:[%s157 + $0x980] sm:$0xff] %v2837
        %4647 = vst [vmem:[%s157 + $0x988] sm:$0xff] %v3183
        %4648 = vst [vmem:[%s157 + $0x990] sm:$0xff] %v2841
        %4649 = vst [vmem:[%s157 + $0x998] sm:$0xff] %v2843
        %4650 = vst [vmem:[%s157 + $0x9a0] sm:$0xff] %v3188
        %4651 = vst [vmem:[%s157 + $0x9a8] sm:$0xff] %v2847
        %4652 = vst [vmem:[%s157 + $0x9b0] sm:$0xff] %v2849
        %4653 = vst [vmem:[%s157 + $0x9b8] sm:$0xff] %v3193
        %4654 = vst [vmem:[%s157 + $0x9c0] sm:$0xff] %v2853
        %4655 = vst [vmem:[%s157 + $0x9c8] sm:$0xff] %v2855
        %4656 = vst [vmem:[%s157 + $0x9d0] sm:$0xff] %v3198
        %4657 = vst [vmem:[%s157 + $0x9d8] sm:$0xff] %v2859
        %4658 = vst [vmem:[%s157 + $0x9e0] sm:$0xff] %v2861
        %4659 = vst [vmem:[%s157 + $0x9e8] sm:$0xff] %v3203
        %4660 = vst [vmem:[%s157 + $0x9f0] sm:$0xff] %v2865
        %4661 = vst [vmem:[%s157 + $0x9f8] sm:$0xff] %v2867
        %4662 = vst [vmem:[%s157 + $0xa00] sm:$0xff] %v3208
        %4663 = vst [vmem:[%s157 + $0xa08] sm:$0xff] %v2871
        %4664 = vst [vmem:[%s157 + $0xa10] sm:$0xff] %v2873
        %4665 = vst [vmem:[%s157 + $0xa18] sm:$0xff] %v3213
        %4666 = vst [vmem:[%s157 + $0xa20] sm:$0xff] %v2877
        %4667 = vst [vmem:[%s157 + $0xa28] sm:$0xff] %v2879
        %4668 = vst [vmem:[%s157 + $0xa30] sm:$0xff] %v3218
        %4669 = vst [vmem:[%s157 + $0xa38] sm:$0xff] %v2883
        %4670 = vst [vmem:[%s157 + $0xa40] sm:$0xff] %v2885
        %4671 = vst [vmem:[%s157 + $0xa48] sm:$0xff] %v3223
        %4672 = vst [vmem:[%s157 + $0xa50] sm:$0xff] %v2889
        %4673 = vst [vmem:[%s157 + $0xa58] sm:$0xff] %v2891
        %4674 = vst [vmem:[%s157 + $0xa60] sm:$0xff] %v3228
        %4675 = vst [vmem:[%s157 + $0xa68] sm:$0xff] %v2895
        %4676 = vst [vmem:[%s157 + $0xa70] sm:$0xff] %v2897
        %4677 = vst [vmem:[%s157 + $0xa78] sm:$0xff] %v3233
        %4678 = vst [vmem:[%s157 + $0xa80] sm:$0xff] %v2901
        %4679 = vst [vmem:[%s157 + $0xa88] sm:$0xff] %v2903
        %4680 = vst [vmem:[%s157 + $0xa90] sm:$0xff] %v3238
        %4681 = vst [vmem:[%s157 + $0xa98] sm:$0xff] %v2907
        %4682 = vst [vmem:[%s157 + $0xaa0] sm:$0xff] %v2909
        %4683 = vst [vmem:[%s157 + $0xaa8] sm:$0xff] %v3243
        %4684 = vst [vmem:[%s157 + $0xab0] sm:$0xff] %v2913
        %4685 = vst [vmem:[%s157 + $0xab8] sm:$0xff] %v2915
        %4686 = vst [vmem:[%s157 + $0xac0] sm:$0xff] %v3248
        %4687 = vst [vmem:[%s157 + $0xac8] sm:$0xff] %v2919
        %4688 = vst [vmem:[%s157 + $0xad0] sm:$0xff] %v2921
        %4689 = vst [vmem:[%s157 + $0xad8] sm:$0xff] %v3253
        %4690 = vst [vmem:[%s157 + $0xae0] sm:$0xff] %v2925
        %4691 = vst [vmem:[%s157 + $0xae8] sm:$0xff] %v2927
        %4692 = vst [vmem:[%s157 + $0xaf0] sm:$0xff] %v3258
        %4693 = vst [vmem:[%s157 + $0xaf8] sm:$0xff] %v2931
        %4694 = vst [vmem:[%s157 + $0xb00] sm:$0xff] %v2933
        %4695 = vst [vmem:[%s157 + $0xb08] sm:$0xff] %v3263
        %4696 = vst [vmem:[%s157 + $0xb10] sm:$0xff] %v2937
        %4697 = vst [vmem:[%s157 + $0xb18] sm:$0xff] %v2939
        %4698 = vst [vmem:[%s157 + $0xb20] sm:$0xff] %v3268
        %4699 = vst [vmem:[%s157 + $0xb28] sm:$0xff] %v2943
        %4700 = vst [vmem:[%s157 + $0xb30] sm:$0xff] %v2945
        %4701 = vst [vmem:[%s157 + $0xb38] sm:$0xff] %v3273
        %4702 = vst [vmem:[%s157 + $0xb40] sm:$0xff] %v2949
        %4703 = vst [vmem:[%s157 + $0xb48] sm:$0xff] %v2951
        %4704 = vst [vmem:[%s157 + $0xb50] sm:$0xff] %v3278
        %4705 = vst [vmem:[%s157 + $0xb58] sm:$0xff] %v2955
        %4706 = vst [vmem:[%s157 + $0xb60] sm:$0xff] %v2957
        %4707 = vst [vmem:[%s157 + $0xb68] sm:$0xff] %v3283
        %4708 = vst [vmem:[%s157 + $0xb70] sm:$0xff] %v2961
        %4709 = vst [vmem:[%s157 + $0xb78] sm:$0xff] %v2963
        %4710 = vst [vmem:[%s157 + $0xb80] sm:$0xff] %v3288
        %4711 = vst [vmem:[%s157 + $0xb88] sm:$0xff] %v2967
        %4712 = vst [vmem:[%s157 + $0xb90] sm:$0xff] %v2969
        %4713 = vst [vmem:[%s157 + $0xb98] sm:$0xff] %v3293
        %4714 = vst [vmem:[%s157 + $0xba0] sm:$0xff] %v2973
        %4715 = vst [vmem:[%s157 + $0xba8] sm:$0xff] %v2975
        %4716 = vst [vmem:[%s157 + $0xbb0] sm:$0xff] %v3298
        %4717 = vst [vmem:[%s157 + $0xbb8] sm:$0xff] %v2979
        %4718 = vst [vmem:[%s157 + $0xbc0] sm:$0xff] %v2981
        %4719 = vst [vmem:[%s157 + $0xbc8] sm:$0xff] %v3303
        %4720 = vst [vmem:[%s157 + $0xbd0] sm:$0xff] %v2985
        %4721 = vst [vmem:[%s157 + $0xbd8] sm:$0xff] %v2987
        %4722 = vst [vmem:[%s157 + $0xbe0] sm:$0xff] %v3308
        %4723 = vst [vmem:[%s157 + $0xbe8] sm:$0xff] %v2991
        %4724 = vst [vmem:[%s157 + $0xbf0] sm:$0xff] %v2993
        %4725 = vst [vmem:[%s157 + $0xbf8] sm:$0xff] %v3313
        %4726 = vst [vmem:[%s157 + $0xc00] sm:$0xff] %v2997
        %4727 = vst [vmem:[%s157 + $0xc08] sm:$0xff] %v2999
        %4728 = vst [vmem:[%s157 + $0xc10] sm:$0xff] %v3318
        %4729 = vst [vmem:[%s157 + $0xc18] sm:$0xff] %v3003
        %4730 = vst [vmem:[%s157 + $0xc20] sm:$0xff] %v3005
        %4731 = vst [vmem:[%s157 + $0xc28] sm:$0xff] %v3323
        %4732 = vst [vmem:[%s157 + $0xc30] sm:$0xff] %v3009
        %4733 = vst [vmem:[%s157 + $0xc38] sm:$0xff] %v3011
        %4734 = vst [vmem:[%s157 + $0xc40] sm:$0xff] %v3328
        %4735 = vst [vmem:[%s157 + $0xc48] sm:$0xff] %v3015
        %4736 = vst [vmem:[%s157 + $0xc50] sm:$0xff] %v3017
        %4737 = vst [vmem:[%s157 + $0xc58] sm:$0xff] %v3333
        %4738 = vst [vmem:[%s157 + $0xc60] sm:$0xff] %v3021
        %4739 = vst [vmem:[%s157 + $0xc68] sm:$0xff] %v3023
        %4740 = vst [vmem:[%s157 + $0xc70] sm:$0xff] %v3338
        %4741 = vst [vmem:[%s157 + $0xc78] sm:$0xff] %v3027
        %4742 = vst [vmem:[%s157 + $0xc80] sm:$0xff] %v3029
        %4743 = vst [vmem:[%s157 + $0xc88] sm:$0xff] %v3343
        %4744 = vst [vmem:[%s157 + $0xc90] sm:$0xff] %v3033
        %4745 = vst [vmem:[%s157 + $0xc98] sm:$0xff] %v3035
        %4746 = vst [vmem:[%s157 + $0xca0] sm:$0xff] %v3348
        %4747 = vst [vmem:[%s157 + $0xca8] sm:$0xff] %v3039
        %4748 = vst [vmem:[%s157 + $0xcb0] sm:$0xff] %v3041
        %4749 = vst [vmem:[%s157 + $0xcb8] sm:$0xff] %v3353
        %4750 = vst [vmem:[%s157 + $0xcc0] sm:$0xff] %v3045
        %4751 = vst [vmem:[%s157 + $0xcc8] sm:$0xff] %v3047
        %4752 = vst [vmem:[%s157 + $0xcd0] sm:$0xff] %v3358
        %4753 = vst [vmem:[%s157 + $0xcd8] sm:$0xff] %v3051
        %4754 = vst [vmem:[%s157 + $0xce0] sm:$0xff] %v3053
        %4755 = vst [vmem:[%s157 + $0xce8] sm:$0xff] %v3363
        %4756 = vst [vmem:[%s157 + $0xcf0] sm:$0xff] %v3057
        %4757 = vst [vmem:[%s157 + $0xcf8] sm:$0xff] %v3059
        %4758 = vst [vmem:[%s157 + $0xd00] sm:$0xff] %v3368
        %4759 = vst [vmem:[%s157 + $0xd08] sm:$0xff] %v3063
        %4760 = vst [vmem:[%s157 + $0xd10] sm:$0xff] %v3065
        %4761 = vst [vmem:[%s157 + $0xd18] sm:$0xff] %v3373
        %4762 = vst [vmem:[%s157 + $0xd20] sm:$0xff] %v3069
        %4763 = vst [vmem:[%s157 + $0xd28] sm:$0xff] %v3071
        %4764 = vst [vmem:[%s157 + $0xd30] sm:$0xff] %v3378
        %4765 = vst [vmem:[%s157 + $0xd38] sm:$0xff] %v3075
        %4766 = vst [vmem:[%s157 + $0xd40] sm:$0xff] %v3077
        %4767 = vst [vmem:[%s157 + $0xd48] sm:$0xff] %v3383
        %4768 = vst [vmem:[%s157 + $0xd50] sm:$0xff] %v3081
        %4769 = vst [vmem:[%s157 + $0xd58] sm:$0xff] %v3083
        %4770 = vst [vmem:[%s157 + $0xd60] sm:$0xff] %v3388
        %4771 = vst [vmem:[%s157 + $0xd68] sm:$0xff] %v3087
        %4772 = vst [vmem:[%s157 + $0xd70] sm:$0xff] %v3089
        %4773 = vst [vmem:[%s157 + $0xd78] sm:$0xff] %v3393
        %4774 = vst [vmem:[%s157 + $0xd80] sm:$0xff] %v3751
        %4775 = vst [vmem:[%s157 + $0xd88] sm:$0xff] %v3753
        %4776 = vst [vmem:[%s157 + $0xd90] sm:$0xff] %v4104
        %4777 = vst [vmem:[%s157 + $0xd98] sm:$0xff] %v3757
        %4778 = vst [vmem:[%s157 + $0xda0] sm:$0xff] %v3759
        %4779 = vst [vmem:[%s157 + $0xda8] sm:$0xff] %v4109
        %4780 = vst [vmem:[%s157 + $0xdb0] sm:$0xff] %v3763
        %4781 = vst [vmem:[%s157 + $0xdb8] sm:$0xff] %v3765
        %4782 = vst [vmem:[%s157 + $0xdc0] sm:$0xff] %v4114
        %4783 = vst [vmem:[%s157 + $0xdc8] sm:$0xff] %v3769
        %4784 = vst [vmem:[%s157 + $0xdd0] sm:$0xff] %v3771
        %4785 = vst [vmem:[%s157 + $0xdd8] sm:$0xff] %v4119
        %4786 = vst [vmem:[%s157 + $0xde0] sm:$0xff] %v3775
        %4787 = vst [vmem:[%s157 + $0xde8] sm:$0xff] %v3777
        %4788 = vst [vmem:[%s157 + $0xdf0] sm:$0xff] %v4124
        %4789 = vst [vmem:[%s157 + $0xdf8] sm:$0xff] %v3781
        %4790 = vst [vmem:[%s157 + $0xe00] sm:$0xff] %v3783
        %4791 = vst [vmem:[%s157 + $0xe08] sm:$0xff] %v4129
        %4792 = vst [vmem:[%s157 + $0xe10] sm:$0xff] %v3787
        %4793 = vst [vmem:[%s157 + $0xe18] sm:$0xff] %v3789
        %4794 = vst [vmem:[%s157 + $0xe20] sm:$0xff] %v4134
        %4795 = vst [vmem:[%s157 + $0xe28] sm:$0xff] %v3793
        %4796 = vst [vmem:[%s157 + $0xe30] sm:$0xff] %v3795
        %4797 = vst [vmem:[%s157 + $0xe38] sm:$0xff] %v4139
        %4798 = vst [vmem:[%s157 + $0xe40] sm:$0xff] %v3799
        %4799 = vst [vmem:[%s157 + $0xe48] sm:$0xff] %v3801
        %4800 = vst [vmem:[%s157 + $0xe50] sm:$0xff] %v4144
        %4801 = vst [vmem:[%s157 + $0xe58] sm:$0xff] %v3805
        %4802 = vst [vmem:[%s157 + $0xe60] sm:$0xff] %v3807
        %4803 = vst [vmem:[%s157 + $0xe68] sm:$0xff] %v4149
        %4804 = vst [vmem:[%s157 + $0xe70] sm:$0xff] %v3811
        %4805 = vst [vmem:[%s157 + $0xe78] sm:$0xff] %v3813
        %4806 = vst [vmem:[%s157 + $0xe80] sm:$0xff] %v4154
        %4807 = vst [vmem:[%s157 + $0xe88] sm:$0xff] %v3817
        %4808 = vst [vmem:[%s157 + $0xe90] sm:$0xff] %v3819
        %4809 = vst [vmem:[%s157 + $0xe98] sm:$0xff] %v4159
        %4810 = vst [vmem:[%s157 + $0xea0] sm:$0xff] %v3823
        %4811 = vst [vmem:[%s157 + $0xea8] sm:$0xff] %v3825
        %4812 = vst [vmem:[%s157 + $0xeb0] sm:$0xff] %v4164
        %4813 = vst [vmem:[%s157 + $0xeb8] sm:$0xff] %v3829
        %4814 = vst [vmem:[%s157 + $0xec0] sm:$0xff] %v3831
        %4815 = vst [vmem:[%s157 + $0xec8] sm:$0xff] %v4169
        %4816 = vst [vmem:[%s157 + $0xed0] sm:$0xff] %v3835
        %4817 = vst [vmem:[%s157 + $0xed8] sm:$0xff] %v3837
        %4818 = vst [vmem:[%s157 + $0xee0] sm:$0xff] %v4174
        %4819 = vst [vmem:[%s157 + $0xee8] sm:$0xff] %v3841
        %4820 = vst [vmem:[%s157 + $0xef0] sm:$0xff] %v3843
        %4821 = vst [vmem:[%s157 + $0xef8] sm:$0xff] %v4179
        %4822 = vst [vmem:[%s157 + $0xf00] sm:$0xff] %v3847
        %4823 = vst [vmem:[%s157 + $0xf08] sm:$0xff] %v3849
        %4824 = vst [vmem:[%s157 + $0xf10] sm:$0xff] %v4184
        %4825 = vst [vmem:[%s157 + $0xf18] sm:$0xff] %v3853
        %4826 = vst [vmem:[%s157 + $0xf20] sm:$0xff] %v3855
        %4827 = vst [vmem:[%s157 + $0xf28] sm:$0xff] %v4189
        %4828 = vst [vmem:[%s157 + $0xf30] sm:$0xff] %v3859
        %4829 = vst [vmem:[%s157 + $0xf38] sm:$0xff] %v3861
        %4830 = vst [vmem:[%s157 + $0xf40] sm:$0xff] %v4194
        %4831 = vst [vmem:[%s157 + $0xf48] sm:$0xff] %v3865
        %4832 = vst [vmem:[%s157 + $0xf50] sm:$0xff] %v3867
        %4833 = vst [vmem:[%s157 + $0xf58] sm:$0xff] %v4199
        %4834 = vst [vmem:[%s157 + $0xf60] sm:$0xff] %v3871
        %4835 = vst [vmem:[%s157 + $0xf68] sm:$0xff] %v3873
        %4836 = vst [vmem:[%s157 + $0xf70] sm:$0xff] %v4204
        %4837 = vst [vmem:[%s157 + $0xf78] sm:$0xff] %v3877
        %4838 = vst [vmem:[%s157 + $0xf80] sm:$0xff] %v3879
        %4839 = vst [vmem:[%s157 + $0xf88] sm:$0xff] %v4209
        %4840 = vst [vmem:[%s157 + $0xf90] sm:$0xff] %v3883
        %4841 = vst [vmem:[%s157 + $0xf98] sm:$0xff] %v3885
        %4842 = vst [vmem:[%s157 + $0xfa0] sm:$0xff] %v4214
        %4843 = vst [vmem:[%s157 + $0xfa8] sm:$0xff] %v3889
        %4844 = vst [vmem:[%s157 + $0xfb0] sm:$0xff] %v3891
        %4845 = vst [vmem:[%s157 + $0xfb8] sm:$0xff] %v4219
        %4846 = vst [vmem:[%s157 + $0xfc0] sm:$0xff] %v3895
        %4847 = vst [vmem:[%s157 + $0xfc8] sm:$0xff] %v3897
        %4848 = vst [vmem:[%s157 + $0xfd0] sm:$0xff] %v4224
        %4849 = vst [vmem:[%s157 + $0xfd8] sm:$0xff] %v3901
        %4850 = vst [vmem:[%s157 + $0xfe0] sm:$0xff] %v3903
        %4851 = vst [vmem:[%s157 + $0xfe8] sm:$0xff] %v4229
        %4852 = vst [vmem:[%s157 + $0xff0] sm:$0xff] %v3907
        %4853 = vst [vmem:[%s157 + $0xff8] sm:$0xff] %v3909
        %4854 = vst [vmem:[%s157 + $0x1000] sm:$0xff] %v4234
        %4855 = vst [vmem:[%s157 + $0x1008] sm:$0xff] %v3913
        %4856 = vst [vmem:[%s157 + $0x1010] sm:$0xff] %v3915
        %4857 = vst [vmem:[%s157 + $0x1018] sm:$0xff] %v4239
        %4858 = vst [vmem:[%s157 + $0x1020] sm:$0xff] %v3919
        %4859 = vst [vmem:[%s157 + $0x1028] sm:$0xff] %v3921
        %4860 = vst [vmem:[%s157 + $0x1030] sm:$0xff] %v4244
        %4861 = vst [vmem:[%s157 + $0x1038] sm:$0xff] %v3925
        %4862 = vst [vmem:[%s157 + $0x1040] sm:$0xff] %v3927
        %4863 = vst [vmem:[%s157 + $0x1048] sm:$0xff] %v4249
        %4864 = vst [vmem:[%s157 + $0x1050] sm:$0xff] %v3931
        %4865 = vst [vmem:[%s157 + $0x1058] sm:$0xff] %v3933
        %4866 = vst [vmem:[%s157 + $0x1060] sm:$0xff] %v4254
        %4867 = vst [vmem:[%s157 + $0x1068] sm:$0xff] %v3937
        %4868 = vst [vmem:[%s157 + $0x1070] sm:$0xff] %v3939
        %4869 = vst [vmem:[%s157 + $0x1078] sm:$0xff] %v4259
        %4870 = vst [vmem:[%s157 + $0x1080] sm:$0xff] %v3943
        %4871 = vst [vmem:[%s157 + $0x1088] sm:$0xff] %v3945
        %4872 = vst [vmem:[%s157 + $0x1090] sm:$0xff] %v4264
        %4873 = vst [vmem:[%s157 + $0x1098] sm:$0xff] %v3949
        %4874 = vst [vmem:[%s157 + $0x10a0] sm:$0xff] %v3951
        %4875 = vst [vmem:[%s157 + $0x10a8] sm:$0xff] %v4269
        %4876 = vst [vmem:[%s157 + $0x10b0] sm:$0xff] %v3955
        %4877 = vst [vmem:[%s157 + $0x10b8] sm:$0xff] %v3957
        %4878 = vst [vmem:[%s157 + $0x10c0] sm:$0xff] %v4274
        %4879 = vst [vmem:[%s157 + $0x10c8] sm:$0xff] %v3961
        %4880 = vst [vmem:[%s157 + $0x10d0] sm:$0xff] %v3963
        %4881 = vst [vmem:[%s157 + $0x10d8] sm:$0xff] %v4279
        %4882 = vst [vmem:[%s157 + $0x10e0] sm:$0xff] %v3967
        %4883 = vst [vmem:[%s157 + $0x10e8] sm:$0xff] %v3969
        %4884 = vst [vmem:[%s157 + $0x10f0] sm:$0xff] %v4284
        %4885 = vst [vmem:[%s157 + $0x10f8] sm:$0xff] %v3973
        %4886 = vst [vmem:[%s157 + $0x1100] sm:$0xff] %v3975
        %4887 = vst [vmem:[%s157 + $0x1108] sm:$0xff] %v4289
        %4888 = vst [vmem:[%s157 + $0x1110] sm:$0xff] %v3979
        %4889 = vst [vmem:[%s157 + $0x1118] sm:$0xff] %v3981
        %4890 = vst [vmem:[%s157 + $0x1120] sm:$0xff] %v4294
        %4891 = vst [vmem:[%s157 + $0x1128] sm:$0xff] %v3985
        %4892 = vst [vmem:[%s157 + $0x1130] sm:$0xff] %v3987
        %4893 = vst [vmem:[%s157 + $0x1138] sm:$0xff] %v4299
        %4894 = vst [vmem:[%s157 + $0x1140] sm:$0xff] %v3991
        %4895 = vst [vmem:[%s157 + $0x1148] sm:$0xff] %v3993
        %4896 = vst [vmem:[%s157 + $0x1150] sm:$0xff] %v4304
        %4897 = vst [vmem:[%s157 + $0x1158] sm:$0xff] %v3997
        %4898 = vst [vmem:[%s157 + $0x1160] sm:$0xff] %v3999
        %4899 = vst [vmem:[%s157 + $0x1168] sm:$0xff] %v4309
        %4900 = vst [vmem:[%s157 + $0x1170] sm:$0xff] %v4003
        %4901 = vst [vmem:[%s157 + $0x1178] sm:$0xff] %v4005
        %4902 = vst [vmem:[%s157 + $0x1180] sm:$0xff] %v4314
        %4903 = vst [vmem:[%s157 + $0x1188] sm:$0xff] %v4009
        %4904 = vst [vmem:[%s157 + $0x1190] sm:$0xff] %v4011
        %4905 = vst [vmem:[%s157 + $0x1198] sm:$0xff] %v4319
        %4906 = vst [vmem:[%s157 + $0x11a0] sm:$0xff] %v4015
        %4907 = vst [vmem:[%s157 + $0x11a8] sm:$0xff] %v4017
        %4908 = vst [vmem:[%s157 + $0x11b0] sm:$0xff] %v4324
        %4909 = vst [vmem:[%s157 + $0x11b8] sm:$0xff] %v4021
        %4910 = vst [vmem:[%s157 + $0x11c0] sm:$0xff] %v4023
        %4911 = vst [vmem:[%s157 + $0x11c8] sm:$0xff] %v4329
        %4912 = vst [vmem:[%s157 + $0x11d0] sm:$0xff] %v4027
        %4913 = vst [vmem:[%s157 + $0x11d8] sm:$0xff] %v4029
        %4914 = vst [vmem:[%s157 + $0x11e0] sm:$0xff] %v4334
        %4915 = vst [vmem:[%s157 + $0x11e8] sm:$0xff] %v4033
        %4916 = vst [vmem:[%s157 + $0x11f0] sm:$0xff] %v4035
        %4917 = vst [vmem:[%s157 + $0x11f8] sm:$0xff] %v4339
        %s4918 = sand.u32 %s76, 1
        %s4919 = scalar_lea.sflag [#allocation3], %s4918
        %s4920 = sand.u32 %s76, 1
        %s4921 = smul.addr %s4920, 4608
        %s4922 = scalar_lea.vmem [#allocation2], %s4921
        // Predicated region
        $region29: #{tpu_custom_call.1} parent=27 // pred_check
          %p4923 = pneg %p86
        $region30: #{tpu_custom_call.1} parent=27 // pred_check_branch
          %4925 = sbr.rel (%p4923) target = $region32
        $region31: #{tpu_custom_call.1} parent=27 // pred_region
          %s4926 = smul.u32 4, %s16
          %s4928 = ssub.s32 73728, 73728
          %4929 = vsyncadd %s4919, %s4928
          %s4930 = smul.addr %s4926, 144
          %s4931 = smul.addr %s4930, 128
          %s4932 = scalar_lea.hbm %s2, %s4931
          %s4933 = sshll.u32 %s4922, 4
          %s4934 = int_to_ptr.vmem [resolvable:$true] %s4933
          %4939 = dma.vmem_to_hbm [thread:$0]  %s4934, 73728, %s4932, %s4919, 384, 384, 24
        $region32: #{tpu_custom_call.1} parent=27 // pred_fallthru
          _
      $region28: #{tpu_custom_call.1} parent=5 // pred_fallthru
        _
      %p4940 = scmp.le.s32.totalorder 2, %s11
      // Predicated region
      $region33: #{tpu_custom_call.1} parent=5 // pred_check
        %p4941 = pneg %p4940
      $region34: #{tpu_custom_call.1} parent=5 // pred_check_branch
        %4943 = sbr.rel (%p4941) target = $region36
      $region35: #{tpu_custom_call.1} parent=5 // pred_region
        %s4944 = ssub.s32 %s11, 2
        // Predicated region
        $region37: #{tpu_custom_call.1} parent=35 // pred_check
          %p4945 = pneg %p92
        $region38: #{tpu_custom_call.1} parent=35 // pred_check_branch
          %4947 = sbr.rel (%p4945) target = $region40
        $region39: #{tpu_custom_call.1} parent=35 // pred_region
          %s4948 = sand.u32 %s77, 1
          %s4949 = scalar_lea.sflag [#allocation3], %s4948
          %s4950 = sand.u32 %s77, 1
          %s4951 = smul.addr %s4950, 4608
          %s4952 = scalar_lea.vmem [#allocation2], %s4951
          %4953 = dma.done %s4949, 73728
        $region40: #{tpu_custom_call.1} parent=35 // pred_fallthru
          _
      $region36: #{tpu_custom_call.1} parent=5 // pred_fallthru
        _
    $region6: #{tpu_custom_call.1} parent=1 // loop_footer
      %s15 = sadd.s32 1, %s11
    $region7: #{tpu_custom_call.1} parent=1 // loop_footer_branch
      %10 = sbr.rel target = $region3
    $region8: #{tpu_custom_call.1} parent=1 // loop_exit
      _
    %4954 = vsyncpa [#allocation3], 1
    %s4955 = scalar_lea.sflag [#allocation3], 1
    %4956 = vsyncpa %s4955, 1

</llo_original>
